<compile_context>
chip_gen: v7x
topology: tpu7x:2x2x1
jax: 0.10.0
libtpu: 0.0.40
codegen_flags: <defaults>
</compile_context>

<pallas_src>
import functools

import jax
import jax.numpy as jnp
import numpy as np
from jax.experimental import pallas as pl
from jax.experimental.pallas import tpu as pltpu


def _pick_block(n, pref):
    """Largest block size <= pref that divides n and keeps (8,128) tiling legal."""
    if n <= pref:
        return n
    for r in range(pref, 7, -1):
        if n % r == 0 and r % 8 == 0:
            return r
    return n


# ----------------------------------------------------------------------------
# Kernel 1: input projection (hoisted out of the recurrence), row-tiled/parallel
# ----------------------------------------------------------------------------
def _in_proj_kernel(x_ref, w_ref, b_ref, gr_ref, gz_ref, gn_ref):
    hid = gr_ref.shape[-1]
    y = jnp.dot(x_ref[...], w_ref[...],
                preferred_element_type=jnp.float32) + b_ref[...]
    gr_ref[...] = y[:, 0:hid]
    gz_ref[...] = y[:, hid:2 * hid]
    gn_ref[...] = y[:, 2 * hid:3 * hid]


def input_projection(x2d, w_ih, b_ih):
    """gi = x @ W_ih + b_ih, split per gate.  x2d: (N, E) -> 3 x (N, H)."""
    n, e = x2d.shape
    h3 = w_ih.shape[1]
    hid = h3 // 3
    r = _pick_block(n, 512)
    return pl.pallas_call(
        _in_proj_kernel,
        out_shape=tuple(jax.ShapeDtypeStruct((n, hid), jnp.float32)
                        for _ in range(3)),
        grid_spec=pltpu.PrefetchScalarGridSpec(
            num_scalar_prefetch=0,
            grid=(n // r,),
            in_specs=[
                pl.BlockSpec((r, e), lambda i: (i, 0)),       # x rows
                pl.BlockSpec((e, h3), lambda i: (0, 0)),      # W_ih
                pl.BlockSpec((1, h3), lambda i: (0, 0)),      # b_ih
            ],
            out_specs=tuple(pl.BlockSpec((r, hid), lambda i: (i, 0))
                            for _ in range(3)),
        ),
        compiler_params=pltpu.CompilerParams(
            dimension_semantics=("parallel",)),
    )(x2d, w_ih, b_ih)


# ----------------------------------------------------------------------------
# Kernel 2: masked GRU recurrence + fused fc/ReLU/LayerNorm + classifier
#           grid = (batch blocks [parallel], time blocks [arbitrary])
# ----------------------------------------------------------------------------
def _gru_fused_kernel(len_ref, gir_ref, giz_ref, gin_ref, whh_ref, bhh_ref,
                      fcw_ref, fcb_ref, lng_ref, lnb_ref, clsw_ref, clsb_ref,
                      fea_ref, hlast_ref, scores_ref, h_scr):
    tb = pl.program_id(1)
    tc_steps = fea_ref.shape[0]

    @pl.when(tb == 0)
    def _():
        h_scr[...] = jnp.zeros_like(h_scr)

    lens = len_ref[...]                      # (BNb, 1) int32, loaded once
    bhh_r = bhh_ref[0]                       # (1, H)
    bhh_z = bhh_ref[1]
    bhh_n = bhh_ref[2]
    fcb = fcb_ref[...]
    gamma = lng_ref[...]
    beta = lnb_ref[...]

    h = h_scr[...]                           # (BNb, H)
    t0 = tb * tc_steps
    for tc in range(tc_steps):               # static unroll over the time block
        gh_r = jnp.dot(h, whh_ref[0], preferred_element_type=jnp.float32) + bhh_r
        gh_z = jnp.dot(h, whh_ref[1], preferred_element_type=jnp.float32) + bhh_z
        gh_n = jnp.dot(h, whh_ref[2], preferred_element_type=jnp.float32) + bhh_n
        r = jax.nn.sigmoid(gir_ref[tc] + gh_r)
        z = jax.nn.sigmoid(giz_ref[tc] + gh_z)
        n = jnp.tanh(gin_ref[tc] + r * gh_n)
        h_new = (1.0 - z) * n + z * h
        valid = (t0 + tc) < lens             # (BNb, 1) bool
        h = jnp.where(valid, h_new, h)       # freeze state past the length
        cap_t = jnp.where(valid, h_new, 0.0)  # pad_packed: zeros past length
        # fused fc -> ReLU -> (dropout = identity) -> LayerNorm epilogue
        y = jnp.dot(cap_t, fcw_ref[...], preferred_element_type=jnp.float32) + fcb
        y = jnp.maximum(y, 0.0)
        mu = jnp.mean(y, axis=-1, keepdims=True)
        var = jnp.mean(jnp.square(y - mu), axis=-1, keepdims=True)
        fea_ref[tc] = (y - mu) * jax.lax.rsqrt(var + 1e-5) * gamma + beta

    h_scr[...] = h                           # single state store per grid step

    @pl.when(tb == pl.num_programs(1) - 1)   # only write on the final time block
    def _():
        hlast_ref[...] = h
        scores_ref[...] = (jnp.dot(h, clsw_ref[...],
                                   preferred_element_type=jnp.float32)
                           + clsb_ref[...])


def gru_fc_cls_fused(gi_r, gi_z, gi_n, lengths, w_hh, b_hh,
                     fc_w, fc_b, ln_g, ln_b, cls_w, cls_b):
    """gi_*: (T, BN, H) time-major.

    Returns (lang_fea time-major (T, BN, H), lang_last (BN, H), scores (BN, C)).
    """
    t, bn, hid = gi_r.shape
    c = cls_w.shape[-1]
    tcb = 8 if t % 8 == 0 else t             # time steps per grid step
    bnb = _pick_block(bn, 128)               # batch rows per (parallel) block
    grid = (bn // bnb, t // tcb)

    return pl.pallas_call(
        _gru_fused_kernel,
        out_shape=(jax.ShapeDtypeStruct((t, bn, hid), jnp.float32),
                   jax.ShapeDtypeStruct((bn, hid), jnp.float32),
                   jax.ShapeDtypeStruct((bn, c), jnp.float32)),
        grid_spec=pltpu.PrefetchScalarGridSpec(
            num_scalar_prefetch=0,
            grid=grid,
            in_specs=[
                pl.BlockSpec((bnb, 1), lambda nb, tb: (nb, 0)),            # lengths
                pl.BlockSpec((tcb, bnb, hid), lambda nb, tb: (tb, nb, 0)),  # gi_r
                pl.BlockSpec((tcb, bnb, hid), lambda nb, tb: (tb, nb, 0)),  # gi_z
                pl.BlockSpec((tcb, bnb, hid), lambda nb, tb: (tb, nb, 0)),  # gi_n
                pl.BlockSpec((3, hid, hid), lambda nb, tb: (0, 0, 0)),      # W_hh / gate
                pl.BlockSpec((3, 1, hid), lambda nb, tb: (0, 0, 0)),        # b_hh / gate
                pl.BlockSpec((hid, hid), lambda nb, tb: (0, 0)),            # fc_w
                pl.BlockSpec((1, hid), lambda nb, tb: (0, 0)),              # fc_b
                pl.BlockSpec((1, hid), lambda nb, tb: (0, 0)),              # ln_g
                pl.BlockSpec((1, hid), lambda nb, tb: (0, 0)),              # ln_b
                pl.BlockSpec((hid, c), lambda nb, tb: (0, 0)),              # cls_w
                pl.BlockSpec((1, c), lambda nb, tb: (0, 0)),                # cls_b
            ],
            out_specs=(
                pl.BlockSpec((tcb, bnb, hid), lambda nb, tb: (tb, nb, 0)),  # lang_fea
                pl.BlockSpec((bnb, hid), lambda nb, tb: (nb, 0)),           # lang_last
                pl.BlockSpec((bnb, c), lambda nb, tb: (nb, 0)),             # lang_scores
            ),
            scratch_shapes=[pltpu.VMEM((bnb, hid), jnp.float32)],
        ),
        compiler_params=pltpu.CompilerParams(
            dimension_semantics=("parallel", "arbitrary")),
    )(lengths, gi_r, gi_z, gi_n, w_hh, b_hh,
      fc_w, fc_b, ln_g, ln_b, cls_w, cls_b)


# ----------------------------------------------------------------------------
# LangModule forward (glue in plain JAX, hot paths in Pallas)
# ----------------------------------------------------------------------------
def lang_module_forward(word_embs, lang_len, params):
    """word_embs: (B, L, T, E) float32; lang_len: (B, L) int32."""
    b, l, t, e = word_embs.shape
    bn = b * l
    hid = params["gru_w_hh"].shape[-1]

    x = word_embs.reshape(bn, t, e)
    lengths = lang_len.reshape(bn, 1).astype(jnp.int32)

    # Kernel 1: input projection hoisted out of the recurrence (time-major rows).
    x2d = jnp.transpose(x, (1, 0, 2)).reshape(t * bn, e)
    gi_r, gi_z, gi_n = input_projection(x2d, params["gru_w_ih"], params["gru_b_ih"])
    gi_r = gi_r.reshape(t, bn, hid)
    gi_z = gi_z.reshape(t, bn, hid)
    gi_n = gi_n.reshape(t, bn, hid)

    # Kernel 2: masked GRU + fused fc/ReLU/LayerNorm + classifier epilogue.
    fea_tm, lang_last, lang_scores = gru_fc_cls_fused(
        gi_r, gi_z, gi_n, lengths,
        params["gru_w_hh"], params["gru_b_hh"],
        params["fc_w"], params["fc_b"], params["ln_g"], params["ln_b"],
        params["cls_w"], params["cls_b"])

    lang_fea = jnp.transpose(fea_tm, (1, 0, 2))            # (BN, T, H)

    # attention mask: True where padded, shape (BN, 1, 1, T)
    pos = jnp.arange(t, dtype=jnp.int32)[None, :]
    attention_mask = (pos >= lengths).reshape(bn, 1, 1, t)

    return {
        "attention_mask": attention_mask,
        "lang_fea": lang_fea,
        "lang_emb": lang_last,     # 1 layer, 1 dir -> permute/flatten is identity
        "lang_scores": lang_scores,
    }


# ----------------------------------------------------------------------------
# Pure-JAX reference (end-to-end correctness check)
# ----------------------------------------------------------------------------
def lang_module_ref(word_embs, lang_len, params):
    b, l, t, e = word_embs.shape
    bn = b * l
    hid = params["gru_w_hh"].shape[-1]
    x = word_embs.reshape(bn, t, e)
    lens = lang_len.reshape(bn)
    w_ih, b_ih = params["gru_w_ih"], params["gru_b_ih"]
    w_hh = jnp.concatenate([params["gru_w_hh"][g] for g in range(3)], axis=1)
    b_hh = jnp.concatenate([params["gru_b_hh"][g] for g in range(3)], axis=1)
    h = jnp.zeros((bn, hid), jnp.float32)
    outs = []
    for step in range(t):
        gi = x[:, step, :] @ w_ih + b_ih
        gh = h @ w_hh + b_hh
        r = jax.nn.sigmoid(gi[:, :hid] + gh[:, :hid])
        z = jax.nn.sigmoid(gi[:, hid:2 * hid] + gh[:, hid:2 * hid])
        n = jnp.tanh(gi[:, 2 * hid:] + r * gh[:, 2 * hid:])
        h_new = (1.0 - z) * n + z * h
        valid = (step < lens)[:, None]
        h = jnp.where(valid, h_new, h)
        outs.append(jnp.where(valid, h_new, 0.0))
    cap = jnp.stack(outs, axis=1)                                 # (BN, T, H)
    y = jnp.maximum(cap @ params["fc_w"] + params["fc_b"], 0.0)
    mu = y.mean(-1, keepdims=True)
    var = ((y - mu) ** 2).mean(-1, keepdims=True)
    fea = (y - mu) * jax.lax.rsqrt(var + 1e-5) * params["ln_g"] + params["ln_b"]
    scores = h @ params["cls_w"] + params["cls_b"]
    mask = (jnp.arange(t)[None, :] >= lens[:, None]).reshape(bn, 1, 1, t)
    return mask, fea, h, scores


if __name__ == "__main__":
    # Small, deterministic config
    B, L, T = 2, 2, 8            # batch, len_num_max, max_des_len
    E, H, C = 32, 32, 16         # emb_size, hidden_size, num_text_classes
    BN = B * L

    key = jax.random.PRNGKey(0)
    ks = jax.random.split(key, 10)
    s = 1.0 / np.sqrt(H)

    params = {
        "gru_w_ih": jax.random.uniform(ks[0], (E, 3 * H), jnp.float32, -s, s),
        "gru_b_ih": jax.random.uniform(ks[1], (1, 3 * H), jnp.float32, -s, s),
        "gru_w_hh": jax.random.uniform(ks[2], (3, H, H), jnp.float32, -s, s),
        "gru_b_hh": jax.random.uniform(ks[3], (3, 1, H), jnp.float32, -s, s),
        "fc_w": jax.random.uniform(ks[4], (H, H), jnp.float32, -s, s),
        "fc_b": jax.random.uniform(ks[5], (1, H), jnp.float32, -s, s),
        "ln_g": jnp.ones((1, H), jnp.float32),
        "ln_b": jnp.zeros((1, H), jnp.float32),
        "cls_w": jax.random.uniform(ks[6], (H, C), jnp.float32, -s, s),
        "cls_b": jax.random.uniform(ks[7], (1, C), jnp.float32, -s, s),
    }

    word_embs = jax.random.normal(ks[8], (B, L, T, E), jnp.float32)
    lang_len = jnp.array([[T, 5], [3, 6]], dtype=jnp.int32)   # max == T

    fwd = jax.jit(functools.partial(lang_module_forward, params=params))
    out = fwd(word_embs, lang_len)
    jax.block_until_ready(out)

    # end-to-end check against a pure-JAX reference
    ref_mask, ref_fea, ref_emb, ref_scores = lang_module_ref(
        word_embs, lang_len, params)
    np.testing.assert_array_equal(np.asarray(out["attention_mask"]),
                                  np.asarray(ref_mask))
    np.testing.assert_allclose(np.asarray(out["lang_fea"]), np.asarray(ref_fea),
                               rtol=2e-4, atol=2e-4)
    np.testing.assert_allclose(np.asarray(out["lang_emb"]), np.asarray(ref_emb),
                               rtol=2e-4, atol=2e-4)
    np.testing.assert_allclose(np.asarray(out["lang_scores"]),
                               np.asarray(ref_scores), rtol=2e-4, atol=2e-4)

    assert out["lang_fea"].shape == (BN, T, H)
    assert out["lang_emb"].shape == (BN, H)
    assert out["lang_scores"].shape == (BN, C)
    assert out["attention_mask"].shape == (BN, 1, 1, T)

    print("KERNEL_OK")
</pallas_src>

<mosaic_0001>
module attributes {stable_mosaic.version = 11 : i64} {
  func.func @_in_proj_kernel(%arg0: i32, %arg1: memref<32x32xf32, #tpu.memory_space<vmem>>, %arg2: memref<32x96xf32, #tpu.memory_space<vmem>>, %arg3: memref<1x96xf32, #tpu.memory_space<vmem>>, %arg4: memref<32x32xf32, #tpu.memory_space<vmem>>, %arg5: memref<32x32xf32, #tpu.memory_space<vmem>>, %arg6: memref<32x32xf32, #tpu.memory_space<vmem>>) attributes {dimension_semantics = [#tpu.dimension_semantics<parallel>], iteration_bounds = array<i64: 1>, scalar_prefetch = 0 : i64, scratch_operands = 0 : i64, tpu.core_type = #tpu.core_type<tc>, window_params = [{transform_indices = @transform_0, window_bounds = array<i64: 32, 32>}, {pipeline_mode = #tpu.pipeline_mode<synchronous>, transform_indices = @transform_1, window_bounds = array<i64: 32, 96>}, {pipeline_mode = #tpu.pipeline_mode<synchronous>, transform_indices = @transform_2, window_bounds = array<i64: 1, 96>}, {transform_indices = @transform_3, window_bounds = array<i64: 32, 32>}, {transform_indices = @transform_4, window_bounds = array<i64: 32, 32>}, {transform_indices = @transform_5, window_bounds = array<i64: 32, 32>}]} {
    %c0 = arith.constant 0 : index
    %c0_0 = arith.constant 0 : index
    %0 = vector.load %arg1[%c0, %c0_0] : memref<32x32xf32, #tpu.memory_space<vmem>>, vector<32x32xf32>
    %c0_1 = arith.constant 0 : index
    %c0_2 = arith.constant 0 : index
    %1 = vector.load %arg2[%c0_1, %c0_2] : memref<32x96xf32, #tpu.memory_space<vmem>>, vector<32x96xf32>
    %cst = arith.constant dense<0.000000e+00> : vector<32x96xf32>
    %2 = tpu.matmul %0, %1, %cst {dimension_numbers = #tpu.dot_dimension_numbers<[1], [0], [0], [1], [0, 0, 1, 1], [], []>} : vector<32x32xf32>, vector<32x96xf32>, vector<32x96xf32> -> vector<32x96xf32>
    %c0_3 = arith.constant 0 : index
    %c0_4 = arith.constant 0 : index
    %3 = vector.load %arg3[%c0_3, %c0_4] : memref<1x96xf32, #tpu.memory_space<vmem>>, vector<1x96xf32>
    %4 = vector.broadcast %3 : vector<1x96xf32> to vector<32x96xf32>
    %5 = arith.addf %2, %4 : vector<32x96xf32>
    %6 = vector.extract_strided_slice %5 {offsets = [0, 0], sizes = [32, 32], strides = [1, 1]} : vector<32x96xf32> to vector<32x32xf32>
    %c0_5 = arith.constant 0 : index
    %c0_6 = arith.constant 0 : index
    %7 = vector.load %arg4[%c0_5, %c0_6] : memref<32x32xf32, #tpu.memory_space<vmem>>, vector<32x32xf32>
    tpu.vector_store %arg4[%c0_5, %c0_6], %6 {strides = array<i32>} : memref<32x32xf32, #tpu.memory_space<vmem>>, vector<32x32xf32>,
    %8 = vector.extract_strided_slice %5 {offsets = [0, 32], sizes = [32, 32], strides = [1, 1]} : vector<32x96xf32> to vector<32x32xf32>
    %c0_7 = arith.constant 0 : index
    %c0_8 = arith.constant 0 : index
    %9 = vector.load %arg5[%c0_7, %c0_8] : memref<32x32xf32, #tpu.memory_space<vmem>>, vector<32x32xf32>
    tpu.vector_store %arg5[%c0_7, %c0_8], %8 {strides = array<i32>} : memref<32x32xf32, #tpu.memory_space<vmem>>, vector<32x32xf32>,
    %10 = vector.extract_strided_slice %5 {offsets = [0, 64], sizes = [32, 32], strides = [1, 1]} : vector<32x96xf32> to vector<32x32xf32>
    %c0_9 = arith.constant 0 : index
    %c0_10 = arith.constant 0 : index
    %11 = vector.load %arg6[%c0_9, %c0_10] : memref<32x32xf32, #tpu.memory_space<vmem>>, vector<32x32xf32>
    tpu.vector_store %arg6[%c0_9, %c0_10], %10 {strides = array<i32>} : memref<32x32xf32, #tpu.memory_space<vmem>>, vector<32x32xf32>,
    return
  }
  func.func @transform_0(%arg0: i32) -> (i32, i32) {
    %c0_i32 = arith.constant 0 : i32
    %c0_i32_0 = arith.constant 0 : i32
    return %arg0, %c0_i32 : i32, i32
  }
  func.func @transform_1(%arg0: i32) -> (i32, i32) {
    %c0_i32 = arith.constant 0 : i32
    %c0_i32_0 = arith.constant 0 : i32
    %c0_i32_1 = arith.constant 0 : i32
    return %c0_i32, %c0_i32_0 : i32, i32
  }
  func.func @transform_2(%arg0: i32) -> (i32, i32) {
    %c0_i32 = arith.constant 0 : i32
    %c0_i32_0 = arith.constant 0 : i32
    %c0_i32_1 = arith.constant 0 : i32
    return %c0_i32, %c0_i32_0 : i32, i32
  }
  func.func @transform_3(%arg0: i32) -> (i32, i32) {
    %c0_i32 = arith.constant 0 : i32
    %c0_i32_0 = arith.constant 0 : i32
    return %arg0, %c0_i32 : i32, i32
  }
  func.func @transform_4(%arg0: i32) -> (i32, i32) {
    %c0_i32 = arith.constant 0 : i32
    %c0_i32_0 = arith.constant 0 : i32
    return %arg0, %c0_i32 : i32, i32
  }
  func.func @transform_5(%arg0: i32) -> (i32, i32) {
    %c0_i32 = arith.constant 0 : i32
    %c0_i32_0 = arith.constant 0 : i32
    return %arg0, %c0_i32 : i32, i32
  }
}

module attributes {stable_mosaic.version = 11 : i64} {
  func.func @_gru_fused_kernel(%arg0: i32, %arg1: i32, %arg2: memref<4x1xi32, #tpu.memory_space<vmem>>, %arg3: memref<8x4x32xf32, #tpu.memory_space<vmem>>, %arg4: memref<8x4x32xf32, #tpu.memory_space<vmem>>, %arg5: memref<8x4x32xf32, #tpu.memory_space<vmem>>, %arg6: memref<3x32x32xf32, #tpu.memory_space<vmem>>, %arg7: memref<3x1x32xf32, #tpu.memory_space<vmem>>, %arg8: memref<32x32xf32, #tpu.memory_space<vmem>>, %arg9: memref<1x32xf32, #tpu.memory_space<vmem>>, %arg10: memref<1x32xf32, #tpu.memory_space<vmem>>, %arg11: memref<1x32xf32, #tpu.memory_space<vmem>>, %arg12: memref<32x16xf32, #tpu.memory_space<vmem>>, %arg13: memref<1x16xf32, #tpu.memory_space<vmem>>, %arg14: memref<8x4x32xf32, #tpu.memory_space<vmem>>, %arg15: memref<4x32xf32, #tpu.memory_space<vmem>>, %arg16: memref<4x16xf32, #tpu.memory_space<vmem>>, %arg17: memref<4x32xf32, #tpu.memory_space<vmem>>) attributes {dimension_semantics = [#tpu.dimension_semantics<parallel>, #tpu.dimension_semantics<arbitrary>], iteration_bounds = array<i64: 1, 1>, scalar_prefetch = 0 : i64, scratch_operands = 1 : i64, tpu.core_type = #tpu.core_type<tc>, window_params = [{transform_indices = @transform_0, window_bounds = array<i64: 4, 1>}, {transform_indices = @transform_1, window_bounds = array<i64: 8, 4, 32>}, {transform_indices = @transform_2, window_bounds = array<i64: 8, 4, 32>}, {transform_indices = @transform_3, window_bounds = array<i64: 8, 4, 32>}, {pipeline_mode = #tpu.pipeline_mode<synchronous>, transform_indices = @transform_4, window_bounds = array<i64: 3, 32, 32>}, {pipeline_mode = #tpu.pipeline_mode<synchronous>, transform_indices = @transform_5, window_bounds = array<i64: 3, 1, 32>}, {pipeline_mode = #tpu.pipeline_mode<synchronous>, transform_indices = @transform_6, window_bounds = array<i64: 32, 32>}, {pipeline_mode = #tpu.pipeline_mode<synchronous>, transform_indices = @transform_7, window_bounds = array<i64: 1, 32>}, {pipeline_mode = #tpu.pipeline_mode<synchronous>, transform_indices = @transform_8, window_bounds = array<i64: 1, 32>}, {pipeline_mode = #tpu.pipeline_mode<synchronous>, transform_indices = @transform_9, window_bounds = array<i64: 1, 32>}, {pipeline_mode = #tpu.pipeline_mode<synchronous>, transform_indices = @transform_10, window_bounds = array<i64: 32, 16>}, {pipeline_mode = #tpu.pipeline_mode<synchronous>, transform_indices = @transform_11, window_bounds = array<i64: 1, 16>}, {transform_indices = @transform_12, window_bounds = array<i64: 8, 4, 32>}, {transform_indices = @transform_13, window_bounds = array<i64: 4, 32>}, {transform_indices = @transform_14, window_bounds = array<i64: 4, 16>}]} {
    %c0_i32 = arith.constant 0 : i32
    %0 = arith.cmpi eq, %arg1, %c0_i32 : i32
    %1 = arith.extui %0 : i1 to i32
    %c0_i32_0 = arith.constant 0 : i32
    %2 = arith.cmpi ne, %1, %c0_i32_0 : i32
    scf.if %2 {
      %cst_312 = arith.constant 0.000000e+00 : f32
      %675 = vector.broadcast %cst_312 : f32 to vector<4x32xf32>
      %c0_313 = arith.constant 0 : index
      %c0_314 = arith.constant 0 : index
      %676 = vector.load %arg17[%c0_313, %c0_314] : memref<4x32xf32, #tpu.memory_space<vmem>>, vector<4x32xf32>
      tpu.vector_store %arg17[%c0_313, %c0_314], %675 {strides = array<i32>} : memref<4x32xf32, #tpu.memory_space<vmem>>, vector<4x32xf32>,
    } else {
    }
    %c0 = arith.constant 0 : index
    %c0_1 = arith.constant 0 : index
    %3 = vector.load %arg2[%c0, %c0_1] : memref<4x1xi32, #tpu.memory_space<vmem>>, vector<4x1xi32>
    %c0_2 = arith.constant 0 : index
    %c0_3 = arith.constant 0 : index
    %c0_4 = arith.constant 0 : index
    %4 = vector.load %arg7[%c0_2, %c0_3, %c0_4] : memref<3x1x32xf32, #tpu.memory_space<vmem>>, vector<1x1x32xf32>
    %5 = vector.shape_cast %4 : vector<1x1x32xf32> to vector<1x32xf32>
    %c1 = arith.constant 1 : index
    %c0_5 = arith.constant 0 : index
    %c0_6 = arith.constant 0 : index
    %6 = vector.load %arg7[%c1, %c0_5, %c0_6] : memref<3x1x32xf32, #tpu.memory_space<vmem>>, vector<1x1x32xf32>
    %7 = vector.shape_cast %6 : vector<1x1x32xf32> to vector<1x32xf32>
    %c2 = arith.constant 2 : index
    %c0_7 = arith.constant 0 : index
    %c0_8 = arith.constant 0 : index
    %8 = vector.load %arg7[%c2, %c0_7, %c0_8] : memref<3x1x32xf32, #tpu.memory_space<vmem>>, vector<1x1x32xf32>
    %9 = vector.shape_cast %8 : vector<1x1x32xf32> to vector<1x32xf32>
    %c0_9 = arith.constant 0 : index
    %c0_10 = arith.constant 0 : index
    %10 = vector.load %arg9[%c0_9, %c0_10] : memref<1x32xf32, #tpu.memory_space<vmem>>, vector<1x32xf32>
    %c0_11 = arith.constant 0 : index
    %c0_12 = arith.constant 0 : index
    %11 = vector.load %arg10[%c0_11, %c0_12] : memref<1x32xf32, #tpu.memory_space<vmem>>, vector<1x32xf32>
    %c0_13 = arith.constant 0 : index
    %c0_14 = arith.constant 0 : index
    %12 = vector.load %arg11[%c0_13, %c0_14] : memref<1x32xf32, #tpu.memory_space<vmem>>, vector<1x32xf32>
    %c0_15 = arith.constant 0 : index
    %c0_16 = arith.constant 0 : index
    %13 = vector.load %arg17[%c0_15, %c0_16] : memref<4x32xf32, #tpu.memory_space<vmem>>, vector<4x32xf32>
    %c8_i32 = arith.constant 8 : i32
    %14 = arith.muli %arg1, %c8_i32 : i32
    %c0_17 = arith.constant 0 : index
    %c0_18 = arith.constant 0 : index
    %c0_19 = arith.constant 0 : index
    %15 = vector.load %arg6[%c0_17, %c0_18, %c0_19] : memref<3x32x32xf32, #tpu.memory_space<vmem>>, vector<1x32x32xf32>
    %16 = vector.shape_cast %15 : vector<1x32x32xf32> to vector<32x32xf32>
    %cst = arith.constant dense<0.000000e+00> : vector<4x32xf32>
    %17 = tpu.matmul %13, %16, %cst {dimension_numbers = #tpu.dot_dimension_numbers<[1], [0], [0], [1], [0, 0, 1, 1], [], []>} : vector<4x32xf32>, vector<32x32xf32>, vector<4x32xf32> -> vector<4x32xf32>
    %18 = vector.broadcast %5 : vector<1x32xf32> to vector<4x32xf32>
    %19 = arith.addf %17, %18 : vector<4x32xf32>
    %c1_20 = arith.constant 1 : index
    %c0_21 = arith.constant 0 : index
    %c0_22 = arith.constant 0 : index
    %20 = vector.load %arg6[%c1_20, %c0_21, %c0_22] : memref<3x32x32xf32, #tpu.memory_space<vmem>>, vector<1x32x32xf32>
    %21 = vector.shape_cast %20 : vector<1x32x32xf32> to vector<32x32xf32>
    %cst_23 = arith.constant dense<0.000000e+00> : vector<4x32xf32>
    %22 = tpu.matmul %13, %21, %cst_23 {dimension_numbers = #tpu.dot_dimension_numbers<[1], [0], [0], [1], [0, 0, 1, 1], [], []>} : vector<4x32xf32>, vector<32x32xf32>, vector<4x32xf32> -> vector<4x32xf32>
    %23 = vector.broadcast %7 : vector<1x32xf32> to vector<4x32xf32>
    %24 = arith.addf %22, %23 : vector<4x32xf32>
    %c2_24 = arith.constant 2 : index
    %c0_25 = arith.constant 0 : index
    %c0_26 = arith.constant 0 : index
    %25 = vector.load %arg6[%c2_24, %c0_25, %c0_26] : memref<3x32x32xf32, #tpu.memory_space<vmem>>, vector<1x32x32xf32>
    %26 = vector.shape_cast %25 : vector<1x32x32xf32> to vector<32x32xf32>
    %cst_27 = arith.constant dense<0.000000e+00> : vector<4x32xf32>
    %27 = tpu.matmul %13, %26, %cst_27 {dimension_numbers = #tpu.dot_dimension_numbers<[1], [0], [0], [1], [0, 0, 1, 1], [], []>} : vector<4x32xf32>, vector<32x32xf32>, vector<4x32xf32> -> vector<4x32xf32>
    %28 = vector.broadcast %9 : vector<1x32xf32> to vector<4x32xf32>
    %29 = arith.addf %27, %28 : vector<4x32xf32>
    %c0_28 = arith.constant 0 : index
    %c0_29 = arith.constant 0 : index
    %c0_30 = arith.constant 0 : index
    %30 = vector.load %arg3[%c0_28, %c0_29, %c0_30] : memref<8x4x32xf32, #tpu.memory_space<vmem>>, vector<1x4x32xf32>
    %31 = vector.shape_cast %30 : vector<1x4x32xf32> to vector<4x32xf32>
    %32 = arith.addf %31, %19 : vector<4x32xf32>
    %33 = arith.negf %32 : vector<4x32xf32>
    %34 = math.exp %33 : vector<4x32xf32>
    %cst_31 = arith.constant 1.000000e+00 : f32
    %35 = vector.broadcast %cst_31 : f32 to vector<4x32xf32>
    %36 = arith.addf %35, %34 : vector<4x32xf32>
    %37 = arith.divf %35, %36 : vector<4x32xf32>
    %c0_32 = arith.constant 0 : index
    %c0_33 = arith.constant 0 : index
    %c0_34 = arith.constant 0 : index
    %38 = vector.load %arg4[%c0_32, %c0_33, %c0_34] : memref<8x4x32xf32, #tpu.memory_space<vmem>>, vector<1x4x32xf32>
    %39 = vector.shape_cast %38 : vector<1x4x32xf32> to vector<4x32xf32>
    %40 = arith.addf %39, %24 : vector<4x32xf32>
    %41 = arith.negf %40 : vector<4x32xf32>
    %42 = math.exp %41 : vector<4x32xf32>
    %cst_35 = arith.constant 1.000000e+00 : f32
    %43 = vector.broadcast %cst_35 : f32 to vector<4x32xf32>
    %44 = arith.addf %43, %42 : vector<4x32xf32>
    %45 = arith.divf %43, %44 : vector<4x32xf32>
    %c0_36 = arith.constant 0 : index
    %c0_37 = arith.constant 0 : index
    %c0_38 = arith.constant 0 : index
    %46 = vector.load %arg5[%c0_36, %c0_37, %c0_38] : memref<8x4x32xf32, #tpu.memory_space<vmem>>, vector<1x4x32xf32>
    %47 = vector.shape_cast %46 : vector<1x4x32xf32> to vector<4x32xf32>
    %48 = arith.mulf %37, %29 : vector<4x32xf32>
    %49 = arith.addf %47, %48 : vector<4x32xf32>
    %50 = math.tanh %49 : vector<4x32xf32>
    %cst_39 = arith.constant 1.000000e+00 : f32
    %51 = vector.broadcast %cst_39 : f32 to vector<4x32xf32>
    %52 = arith.subf %51, %45 : vector<4x32xf32>
    %53 = arith.mulf %52, %50 : vector<4x32xf32>
    %54 = arith.mulf %45, %13 : vector<4x32xf32>
    %55 = arith.addf %53, %54 : vector<4x32xf32>
    %c0_i32_40 = arith.constant 0 : i32
    %56 = arith.addi %14, %c0_i32_40 : i32
    %57 = vector.broadcast %56 : i32 to vector<4x1xi32>
    %58 = arith.cmpi slt, %57, %3 : vector<4x1xi32>
    %59 = vector.shape_cast %58 : vector<4x1xi1> to vector<4x1xi1>
    %60 = vector.broadcast %59 : vector<4x1xi1> to vector<4x32xi1>
    %61 = arith.select %60, %55, %13 : vector<4x32xi1>, vector<4x32xf32>
    %cst_41 = arith.constant 0.000000e+00 : f32
    %62 = vector.shape_cast %58 : vector<4x1xi1> to vector<4x1xi1>
    %63 = vector.broadcast %62 : vector<4x1xi1> to vector<4x32xi1>
    %64 = vector.broadcast %cst_41 : f32 to vector<4x32xf32>
    %65 = arith.select %63, %55, %64 : vector<4x32xi1>, vector<4x32xf32>
    %c0_42 = arith.constant 0 : index
    %c0_43 = arith.constant 0 : index
    %66 = vector.load %arg8[%c0_42, %c0_43] : memref<32x32xf32, #tpu.memory_space<vmem>>, vector<32x32xf32>
    %cst_44 = arith.constant dense<0.000000e+00> : vector<4x32xf32>
    %67 = tpu.matmul %65, %66, %cst_44 {dimension_numbers = #tpu.dot_dimension_numbers<[1], [0], [0], [1], [0, 0, 1, 1], [], []>} : vector<4x32xf32>, vector<32x32xf32>, vector<4x32xf32> -> vector<4x32xf32>
    %68 = vector.broadcast %10 : vector<1x32xf32> to vector<4x32xf32>
    %69 = arith.addf %67, %68 : vector<4x32xf32>
    %cst_45 = arith.constant 0.000000e+00 : f32
    %70 = vector.broadcast %cst_45 : f32 to vector<4x32xf32>
    %71 = arith.maximumf %69, %70 : vector<4x32xf32>
    %cst_46 = arith.constant dense<0.000000e+00> : vector<4xf32>
    %72 = vector.multi_reduction <add>, %71, %cst_46 [1] : vector<4x32xf32> to vector<4xf32>
    %73 = vector.shape_cast %72 : vector<4xf32> to vector<4x1xf32>
    %cst_47 = arith.constant 3.200000e+01 : f32
    %74 = vector.broadcast %cst_47 : f32 to vector<4x1xf32>
    %75 = arith.divf %73, %74 : vector<4x1xf32>
    %76 = vector.broadcast %75 : vector<4x1xf32> to vector<4x32xf32>
    %77 = arith.subf %71, %76 : vector<4x32xf32>
    %78 = arith.mulf %77, %77 : vector<4x32xf32>
    %cst_48 = arith.constant dense<0.000000e+00> : vector<4xf32>
    %79 = vector.multi_reduction <add>, %78, %cst_48 [1] : vector<4x32xf32> to vector<4xf32>
    %80 = vector.shape_cast %79 : vector<4xf32> to vector<4x1xf32>
    %cst_49 = arith.constant 3.200000e+01 : f32
    %81 = vector.broadcast %cst_49 : f32 to vector<4x1xf32>
    %82 = arith.divf %80, %81 : vector<4x1xf32>
    %83 = vector.broadcast %75 : vector<4x1xf32> to vector<4x32xf32>
    %84 = arith.subf %71, %83 : vector<4x32xf32>
    %cst_50 = arith.constant 9.99999974E-6 : f32
    %85 = vector.broadcast %cst_50 : f32 to vector<4x1xf32>
    %86 = arith.addf %82, %85 : vector<4x1xf32>
    %87 = math.rsqrt %86 : vector<4x1xf32>
    %88 = vector.broadcast %87 : vector<4x1xf32> to vector<4x32xf32>
    %89 = arith.mulf %84, %88 : vector<4x32xf32>
    %90 = vector.broadcast %11 : vector<1x32xf32> to vector<4x32xf32>
    %91 = arith.mulf %89, %90 : vector<4x32xf32>
    %92 = vector.broadcast %12 : vector<1x32xf32> to vector<4x32xf32>
    %93 = arith.addf %91, %92 : vector<4x32xf32>
    %c0_51 = arith.constant 0 : index
    %c0_52 = arith.constant 0 : index
    %c0_53 = arith.constant 0 : index
    %94 = vector.load %arg14[%c0_51, %c0_52, %c0_53] : memref<8x4x32xf32, #tpu.memory_space<vmem>>, vector<1x4x32xf32>
    %95 = vector.shape_cast %94 : vector<1x4x32xf32> to vector<4x32xf32>
    %96 = vector.shape_cast %93 : vector<4x32xf32> to vector<1x4x32xf32>
    tpu.vector_store %arg14[%c0_51, %c0_52, %c0_53], %96 {strides = array<i32>} : memref<8x4x32xf32, #tpu.memory_space<vmem>>, vector<1x4x32xf32>,
    %c0_54 = arith.constant 0 : index
    %c0_55 = arith.constant 0 : index
    %c0_56 = arith.constant 0 : index
    %97 = vector.load %arg6[%c0_54, %c0_55, %c0_56] : memref<3x32x32xf32, #tpu.memory_space<vmem>>, vector<1x32x32xf32>
    %98 = vector.shape_cast %97 : vector<1x32x32xf32> to vector<32x32xf32>
    %cst_57 = arith.constant dense<0.000000e+00> : vector<4x32xf32>
    %99 = tpu.matmul %61, %98, %cst_57 {dimension_numbers = #tpu.dot_dimension_numbers<[1], [0], [0], [1], [0, 0, 1, 1], [], []>} : vector<4x32xf32>, vector<32x32xf32>, vector<4x32xf32> -> vector<4x32xf32>
    %100 = vector.broadcast %5 : vector<1x32xf32> to vector<4x32xf32>
    %101 = arith.addf %99, %100 : vector<4x32xf32>
    %c1_58 = arith.constant 1 : index
    %c0_59 = arith.constant 0 : index
    %c0_60 = arith.constant 0 : index
    %102 = vector.load %arg6[%c1_58, %c0_59, %c0_60] : memref<3x32x32xf32, #tpu.memory_space<vmem>>, vector<1x32x32xf32>
    %103 = vector.shape_cast %102 : vector<1x32x32xf32> to vector<32x32xf32>
    %cst_61 = arith.constant dense<0.000000e+00> : vector<4x32xf32>
    %104 = tpu.matmul %61, %103, %cst_61 {dimension_numbers = #tpu.dot_dimension_numbers<[1], [0], [0], [1], [0, 0, 1, 1], [], []>} : vector<4x32xf32>, vector<32x32xf32>, vector<4x32xf32> -> vector<4x32xf32>
    %105 = vector.broadcast %7 : vector<1x32xf32> to vector<4x32xf32>
    %106 = arith.addf %104, %105 : vector<4x32xf32>
    %c2_62 = arith.constant 2 : index
    %c0_63 = arith.constant 0 : index
    %c0_64 = arith.constant 0 : index
    %107 = vector.load %arg6[%c2_62, %c0_63, %c0_64] : memref<3x32x32xf32, #tpu.memory_space<vmem>>, vector<1x32x32xf32>
    %108 = vector.shape_cast %107 : vector<1x32x32xf32> to vector<32x32xf32>
    %cst_65 = arith.constant dense<0.000000e+00> : vector<4x32xf32>
    %109 = tpu.matmul %61, %108, %cst_65 {dimension_numbers = #tpu.dot_dimension_numbers<[1], [0], [0], [1], [0, 0, 1, 1], [], []>} : vector<4x32xf32>, vector<32x32xf32>, vector<4x32xf32> -> vector<4x32xf32>
    %110 = vector.broadcast %9 : vector<1x32xf32> to vector<4x32xf32>
    %111 = arith.addf %109, %110 : vector<4x32xf32>
    %c1_66 = arith.constant 1 : index
    %c0_67 = arith.constant 0 : index
    %c0_68 = arith.constant 0 : index
    %112 = vector.load %arg3[%c1_66, %c0_67, %c0_68] : memref<8x4x32xf32, #tpu.memory_space<vmem>>, vector<1x4x32xf32>
    %113 = vector.shape_cast %112 : vector<1x4x32xf32> to vector<4x32xf32>
    %114 = arith.addf %113, %101 : vector<4x32xf32>
    %115 = arith.negf %114 : vector<4x32xf32>
    %116 = math.exp %115 : vector<4x32xf32>
    %cst_69 = arith.constant 1.000000e+00 : f32
    %117 = vector.broadcast %cst_69 : f32 to vector<4x32xf32>
    %118 = arith.addf %117, %116 : vector<4x32xf32>
    %119 = arith.divf %117, %118 : vector<4x32xf32>
    %c1_70 = arith.constant 1 : index
    %c0_71 = arith.constant 0 : index
    %c0_72 = arith.constant 0 : index
    %120 = vector.load %arg4[%c1_70, %c0_71, %c0_72] : memref<8x4x32xf32, #tpu.memory_space<vmem>>, vector<1x4x32xf32>
    %121 = vector.shape_cast %120 : vector<1x4x32xf32> to vector<4x32xf32>
    %122 = arith.addf %121, %106 : vector<4x32xf32>
    %123 = arith.negf %122 : vector<4x32xf32>
    %124 = math.exp %123 : vector<4x32xf32>
    %cst_73 = arith.constant 1.000000e+00 : f32
    %125 = vector.broadcast %cst_73 : f32 to vector<4x32xf32>
    %126 = arith.addf %125, %124 : vector<4x32xf32>
    %127 = arith.divf %125, %126 : vector<4x32xf32>
    %c1_74 = arith.constant 1 : index
    %c0_75 = arith.constant 0 : index
    %c0_76 = arith.constant 0 : index
    %128 = vector.load %arg5[%c1_74, %c0_75, %c0_76] : memref<8x4x32xf32, #tpu.memory_space<vmem>>, vector<1x4x32xf32>
    %129 = vector.shape_cast %128 : vector<1x4x32xf32> to vector<4x32xf32>
    %130 = arith.mulf %119, %111 : vector<4x32xf32>
    %131 = arith.addf %129, %130 : vector<4x32xf32>
    %132 = math.tanh %131 : vector<4x32xf32>
    %cst_77 = arith.constant 1.000000e+00 : f32
    %133 = vector.broadcast %cst_77 : f32 to vector<4x32xf32>
    %134 = arith.subf %133, %127 : vector<4x32xf32>
    %135 = arith.mulf %134, %132 : vector<4x32xf32>
    %136 = arith.mulf %127, %61 : vector<4x32xf32>
    %137 = arith.addf %135, %136 : vector<4x32xf32>
    %c1_i32 = arith.constant 1 : i32
    %138 = arith.addi %14, %c1_i32 : i32
    %139 = vector.broadcast %138 : i32 to vector<4x1xi32>
    %140 = arith.cmpi slt, %139, %3 : vector<4x1xi32>
    %141 = vector.shape_cast %140 : vector<4x1xi1> to vector<4x1xi1>
    %142 = vector.broadcast %141 : vector<4x1xi1> to vector<4x32xi1>
    %143 = arith.select %142, %137, %61 : vector<4x32xi1>, vector<4x32xf32>
    %cst_78 = arith.constant 0.000000e+00 : f32
    %144 = vector.shape_cast %140 : vector<4x1xi1> to vector<4x1xi1>
    %145 = vector.broadcast %144 : vector<4x1xi1> to vector<4x32xi1>
    %146 = vector.broadcast %cst_78 : f32 to vector<4x32xf32>
    %147 = arith.select %145, %137, %146 : vector<4x32xi1>, vector<4x32xf32>
    %c0_79 = arith.constant 0 : index
    %c0_80 = arith.constant 0 : index
    %148 = vector.load %arg8[%c0_79, %c0_80] : memref<32x32xf32, #tpu.memory_space<vmem>>, vector<32x32xf32>
    %cst_81 = arith.constant dense<0.000000e+00> : vector<4x32xf32>
    %149 = tpu.matmul %147, %148, %cst_81 {dimension_numbers = #tpu.dot_dimension_numbers<[1], [0], [0], [1], [0, 0, 1, 1], [], []>} : vector<4x32xf32>, vector<32x32xf32>, vector<4x32xf32> -> vector<4x32xf32>
    %150 = vector.broadcast %10 : vector<1x32xf32> to vector<4x32xf32>
    %151 = arith.addf %149, %150 : vector<4x32xf32>
    %cst_82 = arith.constant 0.000000e+00 : f32
    %152 = vector.broadcast %cst_82 : f32 to vector<4x32xf32>
    %153 = arith.maximumf %151, %152 : vector<4x32xf32>
    %cst_83 = arith.constant dense<0.000000e+00> : vector<4xf32>
    %154 = vector.multi_reduction <add>, %153, %cst_83 [1] : vector<4x32xf32> to vector<4xf32>
    %155 = vector.shape_cast %154 : vector<4xf32> to vector<4x1xf32>
    %cst_84 = arith.constant 3.200000e+01 : f32
    %156 = vector.broadcast %cst_84 : f32 to vector<4x1xf32>
    %157 = arith.divf %155, %156 : vector<4x1xf32>
    %158 = vector.broadcast %157 : vector<4x1xf32> to vector<4x32xf32>
    %159 = arith.subf %153, %158 : vector<4x32xf32>
    %160 = arith.mulf %159, %159 : vector<4x32xf32>
    %cst_85 = arith.constant dense<0.000000e+00> : vector<4xf32>
    %161 = vector.multi_reduction <add>, %160, %cst_85 [1] : vector<4x32xf32> to vector<4xf32>
    %162 = vector.shape_cast %161 : vector<4xf32> to vector<4x1xf32>
    %cst_86 = arith.constant 3.200000e+01 : f32
    %163 = vector.broadcast %cst_86 : f32 to vector<4x1xf32>
    %164 = arith.divf %162, %163 : vector<4x1xf32>
    %165 = vector.broadcast %157 : vector<4x1xf32> to vector<4x32xf32>
    %166 = arith.subf %153, %165 : vector<4x32xf32>
    %cst_87 = arith.constant 9.99999974E-6 : f32
    %167 = vector.broadcast %cst_87 : f32 to vector<4x1xf32>
    %168 = arith.addf %164, %167 : vector<4x1xf32>
    %169 = math.rsqrt %168 : vector<4x1xf32>
    %170 = vector.broadcast %169 : vector<4x1xf32> to vector<4x32xf32>
    %171 = arith.mulf %166, %170 : vector<4x32xf32>
    %172 = vector.broadcast %11 : vector<1x32xf32> to vector<4x32xf32>
    %173 = arith.mulf %171, %172 : vector<4x32xf32>
    %174 = vector.broadcast %12 : vector<1x32xf32> to vector<4x32xf32>
    %175 = arith.addf %173, %174 : vector<4x32xf32>
    %c1_88 = arith.constant 1 : index
    %c0_89 = arith.constant 0 : index
    %c0_90 = arith.constant 0 : index
    %176 = vector.load %arg14[%c1_88, %c0_89, %c0_90] : memref<8x4x32xf32, #tpu.memory_space<vmem>>, vector<1x4x32xf32>
    %177 = vector.shape_cast %176 : vector<1x4x32xf32> to vector<4x32xf32>
    %178 = vector.shape_cast %175 : vector<4x32xf32> to vector<1x4x32xf32>
    tpu.vector_store %arg14[%c1_88, %c0_89, %c0_90], %178 {strides = array<i32>} : memref<8x4x32xf32, #tpu.memory_space<vmem>>, vector<1x4x32xf32>,
    %c0_91 = arith.constant 0 : index
    %c0_92 = arith.constant 0 : index
    %c0_93 = arith.constant 0 : index
    %179 = vector.load %arg6[%c0_91, %c0_92, %c0_93] : memref<3x32x32xf32, #tpu.memory_space<vmem>>, vector<1x32x32xf32>
    %180 = vector.shape_cast %179 : vector<1x32x32xf32> to vector<32x32xf32>
    %cst_94 = arith.constant dense<0.000000e+00> : vector<4x32xf32>
    %181 = tpu.matmul %143, %180, %cst_94 {dimension_numbers = #tpu.dot_dimension_numbers<[1], [0], [0], [1], [0, 0, 1, 1], [], []>} : vector<4x32xf32>, vector<32x32xf32>, vector<4x32xf32> -> vector<4x32xf32>
    %182 = vector.broadcast %5 : vector<1x32xf32> to vector<4x32xf32>
    %183 = arith.addf %181, %182 : vector<4x32xf32>
    %c1_95 = arith.constant 1 : index
    %c0_96 = arith.constant 0 : index
    %c0_97 = arith.constant 0 : index
    %184 = vector.load %arg6[%c1_95, %c0_96, %c0_97] : memref<3x32x32xf32, #tpu.memory_space<vmem>>, vector<1x32x32xf32>
    %185 = vector.shape_cast %184 : vector<1x32x32xf32> to vector<32x32xf32>
    %cst_98 = arith.constant dense<0.000000e+00> : vector<4x32xf32>
    %186 = tpu.matmul %143, %185, %cst_98 {dimension_numbers = #tpu.dot_dimension_numbers<[1], [0], [0], [1], [0, 0, 1, 1], [], []>} : vector<4x32xf32>, vector<32x32xf32>, vector<4x32xf32> -> vector<4x32xf32>
    %187 = vector.broadcast %7 : vector<1x32xf32> to vector<4x32xf32>
    %188 = arith.addf %186, %187 : vector<4x32xf32>
    %c2_99 = arith.constant 2 : index
    %c0_100 = arith.constant 0 : index
    %c0_101 = arith.constant 0 : index
    %189 = vector.load %arg6[%c2_99, %c0_100, %c0_101] : memref<3x32x32xf32, #tpu.memory_space<vmem>>, vector<1x32x32xf32>
    %190 = vector.shape_cast %189 : vector<1x32x32xf32> to vector<32x32xf32>
    %cst_102 = arith.constant dense<0.000000e+00> : vector<4x32xf32>
    %191 = tpu.matmul %143, %190, %cst_102 {dimension_numbers = #tpu.dot_dimension_numbers<[1], [0], [0], [1], [0, 0, 1, 1], [], []>} : vector<4x32xf32>, vector<32x32xf32>, vector<4x32xf32> -> vector<4x32xf32>
    %192 = vector.broadcast %9 : vector<1x32xf32> to vector<4x32xf32>
    %193 = arith.addf %191, %192 : vector<4x32xf32>
    %c2_103 = arith.constant 2 : index
    %c0_104 = arith.constant 0 : index
    %c0_105 = arith.constant 0 : index
    %194 = vector.load %arg3[%c2_103, %c0_104, %c0_105] : memref<8x4x32xf32, #tpu.memory_space<vmem>>, vector<1x4x32xf32>
    %195 = vector.shape_cast %194 : vector<1x4x32xf32> to vector<4x32xf32>
    %196 = arith.addf %195, %183 : vector<4x32xf32>
    %197 = arith.negf %196 : vector<4x32xf32>
    %198 = math.exp %197 : vector<4x32xf32>
    %cst_106 = arith.constant 1.000000e+00 : f32
    %199 = vector.broadcast %cst_106 : f32 to vector<4x32xf32>
    %200 = arith.addf %199, %198 : vector<4x32xf32>
    %201 = arith.divf %199, %200 : vector<4x32xf32>
    %c2_107 = arith.constant 2 : index
    %c0_108 = arith.constant 0 : index
    %c0_109 = arith.constant 0 : index
    %202 = vector.load %arg4[%c2_107, %c0_108, %c0_109] : memref<8x4x32xf32, #tpu.memory_space<vmem>>, vector<1x4x32xf32>
    %203 = vector.shape_cast %202 : vector<1x4x32xf32> to vector<4x32xf32>
    %204 = arith.addf %203, %188 : vector<4x32xf32>
    %205 = arith.negf %204 : vector<4x32xf32>
    %206 = math.exp %205 : vector<4x32xf32>
    %cst_110 = arith.constant 1.000000e+00 : f32
    %207 = vector.broadcast %cst_110 : f32 to vector<4x32xf32>
    %208 = arith.addf %207, %206 : vector<4x32xf32>
    %209 = arith.divf %207, %208 : vector<4x32xf32>
    %c2_111 = arith.constant 2 : index
    %c0_112 = arith.constant 0 : index
    %c0_113 = arith.constant 0 : index
    %210 = vector.load %arg5[%c2_111, %c0_112, %c0_113] : memref<8x4x32xf32, #tpu.memory_space<vmem>>, vector<1x4x32xf32>
    %211 = vector.shape_cast %210 : vector<1x4x32xf32> to vector<4x32xf32>
    %212 = arith.mulf %201, %193 : vector<4x32xf32>
    %213 = arith.addf %211, %212 : vector<4x32xf32>
    %214 = math.tanh %213 : vector<4x32xf32>
    %cst_114 = arith.constant 1.000000e+00 : f32
    %215 = vector.broadcast %cst_114 : f32 to vector<4x32xf32>
    %216 = arith.subf %215, %209 : vector<4x32xf32>
    %217 = arith.mulf %216, %214 : vector<4x32xf32>
    %218 = arith.mulf %209, %143 : vector<4x32xf32>
    %219 = arith.addf %217, %218 : vector<4x32xf32>
    %c2_i32 = arith.constant 2 : i32
    %220 = arith.addi %14, %c2_i32 : i32
    %221 = vector.broadcast %220 : i32 to vector<4x1xi32>
    %222 = arith.cmpi slt, %221, %3 : vector<4x1xi32>
    %223 = vector.shape_cast %222 : vector<4x1xi1> to vector<4x1xi1>
    %224 = vector.broadcast %223 : vector<4x1xi1> to vector<4x32xi1>
    %225 = arith.select %224, %219, %143 : vector<4x32xi1>, vector<4x32xf32>
    %cst_115 = arith.constant 0.000000e+00 : f32
    %226 = vector.shape_cast %222 : vector<4x1xi1> to vector<4x1xi1>
    %227 = vector.broadcast %226 : vector<4x1xi1> to vector<4x32xi1>
    %228 = vector.broadcast %cst_115 : f32 to vector<4x32xf32>
    %229 = arith.select %227, %219, %228 : vector<4x32xi1>, vector<4x32xf32>
    %c0_116 = arith.constant 0 : index
    %c0_117 = arith.constant 0 : index
    %230 = vector.load %arg8[%c0_116, %c0_117] : memref<32x32xf32, #tpu.memory_space<vmem>>, vector<32x32xf32>
    %cst_118 = arith.constant dense<0.000000e+00> : vector<4x32xf32>
    %231 = tpu.matmul %229, %230, %cst_118 {dimension_numbers = #tpu.dot_dimension_numbers<[1], [0], [0], [1], [0, 0, 1, 1], [], []>} : vector<4x32xf32>, vector<32x32xf32>, vector<4x32xf32> -> vector<4x32xf32>
    %232 = vector.broadcast %10 : vector<1x32xf32> to vector<4x32xf32>
    %233 = arith.addf %231, %232 : vector<4x32xf32>
    %cst_119 = arith.constant 0.000000e+00 : f32
    %234 = vector.broadcast %cst_119 : f32 to vector<4x32xf32>
    %235 = arith.maximumf %233, %234 : vector<4x32xf32>
    %cst_120 = arith.constant dense<0.000000e+00> : vector<4xf32>
    %236 = vector.multi_reduction <add>, %235, %cst_120 [1] : vector<4x32xf32> to vector<4xf32>
    %237 = vector.shape_cast %236 : vector<4xf32> to vector<4x1xf32>
    %cst_121 = arith.constant 3.200000e+01 : f32
    %238 = vector.broadcast %cst_121 : f32 to vector<4x1xf32>
    %239 = arith.divf %237, %238 : vector<4x1xf32>
    %240 = vector.broadcast %239 : vector<4x1xf32> to vector<4x32xf32>
    %241 = arith.subf %235, %240 : vector<4x32xf32>
    %242 = arith.mulf %241, %241 : vector<4x32xf32>
    %cst_122 = arith.constant dense<0.000000e+00> : vector<4xf32>
    %243 = vector.multi_reduction <add>, %242, %cst_122 [1] : vector<4x32xf32> to vector<4xf32>
    %244 = vector.shape_cast %243 : vector<4xf32> to vector<4x1xf32>
    %cst_123 = arith.constant 3.200000e+01 : f32
    %245 = vector.broadcast %cst_123 : f32 to vector<4x1xf32>
    %246 = arith.divf %244, %245 : vector<4x1xf32>
    %247 = vector.broadcast %239 : vector<4x1xf32> to vector<4x32xf32>
    %248 = arith.subf %235, %247 : vector<4x32xf32>
    %cst_124 = arith.constant 9.99999974E-6 : f32
    %249 = vector.broadcast %cst_124 : f32 to vector<4x1xf32>
    %250 = arith.addf %246, %249 : vector<4x1xf32>
    %251 = math.rsqrt %250 : vector<4x1xf32>
    %252 = vector.broadcast %251 : vector<4x1xf32> to vector<4x32xf32>
    %253 = arith.mulf %248, %252 : vector<4x32xf32>
    %254 = vector.broadcast %11 : vector<1x32xf32> to vector<4x32xf32>
    %255 = arith.mulf %253, %254 : vector<4x32xf32>
    %256 = vector.broadcast %12 : vector<1x32xf32> to vector<4x32xf32>
    %257 = arith.addf %255, %256 : vector<4x32xf32>
    %c2_125 = arith.constant 2 : index
    %c0_126 = arith.constant 0 : index
    %c0_127 = arith.constant 0 : index
    %258 = vector.load %arg14[%c2_125, %c0_126, %c0_127] : memref<8x4x32xf32, #tpu.memory_space<vmem>>, vector<1x4x32xf32>
    %259 = vector.shape_cast %258 : vector<1x4x32xf32> to vector<4x32xf32>
    %260 = vector.shape_cast %257 : vector<4x32xf32> to vector<1x4x32xf32>
    tpu.vector_store %arg14[%c2_125, %c0_126, %c0_127], %260 {strides = array<i32>} : memref<8x4x32xf32, #tpu.memory_space<vmem>>, vector<1x4x32xf32>,
    %c0_128 = arith.constant 0 : index
    %c0_129 = arith.constant 0 : index
    %c0_130 = arith.constant 0 : index
    %261 = vector.load %arg6[%c0_128, %c0_129, %c0_130] : memref<3x32x32xf32, #tpu.memory_space<vmem>>, vector<1x32x32xf32>
    %262 = vector.shape_cast %261 : vector<1x32x32xf32> to vector<32x32xf32>
    %cst_131 = arith.constant dense<0.000000e+00> : vector<4x32xf32>
    %263 = tpu.matmul %225, %262, %cst_131 {dimension_numbers = #tpu.dot_dimension_numbers<[1], [0], [0], [1], [0, 0, 1, 1], [], []>} : vector<4x32xf32>, vector<32x32xf32>, vector<4x32xf32> -> vector<4x32xf32>
    %264 = vector.broadcast %5 : vector<1x32xf32> to vector<4x32xf32>
    %265 = arith.addf %263, %264 : vector<4x32xf32>
    %c1_132 = arith.constant 1 : index
    %c0_133 = arith.constant 0 : index
    %c0_134 = arith.constant 0 : index
    %266 = vector.load %arg6[%c1_132, %c0_133, %c0_134] : memref<3x32x32xf32, #tpu.memory_space<vmem>>, vector<1x32x32xf32>
    %267 = vector.shape_cast %266 : vector<1x32x32xf32> to vector<32x32xf32>
    %cst_135 = arith.constant dense<0.000000e+00> : vector<4x32xf32>
    %268 = tpu.matmul %225, %267, %cst_135 {dimension_numbers = #tpu.dot_dimension_numbers<[1], [0], [0], [1], [0, 0, 1, 1], [], []>} : vector<4x32xf32>, vector<32x32xf32>, vector<4x32xf32> -> vector<4x32xf32>
    %269 = vector.broadcast %7 : vector<1x32xf32> to vector<4x32xf32>
    %270 = arith.addf %268, %269 : vector<4x32xf32>
    %c2_136 = arith.constant 2 : index
    %c0_137 = arith.constant 0 : index
    %c0_138 = arith.constant 0 : index
    %271 = vector.load %arg6[%c2_136, %c0_137, %c0_138] : memref<3x32x32xf32, #tpu.memory_space<vmem>>, vector<1x32x32xf32>
    %272 = vector.shape_cast %271 : vector<1x32x32xf32> to vector<32x32xf32>
    %cst_139 = arith.constant dense<0.000000e+00> : vector<4x32xf32>
    %273 = tpu.matmul %225, %272, %cst_139 {dimension_numbers = #tpu.dot_dimension_numbers<[1], [0], [0], [1], [0, 0, 1, 1], [], []>} : vector<4x32xf32>, vector<32x32xf32>, vector<4x32xf32> -> vector<4x32xf32>
    %274 = vector.broadcast %9 : vector<1x32xf32> to vector<4x32xf32>
    %275 = arith.addf %273, %274 : vector<4x32xf32>
    %c3 = arith.constant 3 : index
    %c0_140 = arith.constant 0 : index
    %c0_141 = arith.constant 0 : index
    %276 = vector.load %arg3[%c3, %c0_140, %c0_141] : memref<8x4x32xf32, #tpu.memory_space<vmem>>, vector<1x4x32xf32>
    %277 = vector.shape_cast %276 : vector<1x4x32xf32> to vector<4x32xf32>
    %278 = arith.addf %277, %265 : vector<4x32xf32>
    %279 = arith.negf %278 : vector<4x32xf32>
    %280 = math.exp %279 : vector<4x32xf32>
    %cst_142 = arith.constant 1.000000e+00 : f32
    %281 = vector.broadcast %cst_142 : f32 to vector<4x32xf32>
    %282 = arith.addf %281, %280 : vector<4x32xf32>
    %283 = arith.divf %281, %282 : vector<4x32xf32>
    %c3_143 = arith.constant 3 : index
    %c0_144 = arith.constant 0 : index
    %c0_145 = arith.constant 0 : index
    %284 = vector.load %arg4[%c3_143, %c0_144, %c0_145] : memref<8x4x32xf32, #tpu.memory_space<vmem>>, vector<1x4x32xf32>
    %285 = vector.shape_cast %284 : vector<1x4x32xf32> to vector<4x32xf32>
    %286 = arith.addf %285, %270 : vector<4x32xf32>
    %287 = arith.negf %286 : vector<4x32xf32>
    %288 = math.exp %287 : vector<4x32xf32>
    %cst_146 = arith.constant 1.000000e+00 : f32
    %289 = vector.broadcast %cst_146 : f32 to vector<4x32xf32>
    %290 = arith.addf %289, %288 : vector<4x32xf32>
    %291 = arith.divf %289, %290 : vector<4x32xf32>
    %c3_147 = arith.constant 3 : index
    %c0_148 = arith.constant 0 : index
    %c0_149 = arith.constant 0 : index
    %292 = vector.load %arg5[%c3_147, %c0_148, %c0_149] : memref<8x4x32xf32, #tpu.memory_space<vmem>>, vector<1x4x32xf32>
    %293 = vector.shape_cast %292 : vector<1x4x32xf32> to vector<4x32xf32>
    %294 = arith.mulf %283, %275 : vector<4x32xf32>
    %295 = arith.addf %293, %294 : vector<4x32xf32>
    %296 = math.tanh %295 : vector<4x32xf32>
    %cst_150 = arith.constant 1.000000e+00 : f32
    %297 = vector.broadcast %cst_150 : f32 to vector<4x32xf32>
    %298 = arith.subf %297, %291 : vector<4x32xf32>
    %299 = arith.mulf %298, %296 : vector<4x32xf32>
    %300 = arith.mulf %291, %225 : vector<4x32xf32>
    %301 = arith.addf %299, %300 : vector<4x32xf32>
    %c3_i32 = arith.constant 3 : i32
    %302 = arith.addi %14, %c3_i32 : i32
    %303 = vector.broadcast %302 : i32 to vector<4x1xi32>
    %304 = arith.cmpi slt, %303, %3 : vector<4x1xi32>
    %305 = vector.shape_cast %304 : vector<4x1xi1> to vector<4x1xi1>
    %306 = vector.broadcast %305 : vector<4x1xi1> to vector<4x32xi1>
    %307 = arith.select %306, %301, %225 : vector<4x32xi1>, vector<4x32xf32>
    %cst_151 = arith.constant 0.000000e+00 : f32
    %308 = vector.shape_cast %304 : vector<4x1xi1> to vector<4x1xi1>
    %309 = vector.broadcast %308 : vector<4x1xi1> to vector<4x32xi1>
    %310 = vector.broadcast %cst_151 : f32 to vector<4x32xf32>
    %311 = arith.select %309, %301, %310 : vector<4x32xi1>, vector<4x32xf32>
    %c0_152 = arith.constant 0 : index
    %c0_153 = arith.constant 0 : index
    %312 = vector.load %arg8[%c0_152, %c0_153] : memref<32x32xf32, #tpu.memory_space<vmem>>, vector<32x32xf32>
    %cst_154 = arith.constant dense<0.000000e+00> : vector<4x32xf32>
    %313 = tpu.matmul %311, %312, %cst_154 {dimension_numbers = #tpu.dot_dimension_numbers<[1], [0], [0], [1], [0, 0, 1, 1], [], []>} : vector<4x32xf32>, vector<32x32xf32>, vector<4x32xf32> -> vector<4x32xf32>
    %314 = vector.broadcast %10 : vector<1x32xf32> to vector<4x32xf32>
    %315 = arith.addf %313, %314 : vector<4x32xf32>
    %cst_155 = arith.constant 0.000000e+00 : f32
    %316 = vector.broadcast %cst_155 : f32 to vector<4x32xf32>
    %317 = arith.maximumf %315, %316 : vector<4x32xf32>
    %cst_156 = arith.constant dense<0.000000e+00> : vector<4xf32>
    %318 = vector.multi_reduction <add>, %317, %cst_156 [1] : vector<4x32xf32> to vector<4xf32>
    %319 = vector.shape_cast %318 : vector<4xf32> to vector<4x1xf32>
    %cst_157 = arith.constant 3.200000e+01 : f32
    %320 = vector.broadcast %cst_157 : f32 to vector<4x1xf32>
    %321 = arith.divf %319, %320 : vector<4x1xf32>
    %322 = vector.broadcast %321 : vector<4x1xf32> to vector<4x32xf32>
    %323 = arith.subf %317, %322 : vector<4x32xf32>
    %324 = arith.mulf %323, %323 : vector<4x32xf32>
    %cst_158 = arith.constant dense<0.000000e+00> : vector<4xf32>
    %325 = vector.multi_reduction <add>, %324, %cst_158 [1] : vector<4x32xf32> to vector<4xf32>
    %326 = vector.shape_cast %325 : vector<4xf32> to vector<4x1xf32>
    %cst_159 = arith.constant 3.200000e+01 : f32
    %327 = vector.broadcast %cst_159 : f32 to vector<4x1xf32>
    %328 = arith.divf %326, %327 : vector<4x1xf32>
    %329 = vector.broadcast %321 : vector<4x1xf32> to vector<4x32xf32>
    %330 = arith.subf %317, %329 : vector<4x32xf32>
    %cst_160 = arith.constant 9.99999974E-6 : f32
    %331 = vector.broadcast %cst_160 : f32 to vector<4x1xf32>
    %332 = arith.addf %328, %331 : vector<4x1xf32>
    %333 = math.rsqrt %332 : vector<4x1xf32>
    %334 = vector.broadcast %333 : vector<4x1xf32> to vector<4x32xf32>
    %335 = arith.mulf %330, %334 : vector<4x32xf32>
    %336 = vector.broadcast %11 : vector<1x32xf32> to vector<4x32xf32>
    %337 = arith.mulf %335, %336 : vector<4x32xf32>
    %338 = vector.broadcast %12 : vector<1x32xf32> to vector<4x32xf32>
    %339 = arith.addf %337, %338 : vector<4x32xf32>
    %c3_161 = arith.constant 3 : index
    %c0_162 = arith.constant 0 : index
    %c0_163 = arith.constant 0 : index
    %340 = vector.load %arg14[%c3_161, %c0_162, %c0_163] : memref<8x4x32xf32, #tpu.memory_space<vmem>>, vector<1x4x32xf32>
    %341 = vector.shape_cast %340 : vector<1x4x32xf32> to vector<4x32xf32>
    %342 = vector.shape_cast %339 : vector<4x32xf32> to vector<1x4x32xf32>
    tpu.vector_store %arg14[%c3_161, %c0_162, %c0_163], %342 {strides = array<i32>} : memref<8x4x32xf32, #tpu.memory_space<vmem>>, vector<1x4x32xf32>,
    %c0_164 = arith.constant 0 : index
    %c0_165 = arith.constant 0 : index
    %c0_166 = arith.constant 0 : index
    %343 = vector.load %arg6[%c0_164, %c0_165, %c0_166] : memref<3x32x32xf32, #tpu.memory_space<vmem>>, vector<1x32x32xf32>
    %344 = vector.shape_cast %343 : vector<1x32x32xf32> to vector<32x32xf32>
    %cst_167 = arith.constant dense<0.000000e+00> : vector<4x32xf32>
    %345 = tpu.matmul %307, %344, %cst_167 {dimension_numbers = #tpu.dot_dimension_numbers<[1], [0], [0], [1], [0, 0, 1, 1], [], []>} : vector<4x32xf32>, vector<32x32xf32>, vector<4x32xf32> -> vector<4x32xf32>
    %346 = vector.broadcast %5 : vector<1x32xf32> to vector<4x32xf32>
    %347 = arith.addf %345, %346 : vector<4x32xf32>
    %c1_168 = arith.constant 1 : index
    %c0_169 = arith.constant 0 : index
    %c0_170 = arith.constant 0 : index
    %348 = vector.load %arg6[%c1_168, %c0_169, %c0_170] : memref<3x32x32xf32, #tpu.memory_space<vmem>>, vector<1x32x32xf32>
    %349 = vector.shape_cast %348 : vector<1x32x32xf32> to vector<32x32xf32>
    %cst_171 = arith.constant dense<0.000000e+00> : vector<4x32xf32>
    %350 = tpu.matmul %307, %349, %cst_171 {dimension_numbers = #tpu.dot_dimension_numbers<[1], [0], [0], [1], [0, 0, 1, 1], [], []>} : vector<4x32xf32>, vector<32x32xf32>, vector<4x32xf32> -> vector<4x32xf32>
    %351 = vector.broadcast %7 : vector<1x32xf32> to vector<4x32xf32>
    %352 = arith.addf %350, %351 : vector<4x32xf32>
    %c2_172 = arith.constant 2 : index
    %c0_173 = arith.constant 0 : index
    %c0_174 = arith.constant 0 : index
    %353 = vector.load %arg6[%c2_172, %c0_173, %c0_174] : memref<3x32x32xf32, #tpu.memory_space<vmem>>, vector<1x32x32xf32>
    %354 = vector.shape_cast %353 : vector<1x32x32xf32> to vector<32x32xf32>
    %cst_175 = arith.constant dense<0.000000e+00> : vector<4x32xf32>
    %355 = tpu.matmul %307, %354, %cst_175 {dimension_numbers = #tpu.dot_dimension_numbers<[1], [0], [0], [1], [0, 0, 1, 1], [], []>} : vector<4x32xf32>, vector<32x32xf32>, vector<4x32xf32> -> vector<4x32xf32>
    %356 = vector.broadcast %9 : vector<1x32xf32> to vector<4x32xf32>
    %357 = arith.addf %355, %356 : vector<4x32xf32>
    %c4 = arith.constant 4 : index
    %c0_176 = arith.constant 0 : index
    %c0_177 = arith.constant 0 : index
    %358 = vector.load %arg3[%c4, %c0_176, %c0_177] : memref<8x4x32xf32, #tpu.memory_space<vmem>>, vector<1x4x32xf32>
    %359 = vector.shape_cast %358 : vector<1x4x32xf32> to vector<4x32xf32>
    %360 = arith.addf %359, %347 : vector<4x32xf32>
    %361 = arith.negf %360 : vector<4x32xf32>
    %362 = math.exp %361 : vector<4x32xf32>
    %cst_178 = arith.constant 1.000000e+00 : f32
    %363 = vector.broadcast %cst_178 : f32 to vector<4x32xf32>
    %364 = arith.addf %363, %362 : vector<4x32xf32>
    %365 = arith.divf %363, %364 : vector<4x32xf32>
    %c4_179 = arith.constant 4 : index
    %c0_180 = arith.constant 0 : index
    %c0_181 = arith.constant 0 : index
    %366 = vector.load %arg4[%c4_179, %c0_180, %c0_181] : memref<8x4x32xf32, #tpu.memory_space<vmem>>, vector<1x4x32xf32>
    %367 = vector.shape_cast %366 : vector<1x4x32xf32> to vector<4x32xf32>
    %368 = arith.addf %367, %352 : vector<4x32xf32>
    %369 = arith.negf %368 : vector<4x32xf32>
    %370 = math.exp %369 : vector<4x32xf32>
    %cst_182 = arith.constant 1.000000e+00 : f32
    %371 = vector.broadcast %cst_182 : f32 to vector<4x32xf32>
    %372 = arith.addf %371, %370 : vector<4x32xf32>
    %373 = arith.divf %371, %372 : vector<4x32xf32>
    %c4_183 = arith.constant 4 : index
    %c0_184 = arith.constant 0 : index
    %c0_185 = arith.constant 0 : index
    %374 = vector.load %arg5[%c4_183, %c0_184, %c0_185] : memref<8x4x32xf32, #tpu.memory_space<vmem>>, vector<1x4x32xf32>
    %375 = vector.shape_cast %374 : vector<1x4x32xf32> to vector<4x32xf32>
    %376 = arith.mulf %365, %357 : vector<4x32xf32>
    %377 = arith.addf %375, %376 : vector<4x32xf32>
    %378 = math.tanh %377 : vector<4x32xf32>
    %cst_186 = arith.constant 1.000000e+00 : f32
    %379 = vector.broadcast %cst_186 : f32 to vector<4x32xf32>
    %380 = arith.subf %379, %373 : vector<4x32xf32>
    %381 = arith.mulf %380, %378 : vector<4x32xf32>
    %382 = arith.mulf %373, %307 : vector<4x32xf32>
    %383 = arith.addf %381, %382 : vector<4x32xf32>
    %c4_i32 = arith.constant 4 : i32
    %384 = arith.addi %14, %c4_i32 : i32
    %385 = vector.broadcast %384 : i32 to vector<4x1xi32>
    %386 = arith.cmpi slt, %385, %3 : vector<4x1xi32>
    %387 = vector.shape_cast %386 : vector<4x1xi1> to vector<4x1xi1>
    %388 = vector.broadcast %387 : vector<4x1xi1> to vector<4x32xi1>
    %389 = arith.select %388, %383, %307 : vector<4x32xi1>, vector<4x32xf32>
    %cst_187 = arith.constant 0.000000e+00 : f32
    %390 = vector.shape_cast %386 : vector<4x1xi1> to vector<4x1xi1>
    %391 = vector.broadcast %390 : vector<4x1xi1> to vector<4x32xi1>
    %392 = vector.broadcast %cst_187 : f32 to vector<4x32xf32>
    %393 = arith.select %391, %383, %392 : vector<4x32xi1>, vector<4x32xf32>
    %c0_188 = arith.constant 0 : index
    %c0_189 = arith.constant 0 : index
    %394 = vector.load %arg8[%c0_188, %c0_189] : memref<32x32xf32, #tpu.memory_space<vmem>>, vector<32x32xf32>
    %cst_190 = arith.constant dense<0.000000e+00> : vector<4x32xf32>
    %395 = tpu.matmul %393, %394, %cst_190 {dimension_numbers = #tpu.dot_dimension_numbers<[1], [0], [0], [1], [0, 0, 1, 1], [], []>} : vector<4x32xf32>, vector<32x32xf32>, vector<4x32xf32> -> vector<4x32xf32>
    %396 = vector.broadcast %10 : vector<1x32xf32> to vector<4x32xf32>
    %397 = arith.addf %395, %396 : vector<4x32xf32>
    %cst_191 = arith.constant 0.000000e+00 : f32
    %398 = vector.broadcast %cst_191 : f32 to vector<4x32xf32>
    %399 = arith.maximumf %397, %398 : vector<4x32xf32>
    %cst_192 = arith.constant dense<0.000000e+00> : vector<4xf32>
    %400 = vector.multi_reduction <add>, %399, %cst_192 [1] : vector<4x32xf32> to vector<4xf32>
    %401 = vector.shape_cast %400 : vector<4xf32> to vector<4x1xf32>
    %cst_193 = arith.constant 3.200000e+01 : f32
    %402 = vector.broadcast %cst_193 : f32 to vector<4x1xf32>
    %403 = arith.divf %401, %402 : vector<4x1xf32>
    %404 = vector.broadcast %403 : vector<4x1xf32> to vector<4x32xf32>
    %405 = arith.subf %399, %404 : vector<4x32xf32>
    %406 = arith.mulf %405, %405 : vector<4x32xf32>
    %cst_194 = arith.constant dense<0.000000e+00> : vector<4xf32>
    %407 = vector.multi_reduction <add>, %406, %cst_194 [1] : vector<4x32xf32> to vector<4xf32>
    %408 = vector.shape_cast %407 : vector<4xf32> to vector<4x1xf32>
    %cst_195 = arith.constant 3.200000e+01 : f32
    %409 = vector.broadcast %cst_195 : f32 to vector<4x1xf32>
    %410 = arith.divf %408, %409 : vector<4x1xf32>
    %411 = vector.broadcast %403 : vector<4x1xf32> to vector<4x32xf32>
    %412 = arith.subf %399, %411 : vector<4x32xf32>
    %cst_196 = arith.constant 9.99999974E-6 : f32
    %413 = vector.broadcast %cst_196 : f32 to vector<4x1xf32>
    %414 = arith.addf %410, %413 : vector<4x1xf32>
    %415 = math.rsqrt %414 : vector<4x1xf32>
    %416 = vector.broadcast %415 : vector<4x1xf32> to vector<4x32xf32>
    %417 = arith.mulf %412, %416 : vector<4x32xf32>
    %418 = vector.broadcast %11 : vector<1x32xf32> to vector<4x32xf32>
    %419 = arith.mulf %417, %418 : vector<4x32xf32>
    %420 = vector.broadcast %12 : vector<1x32xf32> to vector<4x32xf32>
    %421 = arith.addf %419, %420 : vector<4x32xf32>
    %c4_197 = arith.constant 4 : index
    %c0_198 = arith.constant 0 : index
    %c0_199 = arith.constant 0 : index
    %422 = vector.load %arg14[%c4_197, %c0_198, %c0_199] : memref<8x4x32xf32, #tpu.memory_space<vmem>>, vector<1x4x32xf32>
    %423 = vector.shape_cast %422 : vector<1x4x32xf32> to vector<4x32xf32>
    %424 = vector.shape_cast %421 : vector<4x32xf32> to vector<1x4x32xf32>
    tpu.vector_store %arg14[%c4_197, %c0_198, %c0_199], %424 {strides = array<i32>} : memref<8x4x32xf32, #tpu.memory_space<vmem>>, vector<1x4x32xf32>,
    %c0_200 = arith.constant 0 : index
    %c0_201 = arith.constant 0 : index
    %c0_202 = arith.constant 0 : index
    %425 = vector.load %arg6[%c0_200, %c0_201, %c0_202] : memref<3x32x32xf32, #tpu.memory_space<vmem>>, vector<1x32x32xf32>
    %426 = vector.shape_cast %425 : vector<1x32x32xf32> to vector<32x32xf32>
    %cst_203 = arith.constant dense<0.000000e+00> : vector<4x32xf32>
    %427 = tpu.matmul %389, %426, %cst_203 {dimension_numbers = #tpu.dot_dimension_numbers<[1], [0], [0], [1], [0, 0, 1, 1], [], []>} : vector<4x32xf32>, vector<32x32xf32>, vector<4x32xf32> -> vector<4x32xf32>
    %428 = vector.broadcast %5 : vector<1x32xf32> to vector<4x32xf32>
    %429 = arith.addf %427, %428 : vector<4x32xf32>
    %c1_204 = arith.constant 1 : index
    %c0_205 = arith.constant 0 : index
    %c0_206 = arith.constant 0 : index
    %430 = vector.load %arg6[%c1_204, %c0_205, %c0_206] : memref<3x32x32xf32, #tpu.memory_space<vmem>>, vector<1x32x32xf32>
    %431 = vector.shape_cast %430 : vector<1x32x32xf32> to vector<32x32xf32>
    %cst_207 = arith.constant dense<0.000000e+00> : vector<4x32xf32>
    %432 = tpu.matmul %389, %431, %cst_207 {dimension_numbers = #tpu.dot_dimension_numbers<[1], [0], [0], [1], [0, 0, 1, 1], [], []>} : vector<4x32xf32>, vector<32x32xf32>, vector<4x32xf32> -> vector<4x32xf32>
    %433 = vector.broadcast %7 : vector<1x32xf32> to vector<4x32xf32>
    %434 = arith.addf %432, %433 : vector<4x32xf32>
    %c2_208 = arith.constant 2 : index
    %c0_209 = arith.constant 0 : index
    %c0_210 = arith.constant 0 : index
    %435 = vector.load %arg6[%c2_208, %c0_209, %c0_210] : memref<3x32x32xf32, #tpu.memory_space<vmem>>, vector<1x32x32xf32>
    %436 = vector.shape_cast %435 : vector<1x32x32xf32> to vector<32x32xf32>
    %cst_211 = arith.constant dense<0.000000e+00> : vector<4x32xf32>
    %437 = tpu.matmul %389, %436, %cst_211 {dimension_numbers = #tpu.dot_dimension_numbers<[1], [0], [0], [1], [0, 0, 1, 1], [], []>} : vector<4x32xf32>, vector<32x32xf32>, vector<4x32xf32> -> vector<4x32xf32>
    %438 = vector.broadcast %9 : vector<1x32xf32> to vector<4x32xf32>
    %439 = arith.addf %437, %438 : vector<4x32xf32>
    %c5 = arith.constant 5 : index
    %c0_212 = arith.constant 0 : index
    %c0_213 = arith.constant 0 : index
    %440 = vector.load %arg3[%c5, %c0_212, %c0_213] : memref<8x4x32xf32, #tpu.memory_space<vmem>>, vector<1x4x32xf32>
    %441 = vector.shape_cast %440 : vector<1x4x32xf32> to vector<4x32xf32>
    %442 = arith.addf %441, %429 : vector<4x32xf32>
    %443 = arith.negf %442 : vector<4x32xf32>
    %444 = math.exp %443 : vector<4x32xf32>
    %cst_214 = arith.constant 1.000000e+00 : f32
    %445 = vector.broadcast %cst_214 : f32 to vector<4x32xf32>
    %446 = arith.addf %445, %444 : vector<4x32xf32>
    %447 = arith.divf %445, %446 : vector<4x32xf32>
    %c5_215 = arith.constant 5 : index
    %c0_216 = arith.constant 0 : index
    %c0_217 = arith.constant 0 : index
    %448 = vector.load %arg4[%c5_215, %c0_216, %c0_217] : memref<8x4x32xf32, #tpu.memory_space<vmem>>, vector<1x4x32xf32>
    %449 = vector.shape_cast %448 : vector<1x4x32xf32> to vector<4x32xf32>
    %450 = arith.addf %449, %434 : vector<4x32xf32>
    %451 = arith.negf %450 : vector<4x32xf32>
    %452 = math.exp %451 : vector<4x32xf32>
    %cst_218 = arith.constant 1.000000e+00 : f32
    %453 = vector.broadcast %cst_218 : f32 to vector<4x32xf32>
    %454 = arith.addf %453, %452 : vector<4x32xf32>
    %455 = arith.divf %453, %454 : vector<4x32xf32>
    %c5_219 = arith.constant 5 : index
    %c0_220 = arith.constant 0 : index
    %c0_221 = arith.constant 0 : index
    %456 = vector.load %arg5[%c5_219, %c0_220, %c0_221] : memref<8x4x32xf32, #tpu.memory_space<vmem>>, vector<1x4x32xf32>
    %457 = vector.shape_cast %456 : vector<1x4x32xf32> to vector<4x32xf32>
    %458 = arith.mulf %447, %439 : vector<4x32xf32>
    %459 = arith.addf %457, %458 : vector<4x32xf32>
    %460 = math.tanh %459 : vector<4x32xf32>
    %cst_222 = arith.constant 1.000000e+00 : f32
    %461 = vector.broadcast %cst_222 : f32 to vector<4x32xf32>
    %462 = arith.subf %461, %455 : vector<4x32xf32>
    %463 = arith.mulf %462, %460 : vector<4x32xf32>
    %464 = arith.mulf %455, %389 : vector<4x32xf32>
    %465 = arith.addf %463, %464 : vector<4x32xf32>
    %c5_i32 = arith.constant 5 : i32
    %466 = arith.addi %14, %c5_i32 : i32
    %467 = vector.broadcast %466 : i32 to vector<4x1xi32>
    %468 = arith.cmpi slt, %467, %3 : vector<4x1xi32>
    %469 = vector.shape_cast %468 : vector<4x1xi1> to vector<4x1xi1>
    %470 = vector.broadcast %469 : vector<4x1xi1> to vector<4x32xi1>
    %471 = arith.select %470, %465, %389 : vector<4x32xi1>, vector<4x32xf32>
    %cst_223 = arith.constant 0.000000e+00 : f32
    %472 = vector.shape_cast %468 : vector<4x1xi1> to vector<4x1xi1>
    %473 = vector.broadcast %472 : vector<4x1xi1> to vector<4x32xi1>
    %474 = vector.broadcast %cst_223 : f32 to vector<4x32xf32>
    %475 = arith.select %473, %465, %474 : vector<4x32xi1>, vector<4x32xf32>
    %c0_224 = arith.constant 0 : index
    %c0_225 = arith.constant 0 : index
    %476 = vector.load %arg8[%c0_224, %c0_225] : memref<32x32xf32, #tpu.memory_space<vmem>>, vector<32x32xf32>
    %cst_226 = arith.constant dense<0.000000e+00> : vector<4x32xf32>
    %477 = tpu.matmul %475, %476, %cst_226 {dimension_numbers = #tpu.dot_dimension_numbers<[1], [0], [0], [1], [0, 0, 1, 1], [], []>} : vector<4x32xf32>, vector<32x32xf32>, vector<4x32xf32> -> vector<4x32xf32>
    %478 = vector.broadcast %10 : vector<1x32xf32> to vector<4x32xf32>
    %479 = arith.addf %477, %478 : vector<4x32xf32>
    %cst_227 = arith.constant 0.000000e+00 : f32
    %480 = vector.broadcast %cst_227 : f32 to vector<4x32xf32>
    %481 = arith.maximumf %479, %480 : vector<4x32xf32>
    %cst_228 = arith.constant dense<0.000000e+00> : vector<4xf32>
    %482 = vector.multi_reduction <add>, %481, %cst_228 [1] : vector<4x32xf32> to vector<4xf32>
    %483 = vector.shape_cast %482 : vector<4xf32> to vector<4x1xf32>
    %cst_229 = arith.constant 3.200000e+01 : f32
    %484 = vector.broadcast %cst_229 : f32 to vector<4x1xf32>
    %485 = arith.divf %483, %484 : vector<4x1xf32>
    %486 = vector.broadcast %485 : vector<4x1xf32> to vector<4x32xf32>
    %487 = arith.subf %481, %486 : vector<4x32xf32>
    %488 = arith.mulf %487, %487 : vector<4x32xf32>
    %cst_230 = arith.constant dense<0.000000e+00> : vector<4xf32>
    %489 = vector.multi_reduction <add>, %488, %cst_230 [1] : vector<4x32xf32> to vector<4xf32>
    %490 = vector.shape_cast %489 : vector<4xf32> to vector<4x1xf32>
    %cst_231 = arith.constant 3.200000e+01 : f32
    %491 = vector.broadcast %cst_231 : f32 to vector<4x1xf32>
    %492 = arith.divf %490, %491 : vector<4x1xf32>
    %493 = vector.broadcast %485 : vector<4x1xf32> to vector<4x32xf32>
    %494 = arith.subf %481, %493 : vector<4x32xf32>
    %cst_232 = arith.constant 9.99999974E-6 : f32
    %495 = vector.broadcast %cst_232 : f32 to vector<4x1xf32>
    %496 = arith.addf %492, %495 : vector<4x1xf32>
    %497 = math.rsqrt %496 : vector<4x1xf32>
    %498 = vector.broadcast %497 : vector<4x1xf32> to vector<4x32xf32>
    %499 = arith.mulf %494, %498 : vector<4x32xf32>
    %500 = vector.broadcast %11 : vector<1x32xf32> to vector<4x32xf32>
    %501 = arith.mulf %499, %500 : vector<4x32xf32>
    %502 = vector.broadcast %12 : vector<1x32xf32> to vector<4x32xf32>
    %503 = arith.addf %501, %502 : vector<4x32xf32>
    %c5_233 = arith.constant 5 : index
    %c0_234 = arith.constant 0 : index
    %c0_235 = arith.constant 0 : index
    %504 = vector.load %arg14[%c5_233, %c0_234, %c0_235] : memref<8x4x32xf32, #tpu.memory_space<vmem>>, vector<1x4x32xf32>
    %505 = vector.shape_cast %504 : vector<1x4x32xf32> to vector<4x32xf32>
    %506 = vector.shape_cast %503 : vector<4x32xf32> to vector<1x4x32xf32>
    tpu.vector_store %arg14[%c5_233, %c0_234, %c0_235], %506 {strides = array<i32>} : memref<8x4x32xf32, #tpu.memory_space<vmem>>, vector<1x4x32xf32>,
    %c0_236 = arith.constant 0 : index
    %c0_237 = arith.constant 0 : index
    %c0_238 = arith.constant 0 : index
    %507 = vector.load %arg6[%c0_236, %c0_237, %c0_238] : memref<3x32x32xf32, #tpu.memory_space<vmem>>, vector<1x32x32xf32>
    %508 = vector.shape_cast %507 : vector<1x32x32xf32> to vector<32x32xf32>
    %cst_239 = arith.constant dense<0.000000e+00> : vector<4x32xf32>
    %509 = tpu.matmul %471, %508, %cst_239 {dimension_numbers = #tpu.dot_dimension_numbers<[1], [0], [0], [1], [0, 0, 1, 1], [], []>} : vector<4x32xf32>, vector<32x32xf32>, vector<4x32xf32> -> vector<4x32xf32>
    %510 = vector.broadcast %5 : vector<1x32xf32> to vector<4x32xf32>
    %511 = arith.addf %509, %510 : vector<4x32xf32>
    %c1_240 = arith.constant 1 : index
    %c0_241 = arith.constant 0 : index
    %c0_242 = arith.constant 0 : index
    %512 = vector.load %arg6[%c1_240, %c0_241, %c0_242] : memref<3x32x32xf32, #tpu.memory_space<vmem>>, vector<1x32x32xf32>
    %513 = vector.shape_cast %512 : vector<1x32x32xf32> to vector<32x32xf32>
    %cst_243 = arith.constant dense<0.000000e+00> : vector<4x32xf32>
    %514 = tpu.matmul %471, %513, %cst_243 {dimension_numbers = #tpu.dot_dimension_numbers<[1], [0], [0], [1], [0, 0, 1, 1], [], []>} : vector<4x32xf32>, vector<32x32xf32>, vector<4x32xf32> -> vector<4x32xf32>
    %515 = vector.broadcast %7 : vector<1x32xf32> to vector<4x32xf32>
    %516 = arith.addf %514, %515 : vector<4x32xf32>
    %c2_244 = arith.constant 2 : index
    %c0_245 = arith.constant 0 : index
    %c0_246 = arith.constant 0 : index
    %517 = vector.load %arg6[%c2_244, %c0_245, %c0_246] : memref<3x32x32xf32, #tpu.memory_space<vmem>>, vector<1x32x32xf32>
    %518 = vector.shape_cast %517 : vector<1x32x32xf32> to vector<32x32xf32>
    %cst_247 = arith.constant dense<0.000000e+00> : vector<4x32xf32>
    %519 = tpu.matmul %471, %518, %cst_247 {dimension_numbers = #tpu.dot_dimension_numbers<[1], [0], [0], [1], [0, 0, 1, 1], [], []>} : vector<4x32xf32>, vector<32x32xf32>, vector<4x32xf32> -> vector<4x32xf32>
    %520 = vector.broadcast %9 : vector<1x32xf32> to vector<4x32xf32>
    %521 = arith.addf %519, %520 : vector<4x32xf32>
    %c6 = arith.constant 6 : index
    %c0_248 = arith.constant 0 : index
    %c0_249 = arith.constant 0 : index
    %522 = vector.load %arg3[%c6, %c0_248, %c0_249] : memref<8x4x32xf32, #tpu.memory_space<vmem>>, vector<1x4x32xf32>
    %523 = vector.shape_cast %522 : vector<1x4x32xf32> to vector<4x32xf32>
    %524 = arith.addf %523, %511 : vector<4x32xf32>
    %525 = arith.negf %524 : vector<4x32xf32>
    %526 = math.exp %525 : vector<4x32xf32>
    %cst_250 = arith.constant 1.000000e+00 : f32
    %527 = vector.broadcast %cst_250 : f32 to vector<4x32xf32>
    %528 = arith.addf %527, %526 : vector<4x32xf32>
    %529 = arith.divf %527, %528 : vector<4x32xf32>
    %c6_251 = arith.constant 6 : index
    %c0_252 = arith.constant 0 : index
    %c0_253 = arith.constant 0 : index
    %530 = vector.load %arg4[%c6_251, %c0_252, %c0_253] : memref<8x4x32xf32, #tpu.memory_space<vmem>>, vector<1x4x32xf32>
    %531 = vector.shape_cast %530 : vector<1x4x32xf32> to vector<4x32xf32>
    %532 = arith.addf %531, %516 : vector<4x32xf32>
    %533 = arith.negf %532 : vector<4x32xf32>
    %534 = math.exp %533 : vector<4x32xf32>
    %cst_254 = arith.constant 1.000000e+00 : f32
    %535 = vector.broadcast %cst_254 : f32 to vector<4x32xf32>
    %536 = arith.addf %535, %534 : vector<4x32xf32>
    %537 = arith.divf %535, %536 : vector<4x32xf32>
    %c6_255 = arith.constant 6 : index
    %c0_256 = arith.constant 0 : index
    %c0_257 = arith.constant 0 : index
    %538 = vector.load %arg5[%c6_255, %c0_256, %c0_257] : memref<8x4x32xf32, #tpu.memory_space<vmem>>, vector<1x4x32xf32>
    %539 = vector.shape_cast %538 : vector<1x4x32xf32> to vector<4x32xf32>
    %540 = arith.mulf %529, %521 : vector<4x32xf32>
    %541 = arith.addf %539, %540 : vector<4x32xf32>
    %542 = math.tanh %541 : vector<4x32xf32>
    %cst_258 = arith.constant 1.000000e+00 : f32
    %543 = vector.broadcast %cst_258 : f32 to vector<4x32xf32>
    %544 = arith.subf %543, %537 : vector<4x32xf32>
    %545 = arith.mulf %544, %542 : vector<4x32xf32>
    %546 = arith.mulf %537, %471 : vector<4x32xf32>
    %547 = arith.addf %545, %546 : vector<4x32xf32>
    %c6_i32 = arith.constant 6 : i32
    %548 = arith.addi %14, %c6_i32 : i32
    %549 = vector.broadcast %548 : i32 to vector<4x1xi32>
    %550 = arith.cmpi slt, %549, %3 : vector<4x1xi32>
    %551 = vector.shape_cast %550 : vector<4x1xi1> to vector<4x1xi1>
    %552 = vector.broadcast %551 : vector<4x1xi1> to vector<4x32xi1>
    %553 = arith.select %552, %547, %471 : vector<4x32xi1>, vector<4x32xf32>
    %cst_259 = arith.constant 0.000000e+00 : f32
    %554 = vector.shape_cast %550 : vector<4x1xi1> to vector<4x1xi1>
    %555 = vector.broadcast %554 : vector<4x1xi1> to vector<4x32xi1>
    %556 = vector.broadcast %cst_259 : f32 to vector<4x32xf32>
    %557 = arith.select %555, %547, %556 : vector<4x32xi1>, vector<4x32xf32>
    %c0_260 = arith.constant 0 : index
    %c0_261 = arith.constant 0 : index
    %558 = vector.load %arg8[%c0_260, %c0_261] : memref<32x32xf32, #tpu.memory_space<vmem>>, vector<32x32xf32>
    %cst_262 = arith.constant dense<0.000000e+00> : vector<4x32xf32>
    %559 = tpu.matmul %557, %558, %cst_262 {dimension_numbers = #tpu.dot_dimension_numbers<[1], [0], [0], [1], [0, 0, 1, 1], [], []>} : vector<4x32xf32>, vector<32x32xf32>, vector<4x32xf32> -> vector<4x32xf32>
    %560 = vector.broadcast %10 : vector<1x32xf32> to vector<4x32xf32>
    %561 = arith.addf %559, %560 : vector<4x32xf32>
    %cst_263 = arith.constant 0.000000e+00 : f32
    %562 = vector.broadcast %cst_263 : f32 to vector<4x32xf32>
    %563 = arith.maximumf %561, %562 : vector<4x32xf32>
    %cst_264 = arith.constant dense<0.000000e+00> : vector<4xf32>
    %564 = vector.multi_reduction <add>, %563, %cst_264 [1] : vector<4x32xf32> to vector<4xf32>
    %565 = vector.shape_cast %564 : vector<4xf32> to vector<4x1xf32>
    %cst_265 = arith.constant 3.200000e+01 : f32
    %566 = vector.broadcast %cst_265 : f32 to vector<4x1xf32>
    %567 = arith.divf %565, %566 : vector<4x1xf32>
    %568 = vector.broadcast %567 : vector<4x1xf32> to vector<4x32xf32>
    %569 = arith.subf %563, %568 : vector<4x32xf32>
    %570 = arith.mulf %569, %569 : vector<4x32xf32>
    %cst_266 = arith.constant dense<0.000000e+00> : vector<4xf32>
    %571 = vector.multi_reduction <add>, %570, %cst_266 [1] : vector<4x32xf32> to vector<4xf32>
    %572 = vector.shape_cast %571 : vector<4xf32> to vector<4x1xf32>
    %cst_267 = arith.constant 3.200000e+01 : f32
    %573 = vector.broadcast %cst_267 : f32 to vector<4x1xf32>
    %574 = arith.divf %572, %573 : vector<4x1xf32>
    %575 = vector.broadcast %567 : vector<4x1xf32> to vector<4x32xf32>
    %576 = arith.subf %563, %575 : vector<4x32xf32>
    %cst_268 = arith.constant 9.99999974E-6 : f32
    %577 = vector.broadcast %cst_268 : f32 to vector<4x1xf32>
    %578 = arith.addf %574, %577 : vector<4x1xf32>
    %579 = math.rsqrt %578 : vector<4x1xf32>
    %580 = vector.broadcast %579 : vector<4x1xf32> to vector<4x32xf32>
    %581 = arith.mulf %576, %580 : vector<4x32xf32>
    %582 = vector.broadcast %11 : vector<1x32xf32> to vector<4x32xf32>
    %583 = arith.mulf %581, %582 : vector<4x32xf32>
    %584 = vector.broadcast %12 : vector<1x32xf32> to vector<4x32xf32>
    %585 = arith.addf %583, %584 : vector<4x32xf32>
    %c6_269 = arith.constant 6 : index
    %c0_270 = arith.constant 0 : index
    %c0_271 = arith.constant 0 : index
    %586 = vector.load %arg14[%c6_269, %c0_270, %c0_271] : memref<8x4x32xf32, #tpu.memory_space<vmem>>, vector<1x4x32xf32>
    %587 = vector.shape_cast %586 : vector<1x4x32xf32> to vector<4x32xf32>
    %588 = vector.shape_cast %585 : vector<4x32xf32> to vector<1x4x32xf32>
    tpu.vector_store %arg14[%c6_269, %c0_270, %c0_271], %588 {strides = array<i32>} : memref<8x4x32xf32, #tpu.memory_space<vmem>>, vector<1x4x32xf32>,
    %c0_272 = arith.constant 0 : index
    %c0_273 = arith.constant 0 : index
    %c0_274 = arith.constant 0 : index
    %589 = vector.load %arg6[%c0_272, %c0_273, %c0_274] : memref<3x32x32xf32, #tpu.memory_space<vmem>>, vector<1x32x32xf32>
    %590 = vector.shape_cast %589 : vector<1x32x32xf32> to vector<32x32xf32>
    %cst_275 = arith.constant dense<0.000000e+00> : vector<4x32xf32>
    %591 = tpu.matmul %553, %590, %cst_275 {dimension_numbers = #tpu.dot_dimension_numbers<[1], [0], [0], [1], [0, 0, 1, 1], [], []>} : vector<4x32xf32>, vector<32x32xf32>, vector<4x32xf32> -> vector<4x32xf32>
    %592 = vector.broadcast %5 : vector<1x32xf32> to vector<4x32xf32>
    %593 = arith.addf %591, %592 : vector<4x32xf32>
    %c1_276 = arith.constant 1 : index
    %c0_277 = arith.constant 0 : index
    %c0_278 = arith.constant 0 : index
    %594 = vector.load %arg6[%c1_276, %c0_277, %c0_278] : memref<3x32x32xf32, #tpu.memory_space<vmem>>, vector<1x32x32xf32>
    %595 = vector.shape_cast %594 : vector<1x32x32xf32> to vector<32x32xf32>
    %cst_279 = arith.constant dense<0.000000e+00> : vector<4x32xf32>
    %596 = tpu.matmul %553, %595, %cst_279 {dimension_numbers = #tpu.dot_dimension_numbers<[1], [0], [0], [1], [0, 0, 1, 1], [], []>} : vector<4x32xf32>, vector<32x32xf32>, vector<4x32xf32> -> vector<4x32xf32>
    %597 = vector.broadcast %7 : vector<1x32xf32> to vector<4x32xf32>
    %598 = arith.addf %596, %597 : vector<4x32xf32>
    %c2_280 = arith.constant 2 : index
    %c0_281 = arith.constant 0 : index
    %c0_282 = arith.constant 0 : index
    %599 = vector.load %arg6[%c2_280, %c0_281, %c0_282] : memref<3x32x32xf32, #tpu.memory_space<vmem>>, vector<1x32x32xf32>
    %600 = vector.shape_cast %599 : vector<1x32x32xf32> to vector<32x32xf32>
    %cst_283 = arith.constant dense<0.000000e+00> : vector<4x32xf32>
    %601 = tpu.matmul %553, %600, %cst_283 {dimension_numbers = #tpu.dot_dimension_numbers<[1], [0], [0], [1], [0, 0, 1, 1], [], []>} : vector<4x32xf32>, vector<32x32xf32>, vector<4x32xf32> -> vector<4x32xf32>
    %602 = vector.broadcast %9 : vector<1x32xf32> to vector<4x32xf32>
    %603 = arith.addf %601, %602 : vector<4x32xf32>
    %c7 = arith.constant 7 : index
    %c0_284 = arith.constant 0 : index
    %c0_285 = arith.constant 0 : index
    %604 = vector.load %arg3[%c7, %c0_284, %c0_285] : memref<8x4x32xf32, #tpu.memory_space<vmem>>, vector<1x4x32xf32>
    %605 = vector.shape_cast %604 : vector<1x4x32xf32> to vector<4x32xf32>
    %606 = arith.addf %605, %593 : vector<4x32xf32>
    %607 = arith.negf %606 : vector<4x32xf32>
    %608 = math.exp %607 : vector<4x32xf32>
    %cst_286 = arith.constant 1.000000e+00 : f32
    %609 = vector.broadcast %cst_286 : f32 to vector<4x32xf32>
    %610 = arith.addf %609, %608 : vector<4x32xf32>
    %611 = arith.divf %609, %610 : vector<4x32xf32>
    %c7_287 = arith.constant 7 : index
    %c0_288 = arith.constant 0 : index
    %c0_289 = arith.constant 0 : index
    %612 = vector.load %arg4[%c7_287, %c0_288, %c0_289] : memref<8x4x32xf32, #tpu.memory_space<vmem>>, vector<1x4x32xf32>
    %613 = vector.shape_cast %612 : vector<1x4x32xf32> to vector<4x32xf32>
    %614 = arith.addf %613, %598 : vector<4x32xf32>
    %615 = arith.negf %614 : vector<4x32xf32>
    %616 = math.exp %615 : vector<4x32xf32>
    %cst_290 = arith.constant 1.000000e+00 : f32
    %617 = vector.broadcast %cst_290 : f32 to vector<4x32xf32>
    %618 = arith.addf %617, %616 : vector<4x32xf32>
    %619 = arith.divf %617, %618 : vector<4x32xf32>
    %c7_291 = arith.constant 7 : index
    %c0_292 = arith.constant 0 : index
    %c0_293 = arith.constant 0 : index
    %620 = vector.load %arg5[%c7_291, %c0_292, %c0_293] : memref<8x4x32xf32, #tpu.memory_space<vmem>>, vector<1x4x32xf32>
    %621 = vector.shape_cast %620 : vector<1x4x32xf32> to vector<4x32xf32>
    %622 = arith.mulf %611, %603 : vector<4x32xf32>
    %623 = arith.addf %621, %622 : vector<4x32xf32>
    %624 = math.tanh %623 : vector<4x32xf32>
    %cst_294 = arith.constant 1.000000e+00 : f32
    %625 = vector.broadcast %cst_294 : f32 to vector<4x32xf32>
    %626 = arith.subf %625, %619 : vector<4x32xf32>
    %627 = arith.mulf %626, %624 : vector<4x32xf32>
    %628 = arith.mulf %619, %553 : vector<4x32xf32>
    %629 = arith.addf %627, %628 : vector<4x32xf32>
    %c7_i32 = arith.constant 7 : i32
    %630 = arith.addi %14, %c7_i32 : i32
    %631 = vector.broadcast %630 : i32 to vector<4x1xi32>
    %632 = arith.cmpi slt, %631, %3 : vector<4x1xi32>
    %633 = vector.shape_cast %632 : vector<4x1xi1> to vector<4x1xi1>
    %634 = vector.broadcast %633 : vector<4x1xi1> to vector<4x32xi1>
    %635 = arith.select %634, %629, %553 : vector<4x32xi1>, vector<4x32xf32>
    %cst_295 = arith.constant 0.000000e+00 : f32
    %636 = vector.shape_cast %632 : vector<4x1xi1> to vector<4x1xi1>
    %637 = vector.broadcast %636 : vector<4x1xi1> to vector<4x32xi1>
    %638 = vector.broadcast %cst_295 : f32 to vector<4x32xf32>
    %639 = arith.select %637, %629, %638 : vector<4x32xi1>, vector<4x32xf32>
    %c0_296 = arith.constant 0 : index
    %c0_297 = arith.constant 0 : index
    %640 = vector.load %arg8[%c0_296, %c0_297] : memref<32x32xf32, #tpu.memory_space<vmem>>, vector<32x32xf32>
    %cst_298 = arith.constant dense<0.000000e+00> : vector<4x32xf32>
    %641 = tpu.matmul %639, %640, %cst_298 {dimension_numbers = #tpu.dot_dimension_numbers<[1], [0], [0], [1], [0, 0, 1, 1], [], []>} : vector<4x32xf32>, vector<32x32xf32>, vector<4x32xf32> -> vector<4x32xf32>
    %642 = vector.broadcast %10 : vector<1x32xf32> to vector<4x32xf32>
    %643 = arith.addf %641, %642 : vector<4x32xf32>
    %cst_299 = arith.constant 0.000000e+00 : f32
    %644 = vector.broadcast %cst_299 : f32 to vector<4x32xf32>
    %645 = arith.maximumf %643, %644 : vector<4x32xf32>
    %cst_300 = arith.constant dense<0.000000e+00> : vector<4xf32>
    %646 = vector.multi_reduction <add>, %645, %cst_300 [1] : vector<4x32xf32> to vector<4xf32>
    %647 = vector.shape_cast %646 : vector<4xf32> to vector<4x1xf32>
    %cst_301 = arith.constant 3.200000e+01 : f32
    %648 = vector.broadcast %cst_301 : f32 to vector<4x1xf32>
    %649 = arith.divf %647, %648 : vector<4x1xf32>
    %650 = vector.broadcast %649 : vector<4x1xf32> to vector<4x32xf32>
    %651 = arith.subf %645, %650 : vector<4x32xf32>
    %652 = arith.mulf %651, %651 : vector<4x32xf32>
    %cst_302 = arith.constant dense<0.000000e+00> : vector<4xf32>
    %653 = vector.multi_reduction <add>, %652, %cst_302 [1] : vector<4x32xf32> to vector<4xf32>
    %654 = vector.shape_cast %653 : vector<4xf32> to vector<4x1xf32>
    %cst_303 = arith.constant 3.200000e+01 : f32
    %655 = vector.broadcast %cst_303 : f32 to vector<4x1xf32>
    %656 = arith.divf %654, %655 : vector<4x1xf32>
    %657 = vector.broadcast %649 : vector<4x1xf32> to vector<4x32xf32>
    %658 = arith.subf %645, %657 : vector<4x32xf32>
    %cst_304 = arith.constant 9.99999974E-6 : f32
    %659 = vector.broadcast %cst_304 : f32 to vector<4x1xf32>
    %660 = arith.addf %656, %659 : vector<4x1xf32>
    %661 = math.rsqrt %660 : vector<4x1xf32>
    %662 = vector.broadcast %661 : vector<4x1xf32> to vector<4x32xf32>
    %663 = arith.mulf %658, %662 : vector<4x32xf32>
    %664 = vector.broadcast %11 : vector<1x32xf32> to vector<4x32xf32>
    %665 = arith.mulf %663, %664 : vector<4x32xf32>
    %666 = vector.broadcast %12 : vector<1x32xf32> to vector<4x32xf32>
    %667 = arith.addf %665, %666 : vector<4x32xf32>
    %c7_305 = arith.constant 7 : index
    %c0_306 = arith.constant 0 : index
    %c0_307 = arith.constant 0 : index
    %668 = vector.load %arg14[%c7_305, %c0_306, %c0_307] : memref<8x4x32xf32, #tpu.memory_space<vmem>>, vector<1x4x32xf32>
    %669 = vector.shape_cast %668 : vector<1x4x32xf32> to vector<4x32xf32>
    %670 = vector.shape_cast %667 : vector<4x32xf32> to vector<1x4x32xf32>
    tpu.vector_store %arg14[%c7_305, %c0_306, %c0_307], %670 {strides = array<i32>} : memref<8x4x32xf32, #tpu.memory_space<vmem>>, vector<1x4x32xf32>,
    %c0_308 = arith.constant 0 : index
    %c0_309 = arith.constant 0 : index
    %671 = vector.load %arg17[%c0_308, %c0_309] : memref<4x32xf32, #tpu.memory_space<vmem>>, vector<4x32xf32>
    tpu.vector_store %arg17[%c0_308, %c0_309], %635 {strides = array<i32>} : memref<4x32xf32, #tpu.memory_space<vmem>>, vector<4x32xf32>,
    %c0_i32_310 = arith.constant 0 : i32
    %672 = arith.cmpi eq, %arg1, %c0_i32_310 : i32
    %673 = arith.extui %672 : i1 to i32
    %c0_i32_311 = arith.constant 0 : i32
    %674 = arith.cmpi ne, %673, %c0_i32_311 : i32
    scf.if %674 {
      %c0_312 = arith.constant 0 : index
      %c0_313 = arith.constant 0 : index
      %675 = vector.load %arg15[%c0_312, %c0_313] : memref<4x32xf32, #tpu.memory_space<vmem>>, vector<4x32xf32>
      tpu.vector_store %arg15[%c0_312, %c0_313], %635 {strides = array<i32>} : memref<4x32xf32, #tpu.memory_space<vmem>>, vector<4x32xf32>,
      %c0_314 = arith.constant 0 : index
      %c0_315 = arith.constant 0 : index
      %676 = vector.load %arg12[%c0_314, %c0_315] : memref<32x16xf32, #tpu.memory_space<vmem>>, vector<32x16xf32>
      %cst_316 = arith.constant dense<0.000000e+00> : vector<4x16xf32>
      %677 = tpu.matmul %635, %676, %cst_316 {dimension_numbers = #tpu.dot_dimension_numbers<[1], [0], [0], [1], [0, 0, 1, 1], [], []>} : vector<4x32xf32>, vector<32x16xf32>, vector<4x16xf32> -> vector<4x16xf32>
      %c0_317 = arith.constant 0 : index
      %c0_318 = arith.constant 0 : index
      %678 = vector.load %arg13[%c0_317, %c0_318] : memref<1x16xf32, #tpu.memory_space<vmem>>, vector<1x16xf32>
      %679 = vector.broadcast %678 : vector<1x16xf32> to vector<4x16xf32>
      %680 = arith.addf %677, %679 : vector<4x16xf32>
      %c0_319 = arith.constant 0 : index
      %c0_320 = arith.constant 0 : index
      %681 = vector.load %arg16[%c0_319, %c0_320] : memref<4x16xf32, #tpu.memory_space<vmem>>, vector<4x16xf32>
      tpu.vector_store %arg16[%c0_319, %c0_320], %680 {strides = array<i32>} : memref<4x16xf32, #tpu.memory_space<vmem>>, vector<4x16xf32>,
    } else {
    }
    return
  }
  func.func @transform_0(%arg0: i32, %arg1: i32) -> (i32, i32) {
    %c0_i32 = arith.constant 0 : i32
    %c0_i32_0 = arith.constant 0 : i32
    return %arg0, %c0_i32 : i32, i32
  }
  func.func @transform_1(%arg0: i32, %arg1: i32) -> (i32, i32, i32) {
    %c0_i32 = arith.constant 0 : i32
    %c0_i32_0 = arith.constant 0 : i32
    return %arg1, %arg0, %c0_i32 : i32, i32, i32
  }
  func.func @transform_2(%arg0: i32, %arg1: i32) -> (i32, i32, i32) {
    %c0_i32 = arith.constant 0 : i32
    %c0_i32_0 = arith.constant 0 : i32
    return %arg1, %arg0, %c0_i32 : i32, i32, i32
  }
  func.func @transform_3(%arg0: i32, %arg1: i32) -> (i32, i32, i32) {
    %c0_i32 = arith.constant 0 : i32
    %c0_i32_0 = arith.constant 0 : i32
    return %arg1, %arg0, %c0_i32 : i32, i32, i32
  }
  func.func @transform_4(%arg0: i32, %arg1: i32) -> (i32, i32, i32) {
    %c0_i32 = arith.constant 0 : i32
    %c0_i32_0 = arith.constant 0 : i32
    %c0_i32_1 = arith.constant 0 : i32
    %c0_i32_2 = arith.constant 0 : i32
    return %c0_i32, %c0_i32_0, %c0_i32_1 : i32, i32, i32
  }
  func.func @transform_5(%arg0: i32, %arg1: i32) -> (i32, i32, i32) {
    %c0_i32 = arith.constant 0 : i32
    %c0_i32_0 = arith.constant 0 : i32
    %c0_i32_1 = arith.constant 0 : i32
    %c0_i32_2 = arith.constant 0 : i32
    return %c0_i32, %c0_i32_0, %c0_i32_1 : i32, i32, i32
  }
  func.func @transform_6(%arg0: i32, %arg1: i32) -> (i32, i32) {
    %c0_i32 = arith.constant 0 : i32
    %c0_i32_0 = arith.constant 0 : i32
    %c0_i32_1 = arith.constant 0 : i32
    return %c0_i32, %c0_i32_0 : i32, i32
  }
  func.func @transform_7(%arg0: i32, %arg1: i32) -> (i32, i32) {
    %c0_i32 = arith.constant 0 : i32
    %c0_i32_0 = arith.constant 0 : i32
    %c0_i32_1 = arith.constant 0 : i32
    return %c0_i32, %c0_i32_0 : i32, i32
  }
  func.func @transform_8(%arg0: i32, %arg1: i32) -> (i32, i32) {
    %c0_i32 = arith.constant 0 : i32
    %c0_i32_0 = arith.constant 0 : i32
    %c0_i32_1 = arith.constant 0 : i32
    return %c0_i32, %c0_i32_0 : i32, i32
  }
  func.func @transform_9(%arg0: i32, %arg1: i32) -> (i32, i32) {
    %c0_i32 = arith.constant 0 : i32
    %c0_i32_0 = arith.constant 0 : i32
    %c0_i32_1 = arith.constant 0 : i32
    return %c0_i32, %c0_i32_0 : i32, i32
  }
  func.func @transform_10(%arg0: i32, %arg1: i32) -> (i32, i32) {
    %c0_i32 = arith.constant 0 : i32
    %c0_i32_0 = arith.constant 0 : i32
    %c0_i32_1 = arith.constant 0 : i32
    return %c0_i32, %c0_i32_0 : i32, i32
  }
  func.func @transform_11(%arg0: i32, %arg1: i32) -> (i32, i32) {
    %c0_i32 = arith.constant 0 : i32
    %c0_i32_0 = arith.constant 0 : i32
    %c0_i32_1 = arith.constant 0 : i32
    return %c0_i32, %c0_i32_0 : i32, i32
  }
  func.func @transform_12(%arg0: i32, %arg1: i32) -> (i32, i32, i32) {
    %c0_i32 = arith.constant 0 : i32
    %c0_i32_0 = arith.constant 0 : i32
    return %arg1, %arg0, %c0_i32 : i32, i32, i32
  }
  func.func @transform_13(%arg0: i32, %arg1: i32) -> (i32, i32) {
    %c0_i32 = arith.constant 0 : i32
    %c0_i32_0 = arith.constant 0 : i32
    return %arg0, %c0_i32 : i32, i32
  }
  func.func @transform_14(%arg0: i32, %arg1: i32) -> (i32, i32) {
    %c0_i32 = arith.constant 0 : i32
    %c0_i32_0 = arith.constant 0 : i32
    return %arg0, %c0_i32 : i32, i32
  }
}

</mosaic_0001>

<llo_original>
// kernel: lang_module_forward.2
$region0: #{lang_module_forward.2}
  #allocation0 [shape = 'u32[]', space=smem, size = 0x4, offset = 0x4, fixed_abs, tag = 'smem constant byte address 0x4 - core index']
  #allocation1 [shape = 'u32[144,128]{1,0:T(1,128)}', space=vmem, size = 0x12000, scoped, tag = 'internal scratch']
  %s0 = inlined_call_operand.vmem [shape: f32[32,32], index: 0, kind: input, shape index: {}]
  %s1 = inlined_call_operand.vmem [shape: f32[32,96], index: 1, kind: input, shape index: {}]
  %s2 = inlined_call_operand.vmem [shape: f32[1,96], index: 2, kind: input, shape index: {}]
  %s3 = inlined_call_operand.vmem [shape: f32[32,32], index: 3, kind: output, shape index: {0}]
  %s4 = inlined_call_operand.vmem [shape: f32[32,32], index: 4, kind: output, shape index: {1}]
  %s5 = inlined_call_operand.vmem [shape: f32[32,32], index: 5, kind: output, shape index: {2}]
  %6 = xla_tuple %s3, %s4, %s5
  %s7 = sld [smem:[#allocation0]]
  $region38: #{lang_module_forward.2} parent=0
    _
  %s9 = ssub.s32 1, %s7
  %s10 = scalar_select 0, %s9, %s7
  // Predicated region
  $region2: #{lang_module_forward.2} parent=0 // pred_check
    _
  $region3: #{lang_module_forward.2} parent=0 // pred_check_branch
    %12 = sbr.rel (0) target = $region5
  $region4: #{lang_module_forward.2} parent=0 // pred_region
    _
  $region5: #{lang_module_forward.2} parent=0 // pred_fallthru
    _
  // Predicated region
  $region6: #{lang_module_forward.2} parent=0 // pred_check
    _
  $region7: #{lang_module_forward.2} parent=0 // pred_check_branch
    %14 = sbr.rel (0) target = $region9
  $region8: #{lang_module_forward.2} parent=0 // pred_region
    _
  $region9: #{lang_module_forward.2} parent=0 // pred_fallthru
    _
  // Predicated region
  $region10: #{lang_module_forward.2} parent=0 // pred_check
    _
  $region11: #{lang_module_forward.2} parent=0 // pred_check_branch
    %16 = sbr.rel (0) target = $region13
  $region12: #{lang_module_forward.2} parent=0 // pred_region
    _
  $region13: #{lang_module_forward.2} parent=0 // pred_fallthru
    _
  %v17 = vld [vmem:[%s0] sm:$0xff]
  %v18 = vld [vmem:[%s0 + $0x8] sm:$0xff]
  %v19 = vld [vmem:[%s0 + $0x10] sm:$0xff]
  %v20 = vld [vmem:[%s0 + $0x18] sm:$0xff]
  %v21 = vld [vmem:[%s1] sm:$0xff]
  %v22 = vld [vmem:[%s1 + $0x8] sm:$0xff]
  %v23 = vld [vmem:[%s1 + $0x10] sm:$0xff]
  %v24 = vld [vmem:[%s1 + $0x18] sm:$0xff]
  %v25 = vld [vmem:[%s2] sm:$0x1]
  %v27 = vlaneseq
  %v28 = vshrl.u32 %v27, 7
  %v29 = vsub.s32 0, %v28
  %v30 = vrot.slane %v25, %v29
  %vm32 = vcmask 261120
  %v34 = vsel %vm32, %v17, 0
  %v37 = vsel %vm32, %v18, 0
  %v40 = vsel %vm32, %v19, 0
  %v43 = vsel %vm32, %v20, 0
  %45 = vmatprep.subr.mxu0 0.0
  %46 = vmatpush1.msra.mxu0 %v21
  %47 = vmatprep.subr.mxu0 0.0
  %48 = vmatpush1.msra.mxu0 %v22
  %49 = vmatprep.subr.mxu0 0.0
  %50 = vmatpush1.msra.mxu0 %v23
  %51 = vmatprep.subr.mxu0 0.0
  %52 = vmatpush1.msra.mxu0 %v24
  %53 = vmatprep.subr.mxu0 0.0
  %54 = vmatpush1.msra.mxu0 0.0
  %55 = vmatprep.subr.mxu0 0.0
  %56 = vmatpush1.msra.mxu0 0.0
  %57 = vmatprep.subr.mxu0 0.0
  %58 = vmatpush1.msra.mxu0 0.0
  %59 = vmatprep.subr.mxu0 0.0
  %60 = vmatpush1.msra.mxu0 0.0
  %61 = vmatprep.subr.mxu0 0.0
  %62 = vmatpush1.msra.mxu0 0.0
  %63 = vmatprep.subr.mxu0 0.0
  %64 = vmatpush1.msra.mxu0 0.0
  %65 = vmatprep.subr.mxu0 0.0
  %66 = vmatpush1.msra.mxu0 0.0
  %67 = vmatprep.subr.mxu0 0.0
  %68 = vmatpush1.msra.mxu0 0.0
  %69 = vmatprep.subr.mxu0 0.0
  %70 = vmatpush1.msra.mxu0 0.0
  %71 = vmatprep.subr.mxu0 0.0
  %72 = vmatpush1.msra.mxu0 0.0
  %73 = vmatprep.subr.mxu0 0.0
  %74 = vmatpush1.msra.mxu0 0.0
  %75 = vmatprep.subr.mxu0 0.0
  %76 = vmatpush1.msra.mxu0 0.0
  %77 = vmatprep.subr.mxu0 0.0
  %78 = vmatpush1.msra.mxu0 0.0
  %79 = vmatprep.subr.mxu0 0.0
  %80 = vmatpush1.msra.mxu0 0.0
  %81 = vmatprep.subr.mxu0 0.0
  %82 = vmatpush1.msra.mxu0 0.0
  %83 = vmatprep.subr.mxu0 0.0
  %84 = vmatpush1.msra.mxu0 0.0
  %85 = vmatprep.subr.mxu0 0.0
  %86 = vmatpush1.msra.mxu0 0.0
  %87 = vmatprep.subr.mxu0 0.0
  %88 = vmatpush1.msra.mxu0 0.0
  %89 = vmatprep.subr.mxu0 0.0
  %90 = vmatpush1.msra.mxu0 0.0
  %91 = vmatprep.subr.mxu0 0.0
  %92 = vmatpush1.msra.mxu0 0.0
  %93 = vmatprep.subr.mxu0 0.0
  %94 = vmatpush1.msra.mxu0 0.0
  %95 = vmatprep.subr.mxu0 0.0
  %96 = vmatpush1.msra.mxu0 0.0
  %97 = vmatprep.subr.mxu0 0.0
  %98 = vmatpush1.msra.mxu0 0.0
  %99 = vmatprep.subr.mxu0 0.0
  %100 = vmatpush1.msra.mxu0 0.0
  %101 = vmatprep.subr.mxu0 0.0
  %102 = vmatpush1.msra.mxu0 0.0
  %103 = vmatprep.subr.mxu0 0.0
  %104 = vmatpush1.msra.mxu0 0.0
  %105 = vmatprep.subr.mxu0 0.0
  %106 = vmatpush1.msra.mxu0 0.0
  %107 = vmatprep.subr.mxu0 0.0
  %108 = vmatpush1.msra.mxu0 0.0
  %109 = vmatprep.mubr.f32.mxu0 0.0
  %110 = vmatmul.mubr.f32.gmra.mrb[0].mxu0 %v34
  %v111 = vpop.f32.mrb[0].mxu0
  %v112 = vadd.f32 %v30, %v111
  %v113 = vpop.f32.mrb[0].mxu0
  %114 = vmatprep.mubr.f32.mxu0 0.0
  %115 = vmatmul.mubr.f32.gmra.mrb[0].mxu0 %v37
  %v116 = vpop.f32.mrb[0].mxu0
  %v117 = vadd.f32 %v30, %v116
  %v118 = vpop.f32.mrb[0].mxu0
  %119 = vmatprep.mubr.f32.mxu0 0.0
  %120 = vmatmul.mubr.f32.gmra.mrb[0].mxu0 %v40
  %v121 = vpop.f32.mrb[0].mxu0
  %v122 = vadd.f32 %v30, %v121
  %v123 = vpop.f32.mrb[0].mxu0
  %124 = vmatprep.mubr.f32.mxu0 0.0
  %125 = vmatmul.mubr.f32.gmra.mrb[0].mxu0 %v43
  %v126 = vpop.f32.mrb[0].mxu0
  %v127 = vadd.f32 %v30, %v126
  %v128 = vpop.f32.mrb[0].mxu0
  %129 = vdwg.mxu0
  %130 = vst.msk [vmem:[%s3] sm:$0xff] %vm32, %v112
  %131 = vst.msk [vmem:[%s3 + $0x8] sm:$0xff] %vm32, %v117
  %132 = vst.msk [vmem:[%s3 + $0x10] sm:$0xff] %vm32, %v122
  %133 = vst.msk [vmem:[%s3 + $0x18] sm:$0xff] %vm32, %v127
  %138 = vrot.lane.b32.xlu0 %v112, 96
  %v139 = vpop.permute.xlu0 %138
  %140 = vrot.lane.b32.xlu0 %v117, 96
  %v141 = vpop.permute.xlu0 %140
  %142 = vrot.lane.b32.xlu0 %v122, 96
  %v143 = vpop.permute.xlu0 %142
  %144 = vrot.lane.b32.xlu0 %v127, 96
  %v145 = vpop.permute.xlu0 %144
  %150 = vst.msk [vmem:[%s4] sm:$0xff] %vm32, %v139
  %151 = vst.msk [vmem:[%s4 + $0x8] sm:$0xff] %vm32, %v141
  %152 = vst.msk [vmem:[%s4 + $0x10] sm:$0xff] %vm32, %v143
  %153 = vst.msk [vmem:[%s4 + $0x18] sm:$0xff] %vm32, %v145
  %154 = vrot.lane.b32.xlu0 %v112, 64
  %v155 = vpop.permute.xlu0 %154
  %156 = vrot.lane.b32.xlu0 %v117, 64
  %v157 = vpop.permute.xlu0 %156
  %158 = vrot.lane.b32.xlu0 %v122, 64
  %v159 = vpop.permute.xlu0 %158
  %160 = vrot.lane.b32.xlu0 %v127, 64
  %v161 = vpop.permute.xlu0 %160
  %166 = vst.msk [vmem:[%s5] sm:$0xff] %vm32, %v155
  %167 = vst.msk [vmem:[%s5 + $0x8] sm:$0xff] %vm32, %v157
  %168 = vst.msk [vmem:[%s5 + $0x10] sm:$0xff] %vm32, %v159
  %169 = vst.msk [vmem:[%s5 + $0x18] sm:$0xff] %vm32, %v161
  // Predicated region
  $region14: #{lang_module_forward.2} parent=0 // pred_check
    _
  $region15: #{lang_module_forward.2} parent=0 // pred_check_branch
    %171 = sbr.rel (0) target = $region17
  $region16: #{lang_module_forward.2} parent=0 // pred_region
    _
  $region17: #{lang_module_forward.2} parent=0 // pred_fallthru
    _
  // Predicated region
  $region18: #{lang_module_forward.2} parent=0 // pred_check
    _
  $region19: #{lang_module_forward.2} parent=0 // pred_check_branch
    %173 = sbr.rel (0) target = $region21
  $region20: #{lang_module_forward.2} parent=0 // pred_region
    _
  $region21: #{lang_module_forward.2} parent=0 // pred_fallthru
    _
  // Predicated region
  $region22: #{lang_module_forward.2} parent=0 // pred_check
    _
  $region23: #{lang_module_forward.2} parent=0 // pred_check_branch
    %175 = sbr.rel (0) target = $region25
  $region24: #{lang_module_forward.2} parent=0 // pred_region
    _
  $region25: #{lang_module_forward.2} parent=0 // pred_fallthru
    _
  // Predicated region
  $region26: #{lang_module_forward.2} parent=0 // pred_check
    _
  $region27: #{lang_module_forward.2} parent=0 // pred_check_branch
    %177 = sbr.rel (0) target = $region29
  $region28: #{lang_module_forward.2} parent=0 // pred_region
    _
  $region29: #{lang_module_forward.2} parent=0 // pred_fallthru
    _
  // Predicated region
  $region30: #{lang_module_forward.2} parent=0 // pred_check
    _
  $region31: #{lang_module_forward.2} parent=0 // pred_check_branch
    %179 = sbr.rel (0) target = $region33
  $region32: #{lang_module_forward.2} parent=0 // pred_region
    _
  $region33: #{lang_module_forward.2} parent=0 // pred_fallthru
    _
  // Predicated region
  $region34: #{lang_module_forward.2} parent=0 // pred_check
    _
  $region35: #{lang_module_forward.2} parent=0 // pred_check_branch
    %181 = sbr.rel (0) target = $region37
  $region36: #{lang_module_forward.2} parent=0 // pred_region
    _
  $region37: #{lang_module_forward.2} parent=0 // pred_fallthru
    _

// kernel: lang_module_forward.3
$region0: #{lang_module_forward.3}
  #allocation0 [shape = 'u32[]', space=smem, size = 0x4, offset = 0x4, fixed_abs, tag = 'smem constant byte address 0x4 - core index']
  #allocation1 [shape = 'u32[144,128]{1,0:T(1,128)}', space=vmem, size = 0x12000, scoped, tag = 'internal scratch']
  #allocation2 [shape = 'f32[4,32]{1,0:T(4,128)}', space=vmem, size = 0x800, scoped, tag = 'scratch operand']
  %s0 = inlined_call_operand.vmem [shape: s32[4,1], index: 0, kind: input, shape index: {}]
  %s1 = inlined_call_operand.vmem [shape: f32[8,4,32], index: 1, kind: input, shape index: {}]
  %s2 = inlined_call_operand.vmem [shape: f32[8,4,32], index: 2, kind: input, shape index: {}]
  %s3 = inlined_call_operand.vmem [shape: f32[8,4,32], index: 3, kind: input, shape index: {}]
  %s4 = inlined_call_operand.vmem [shape: f32[3,32,32], index: 4, kind: input, shape index: {}]
  %s5 = inlined_call_operand.vmem [shape: f32[3,1,32], index: 5, kind: input, shape index: {}]
  %s6 = inlined_call_operand.vmem [shape: f32[32,32], index: 6, kind: input, shape index: {}]
  %s7 = inlined_call_operand.hbm [shape: f32[1,32], index: 7, kind: input, shape index: {}]
  %s8 = inlined_call_operand.vmem [shape: f32[1,32], index: 8, kind: input, shape index: {}]
  %s9 = inlined_call_operand.vmem [shape: f32[1,32], index: 9, kind: input, shape index: {}]
  %s10 = inlined_call_operand.vmem [shape: f32[32,16], index: 10, kind: input, shape index: {}]
  %s11 = inlined_call_operand.hbm [shape: f32[1,16], index: 11, kind: input, shape index: {}]
  %s12 = inlined_call_operand.vmem [shape: f32[8,4,32], index: 12, kind: output, shape index: {0}]
  %s13 = inlined_call_operand.hbm [shape: f32[4,32], index: 13, kind: output, shape index: {1}]
  %s14 = inlined_call_operand.hbm [shape: f32[4,16], index: 14, kind: output, shape index: {2}]
  %15 = xla_tuple %s12, %s13, %s14
  %s16 = sld [smem:[#allocation0]]
  $region90: #{lang_module_forward.3} parent=0
    _
  %s18 = ssub.s32 1, %s16
  %s19 = scalar_select 0, %s18, %s16
  $region1: #{lang_module_forward.3} parent=0
    #allocation3 [shape = 'u8[512]{0}', space=vmem, size = 0x400, scoped, tag = 'input window, operand 7, single buffered']
    #allocation4 [shape = 's32[1]{0}', space=sflag, size = 0x4, scoped, tag = 'scoped memory for lang_module_forward.3']
    #allocation5 [shape = 's32[1]{0}', space=sflag, size = 0x4, scoped, tag = 'scoped memory for lang_module_forward.3']
    #allocation6 [shape = 'u8[512]{0}', space=vmem, size = 0x400, scoped, tag = 'input window, operand 11, single buffered']
    #allocation7 [shape = 's32[1]{0}', space=sflag, size = 0x4, scoped, tag = 'scoped memory for lang_module_forward.3']
    #allocation8 [shape = 'u8[2048]{0}', space=vmem, size = 0x800, scoped, tag = 'output window, operand 1, single buffered']
    #allocation9 [shape = 'u8[2048]{0}', space=vmem, size = 0x800, scoped, tag = 'output window, operand 2, single buffered']
    #allocation10 [shape = 's32[1]{0}', space=sflag, size = 0x4, scoped, tag = 'scoped memory for lang_module_forward.3']
    %20 = vsyncpa [#allocation4], 0
    %21 = vsyncpa [#allocation7], 0
    %22 = vsyncpa [#allocation5], 0
    %23 = vsyncpa [#allocation10], 0
    // Predicated region
    $region2: #{lang_module_forward.3} parent=1 // pred_check
      _
    $region3: #{lang_module_forward.3} parent=1 // pred_check_branch
      %25 = sbr.rel (0) target = $region5
    $region4: #{lang_module_forward.3} parent=1 // pred_region
      _
    $region5: #{lang_module_forward.3} parent=1 // pred_fallthru
      _
    // Predicated region
    $region6: #{lang_module_forward.3} parent=1 // pred_check
      _
    $region7: #{lang_module_forward.3} parent=1 // pred_check_branch
      %27 = sbr.rel (0) target = $region9
    $region8: #{lang_module_forward.3} parent=1 // pred_region
      _
    $region9: #{lang_module_forward.3} parent=1 // pred_fallthru
      _
    // Predicated region
    $region10: #{lang_module_forward.3} parent=1 // pred_check
      _
    $region11: #{lang_module_forward.3} parent=1 // pred_check_branch
      %29 = sbr.rel (0) target = $region13
    $region12: #{lang_module_forward.3} parent=1 // pred_region
      _
    $region13: #{lang_module_forward.3} parent=1 // pred_fallthru
      _
    // Predicated region
    $region14: #{lang_module_forward.3} parent=1 // pred_check
      _
    $region15: #{lang_module_forward.3} parent=1 // pred_check_branch
      %31 = sbr.rel (0) target = $region17
    $region16: #{lang_module_forward.3} parent=1 // pred_region
      _
    $region17: #{lang_module_forward.3} parent=1 // pred_fallthru
      _
    // Predicated region
    $region18: #{lang_module_forward.3} parent=1 // pred_check
      _
    $region19: #{lang_module_forward.3} parent=1 // pred_check_branch
      %33 = sbr.rel (0) target = $region21
    $region20: #{lang_module_forward.3} parent=1 // pred_region
      _
    $region21: #{lang_module_forward.3} parent=1 // pred_fallthru
      _
    // Predicated region
    $region22: #{lang_module_forward.3} parent=1 // pred_check
      _
    $region23: #{lang_module_forward.3} parent=1 // pred_check_branch
      %35 = sbr.rel (0) target = $region25
    $region24: #{lang_module_forward.3} parent=1 // pred_region
      _
    $region25: #{lang_module_forward.3} parent=1 // pred_fallthru
      _
    // Predicated region
    $region26: #{lang_module_forward.3} parent=1 // pred_check
      _
    $region27: #{lang_module_forward.3} parent=1 // pred_check_branch
      %37 = sbr.rel (0) target = $region29
    $region28: #{lang_module_forward.3} parent=1 // pred_region
      _
    $region29: #{lang_module_forward.3} parent=1 // pred_fallthru
      _
    // Predicated region
    $region30: #{lang_module_forward.3} parent=1 // pred_check
      _
    $region31: #{lang_module_forward.3} parent=1 // pred_check_branch
      %39 = sbr.rel (0) target = $region33
    $region32: #{lang_module_forward.3} parent=1 // pred_region
      %s41 = ssub.s32 16, 16
      %42 = vsyncadd [#allocation4], %s41
      %s44 = sshll.u32 [#allocation3], 4
      %s45 = int_to_ptr.vmem [resolvable:$true] %s44
      %47 = dma.hbm_to_vmem [thread:$0]  %s7, 16, %s45, [#allocation4]
    $region33: #{lang_module_forward.3} parent=1 // pred_fallthru
      _
    // Predicated region
    $region34: #{lang_module_forward.3} parent=1 // pred_check
      _
    $region35: #{lang_module_forward.3} parent=1 // pred_check_branch
      %49 = sbr.rel (0) target = $region37
    $region36: #{lang_module_forward.3} parent=1 // pred_region
      _
    $region37: #{lang_module_forward.3} parent=1 // pred_fallthru
      _
    // Predicated region
    $region38: #{lang_module_forward.3} parent=1 // pred_check
      _
    $region39: #{lang_module_forward.3} parent=1 // pred_check_branch
      %51 = sbr.rel (0) target = $region41
    $region40: #{lang_module_forward.3} parent=1 // pred_region
      _
    $region41: #{lang_module_forward.3} parent=1 // pred_fallthru
      _
    // Predicated region
    $region42: #{lang_module_forward.3} parent=1 // pred_check
      _
    $region43: #{lang_module_forward.3} parent=1 // pred_check_branch
      %53 = sbr.rel (0) target = $region45
    $region44: #{lang_module_forward.3} parent=1 // pred_region
      _
    $region45: #{lang_module_forward.3} parent=1 // pred_fallthru
      _
    // Predicated region
    $region46: #{lang_module_forward.3} parent=1 // pred_check
      _
    $region47: #{lang_module_forward.3} parent=1 // pred_check_branch
      %55 = sbr.rel (0) target = $region49
    $region48: #{lang_module_forward.3} parent=1 // pred_region
      %s57 = ssub.s32 16, 16
      %58 = vsyncadd [#allocation7], %s57
      %s60 = sshll.u32 [#allocation6], 4
      %s61 = int_to_ptr.vmem [resolvable:$true] %s60
      %63 = dma.hbm_to_vmem [thread:$0]  %s11, 16, %s61, [#allocation7]
    $region49: #{lang_module_forward.3} parent=1 // pred_fallthru
      _
    // Predicated region
    $region50: #{lang_module_forward.3} parent=1 // pred_check
      _
    $region51: #{lang_module_forward.3} parent=1 // pred_check_branch
      %65 = sbr.rel (0) target = $region53
    $region52: #{lang_module_forward.3} parent=1 // pred_region
      %66 = dma.done [#allocation4], 16
    $region53: #{lang_module_forward.3} parent=1 // pred_fallthru
      _
    // Predicated region
    $region54: #{lang_module_forward.3} parent=1 // pred_check
      _
    $region55: #{lang_module_forward.3} parent=1 // pred_check_branch
      %68 = sbr.rel (0) target = $region57
    $region56: #{lang_module_forward.3} parent=1 // pred_region
      %69 = dma.done [#allocation7], 16
    $region57: #{lang_module_forward.3} parent=1 // pred_fallthru
      _
    %p70 = scmp.eq.s32.totalorder 0, 0
    // Predicated region
    $region58: #{lang_module_forward.3} parent=1 // pred_check
      %p71 = pneg %p70
    $region59: #{lang_module_forward.3} parent=1 // pred_check_branch
      %73 = sbr.rel (%p71) target = $region61
    $region60: #{lang_module_forward.3} parent=1 // pred_region
      %vm74 = vcmask 257024
      %75 = vst.msk [vmem:[#allocation2] sm:$0xf] %vm74, 0.0
    $region61: #{lang_module_forward.3} parent=1 // pred_fallthru
      _
    %v76 = vld [vmem:[%s0] sm:$0xf]
    %v77 = vld [vmem:[%s5] sm:$0x1]
    %s78 = scalar_lea.vmem %s5, 1
    %v79 = vld [vmem:[%s78] sm:$0x1]
    %s80 = scalar_lea.vmem %s5, 2
    %v81 = vld [vmem:[%s80] sm:$0x1]
    %v82 = vld [vmem:[#allocation3] sm:$0x1]
    %v83 = vld [vmem:[%s8] sm:$0x1]
    %v84 = vld [vmem:[%s9] sm:$0x1]
    %v85 = vld [vmem:[#allocation2] sm:$0xf]
    %s86 = smul.u32 0, 8
    %v87 = vld [vmem:[%s4] sm:$0xff]
    %v88 = vld [vmem:[%s4 + $0x8] sm:$0xff]
    %v89 = vld [vmem:[%s4 + $0x10] sm:$0xff]
    %v90 = vld [vmem:[%s4 + $0x18] sm:$0xff]
    %v92 = vlaneseq
    %v93 = vshrl.u32 %v92, 7
    %v94 = vsub.s32 0, %v93
    %v95 = vrot.slane %v77, %v94
    %vm97 = vcmask 261120
    %v99 = vsel %vm97, %v85, 0
    %101 = vmatprep.subr.mxu0 0.0
    %102 = vmatpush1.msra.mxu0 %v87
    %103 = vmatprep.subr.mxu0 0.0
    %104 = vmatpush1.msra.mxu0 %v88
    %105 = vmatprep.subr.mxu0 0.0
    %106 = vmatpush1.msra.mxu0 %v89
    %107 = vmatprep.subr.mxu0 0.0
    %108 = vmatpush1.msra.mxu0 %v90
    %109 = vmatprep.subr.mxu0 0.0
    %110 = vmatpush1.msra.mxu0 0.0
    %111 = vmatprep.subr.mxu0 0.0
    %112 = vmatpush1.msra.mxu0 0.0
    %113 = vmatprep.subr.mxu0 0.0
    %114 = vmatpush1.msra.mxu0 0.0
    %115 = vmatprep.subr.mxu0 0.0
    %116 = vmatpush1.msra.mxu0 0.0
    %117 = vmatprep.subr.mxu0 0.0
    %118 = vmatpush1.msra.mxu0 0.0
    %119 = vmatprep.subr.mxu0 0.0
    %120 = vmatpush1.msra.mxu0 0.0
    %121 = vmatprep.subr.mxu0 0.0
    %122 = vmatpush1.msra.mxu0 0.0
    %123 = vmatprep.subr.mxu0 0.0
    %124 = vmatpush1.msra.mxu0 0.0
    %125 = vmatprep.subr.mxu0 0.0
    %126 = vmatpush1.msra.mxu0 0.0
    %127 = vmatprep.subr.mxu0 0.0
    %128 = vmatpush1.msra.mxu0 0.0
    %129 = vmatprep.subr.mxu0 0.0
    %130 = vmatpush1.msra.mxu0 0.0
    %131 = vmatprep.subr.mxu0 0.0
    %132 = vmatpush1.msra.mxu0 0.0
    %133 = vmatprep.subr.mxu0 0.0
    %134 = vmatpush1.msra.mxu0 0.0
    %135 = vmatprep.subr.mxu0 0.0
    %136 = vmatpush1.msra.mxu0 0.0
    %137 = vmatprep.subr.mxu0 0.0
    %138 = vmatpush1.msra.mxu0 0.0
    %139 = vmatprep.subr.mxu0 0.0
    %140 = vmatpush1.msra.mxu0 0.0
    %141 = vmatprep.subr.mxu0 0.0
    %142 = vmatpush1.msra.mxu0 0.0
    %143 = vmatprep.subr.mxu0 0.0
    %144 = vmatpush1.msra.mxu0 0.0
    %145 = vmatprep.subr.mxu0 0.0
    %146 = vmatpush1.msra.mxu0 0.0
    %147 = vmatprep.subr.mxu0 0.0
    %148 = vmatpush1.msra.mxu0 0.0
    %149 = vmatprep.subr.mxu0 0.0
    %150 = vmatpush1.msra.mxu0 0.0
    %151 = vmatprep.subr.mxu0 0.0
    %152 = vmatpush1.msra.mxu0 0.0
    %153 = vmatprep.subr.mxu0 0.0
    %154 = vmatpush1.msra.mxu0 0.0
    %155 = vmatprep.subr.mxu0 0.0
    %156 = vmatpush1.msra.mxu0 0.0
    %157 = vmatprep.subr.mxu0 0.0
    %158 = vmatpush1.msra.mxu0 0.0
    %159 = vmatprep.subr.mxu0 0.0
    %160 = vmatpush1.msra.mxu0 0.0
    %161 = vmatprep.subr.mxu0 0.0
    %162 = vmatpush1.msra.mxu0 0.0
    %163 = vmatprep.subr.mxu0 0.0
    %164 = vmatpush1.msra.mxu0 0.0
    %165 = vmatprep.mubr.f32.mxu0 0.0
    %166 = vmatmul.mubr.f32.gmra.mrb[0].mxu0 %v99
    %v167 = vpop.f32.mrb[0].mxu0
    %v168 = vadd.f32 %v95, %v167
    %v169 = vpop.f32.mrb[0].mxu0
    %170 = vdwg.mxu0
    %s171 = scalar_lea.vmem %s4, 32
    %v172 = vld [vmem:[%s171] sm:$0xff]
    %v173 = vld [vmem:[%s171 + $0x8] sm:$0xff]
    %v174 = vld [vmem:[%s171 + $0x10] sm:$0xff]
    %v175 = vld [vmem:[%s171 + $0x18] sm:$0xff]
    %v177 = vlaneseq
    %v178 = vshrl.u32 %v177, 7
    %v179 = vsub.s32 0, %v178
    %v180 = vrot.slane %v79, %v179
    %182 = vmatprep.subr.mxu0 0.0
    %183 = vmatpush1.msra.mxu0 %v172
    %184 = vmatprep.subr.mxu0 0.0
    %185 = vmatpush1.msra.mxu0 %v173
    %186 = vmatprep.subr.mxu0 0.0
    %187 = vmatpush1.msra.mxu0 %v174
    %188 = vmatprep.subr.mxu0 0.0
    %189 = vmatpush1.msra.mxu0 %v175
    %190 = vmatprep.subr.mxu0 0.0
    %191 = vmatpush1.msra.mxu0 0.0
    %192 = vmatprep.subr.mxu0 0.0
    %193 = vmatpush1.msra.mxu0 0.0
    %194 = vmatprep.subr.mxu0 0.0
    %195 = vmatpush1.msra.mxu0 0.0
    %196 = vmatprep.subr.mxu0 0.0
    %197 = vmatpush1.msra.mxu0 0.0
    %198 = vmatprep.subr.mxu0 0.0
    %199 = vmatpush1.msra.mxu0 0.0
    %200 = vmatprep.subr.mxu0 0.0
    %201 = vmatpush1.msra.mxu0 0.0
    %202 = vmatprep.subr.mxu0 0.0
    %203 = vmatpush1.msra.mxu0 0.0
    %204 = vmatprep.subr.mxu0 0.0
    %205 = vmatpush1.msra.mxu0 0.0
    %206 = vmatprep.subr.mxu0 0.0
    %207 = vmatpush1.msra.mxu0 0.0
    %208 = vmatprep.subr.mxu0 0.0
    %209 = vmatpush1.msra.mxu0 0.0
    %210 = vmatprep.subr.mxu0 0.0
    %211 = vmatpush1.msra.mxu0 0.0
    %212 = vmatprep.subr.mxu0 0.0
    %213 = vmatpush1.msra.mxu0 0.0
    %214 = vmatprep.subr.mxu0 0.0
    %215 = vmatpush1.msra.mxu0 0.0
    %216 = vmatprep.subr.mxu0 0.0
    %217 = vmatpush1.msra.mxu0 0.0
    %218 = vmatprep.subr.mxu0 0.0
    %219 = vmatpush1.msra.mxu0 0.0
    %220 = vmatprep.subr.mxu0 0.0
    %221 = vmatpush1.msra.mxu0 0.0
    %222 = vmatprep.subr.mxu0 0.0
    %223 = vmatpush1.msra.mxu0 0.0
    %224 = vmatprep.subr.mxu0 0.0
    %225 = vmatpush1.msra.mxu0 0.0
    %226 = vmatprep.subr.mxu0 0.0
    %227 = vmatpush1.msra.mxu0 0.0
    %228 = vmatprep.subr.mxu0 0.0
    %229 = vmatpush1.msra.mxu0 0.0
    %230 = vmatprep.subr.mxu0 0.0
    %231 = vmatpush1.msra.mxu0 0.0
    %232 = vmatprep.subr.mxu0 0.0
    %233 = vmatpush1.msra.mxu0 0.0
    %234 = vmatprep.subr.mxu0 0.0
    %235 = vmatpush1.msra.mxu0 0.0
    %236 = vmatprep.subr.mxu0 0.0
    %237 = vmatpush1.msra.mxu0 0.0
    %238 = vmatprep.subr.mxu0 0.0
    %239 = vmatpush1.msra.mxu0 0.0
    %240 = vmatprep.subr.mxu0 0.0
    %241 = vmatpush1.msra.mxu0 0.0
    %242 = vmatprep.subr.mxu0 0.0
    %243 = vmatpush1.msra.mxu0 0.0
    %244 = vmatprep.subr.mxu0 0.0
    %245 = vmatpush1.msra.mxu0 0.0
    %246 = vmatprep.mubr.f32.mxu0 0.0
    %247 = vmatmul.mubr.f32.gmra.mrb[0].mxu0 %v99
    %v248 = vpop.f32.mrb[0].mxu0
    %v249 = vadd.f32 %v180, %v248
    %v250 = vpop.f32.mrb[0].mxu0
    %251 = vdwg.mxu0
    %s252 = scalar_lea.vmem %s4, 64
    %v253 = vld [vmem:[%s252] sm:$0xff]
    %v254 = vld [vmem:[%s252 + $0x8] sm:$0xff]
    %v255 = vld [vmem:[%s252 + $0x10] sm:$0xff]
    %v256 = vld [vmem:[%s252 + $0x18] sm:$0xff]
    %v258 = vlaneseq
    %v259 = vshrl.u32 %v258, 7
    %v260 = vsub.s32 0, %v259
    %v261 = vrot.slane %v81, %v260
    %263 = vmatprep.subr.mxu0 0.0
    %264 = vmatpush1.msra.mxu0 %v253
    %265 = vmatprep.subr.mxu0 0.0
    %266 = vmatpush1.msra.mxu0 %v254
    %267 = vmatprep.subr.mxu0 0.0
    %268 = vmatpush1.msra.mxu0 %v255
    %269 = vmatprep.subr.mxu0 0.0
    %270 = vmatpush1.msra.mxu0 %v256
    %271 = vmatprep.subr.mxu0 0.0
    %272 = vmatpush1.msra.mxu0 0.0
    %273 = vmatprep.subr.mxu0 0.0
    %274 = vmatpush1.msra.mxu0 0.0
    %275 = vmatprep.subr.mxu0 0.0
    %276 = vmatpush1.msra.mxu0 0.0
    %277 = vmatprep.subr.mxu0 0.0
    %278 = vmatpush1.msra.mxu0 0.0
    %279 = vmatprep.subr.mxu0 0.0
    %280 = vmatpush1.msra.mxu0 0.0
    %281 = vmatprep.subr.mxu0 0.0
    %282 = vmatpush1.msra.mxu0 0.0
    %283 = vmatprep.subr.mxu0 0.0
    %284 = vmatpush1.msra.mxu0 0.0
    %285 = vmatprep.subr.mxu0 0.0
    %286 = vmatpush1.msra.mxu0 0.0
    %287 = vmatprep.subr.mxu0 0.0
    %288 = vmatpush1.msra.mxu0 0.0
    %289 = vmatprep.subr.mxu0 0.0
    %290 = vmatpush1.msra.mxu0 0.0
    %291 = vmatprep.subr.mxu0 0.0
    %292 = vmatpush1.msra.mxu0 0.0
    %293 = vmatprep.subr.mxu0 0.0
    %294 = vmatpush1.msra.mxu0 0.0
    %295 = vmatprep.subr.mxu0 0.0
    %296 = vmatpush1.msra.mxu0 0.0
    %297 = vmatprep.subr.mxu0 0.0
    %298 = vmatpush1.msra.mxu0 0.0
    %299 = vmatprep.subr.mxu0 0.0
    %300 = vmatpush1.msra.mxu0 0.0
    %301 = vmatprep.subr.mxu0 0.0
    %302 = vmatpush1.msra.mxu0 0.0
    %303 = vmatprep.subr.mxu0 0.0
    %304 = vmatpush1.msra.mxu0 0.0
    %305 = vmatprep.subr.mxu0 0.0
    %306 = vmatpush1.msra.mxu0 0.0
    %307 = vmatprep.subr.mxu0 0.0
    %308 = vmatpush1.msra.mxu0 0.0
    %309 = vmatprep.subr.mxu0 0.0
    %310 = vmatpush1.msra.mxu0 0.0
    %311 = vmatprep.subr.mxu0 0.0
    %312 = vmatpush1.msra.mxu0 0.0
    %313 = vmatprep.subr.mxu0 0.0
    %314 = vmatpush1.msra.mxu0 0.0
    %315 = vmatprep.subr.mxu0 0.0
    %316 = vmatpush1.msra.mxu0 0.0
    %317 = vmatprep.subr.mxu0 0.0
    %318 = vmatpush1.msra.mxu0 0.0
    %319 = vmatprep.subr.mxu0 0.0
    %320 = vmatpush1.msra.mxu0 0.0
    %321 = vmatprep.subr.mxu0 0.0
    %322 = vmatpush1.msra.mxu0 0.0
    %323 = vmatprep.subr.mxu0 0.0
    %324 = vmatpush1.msra.mxu0 0.0
    %325 = vmatprep.subr.mxu0 0.0
    %326 = vmatpush1.msra.mxu0 0.0
    %327 = vmatprep.mubr.f32.mxu0 0.0
    %328 = vmatmul.mubr.f32.gmra.mrb[0].mxu0 %v99
    %v329 = vpop.f32.mrb[0].mxu0
    %v330 = vadd.f32 %v261, %v329
    %v331 = vpop.f32.mrb[0].mxu0
    %332 = vdwg.mxu0
    %v333 = vld [vmem:[%s1] sm:$0xf]
    %v334 = vadd.f32 %v333, %v168
    %v335 = vxor.u32 %v334, 2147483648
    %v336 = vmul.f32 %v335, 1.442695
    %v337 = vpow.pop %v336
    %v338 = vadd.f32 %v337, 1.0
    %v339 = vrcp.pop %v338
    %v340 = vmul.f32 1.0, %v339
    %v341 = vld [vmem:[%s2] sm:$0xf]
    %v342 = vadd.f32 %v341, %v249
    %v343 = vxor.u32 %v342, 2147483648
    %v344 = vmul.f32 %v343, 1.442695
    %v345 = vpow.pop %v344
    %v346 = vadd.f32 %v345, 1.0
    %v347 = vrcp.pop %v346
    %v348 = vmul.f32 1.0, %v347
    %v349 = vld [vmem:[%s3] sm:$0xf]
    %v350 = vmul.f32 %v340, %v330
    %v351 = vadd.f32 %v349, %v350
    %v352 = vtanh.pop %v351
    %v353 = vsub.f32 1.0, %v348
    %v354 = vmul.f32 %v353, %v352
    %v355 = vmul.f32 %v348, %v85
    %v356 = vadd.f32 %v354, %v355
    %v357 = vstv %s86
    %vm358 = vcmp.lt.s32.totalorder %v357, %v76
    %v359 = vsel %vm358, 1, 0
    %360 = vset.pattern.permute.xlu0 0
    %361 = vperm.xlu0 %360, %v359
    %v362 = vpop.permute.xlu0 %361
    %vm363 = vcmp.eq.s32.totalorder %v362, 1
    %v364 = vsel %vm363, %v356, %v85
    %v365 = vsel %vm363, %v356, 0.0
    %v366 = vld [vmem:[%s6] sm:$0xff]
    %v367 = vld [vmem:[%s6 + $0x8] sm:$0xff]
    %v368 = vld [vmem:[%s6 + $0x10] sm:$0xff]
    %v369 = vld [vmem:[%s6 + $0x18] sm:$0xff]
    %v371 = vlaneseq
    %v372 = vshrl.u32 %v371, 7
    %v373 = vsub.s32 0, %v372
    %v374 = vrot.slane %v82, %v373
    %v377 = vsel %vm97, %v365, 0
    %379 = vmatprep.subr.mxu0 0.0
    %380 = vmatpush1.msra.mxu0 %v366
    %381 = vmatprep.subr.mxu0 0.0
    %382 = vmatpush1.msra.mxu0 %v367
    %383 = vmatprep.subr.mxu0 0.0
    %384 = vmatpush1.msra.mxu0 %v368
    %385 = vmatprep.subr.mxu0 0.0
    %386 = vmatpush1.msra.mxu0 %v369
    %387 = vmatprep.subr.mxu0 0.0
    %388 = vmatpush1.msra.mxu0 0.0
    %389 = vmatprep.subr.mxu0 0.0
    %390 = vmatpush1.msra.mxu0 0.0
    %391 = vmatprep.subr.mxu0 0.0
    %392 = vmatpush1.msra.mxu0 0.0
    %393 = vmatprep.subr.mxu0 0.0
    %394 = vmatpush1.msra.mxu0 0.0
    %395 = vmatprep.subr.mxu0 0.0
    %396 = vmatpush1.msra.mxu0 0.0
    %397 = vmatprep.subr.mxu0 0.0
    %398 = vmatpush1.msra.mxu0 0.0
    %399 = vmatprep.subr.mxu0 0.0
    %400 = vmatpush1.msra.mxu0 0.0
    %401 = vmatprep.subr.mxu0 0.0
    %402 = vmatpush1.msra.mxu0 0.0
    %403 = vmatprep.subr.mxu0 0.0
    %404 = vmatpush1.msra.mxu0 0.0
    %405 = vmatprep.subr.mxu0 0.0
    %406 = vmatpush1.msra.mxu0 0.0
    %407 = vmatprep.subr.mxu0 0.0
    %408 = vmatpush1.msra.mxu0 0.0
    %409 = vmatprep.subr.mxu0 0.0
    %410 = vmatpush1.msra.mxu0 0.0
    %411 = vmatprep.subr.mxu0 0.0
    %412 = vmatpush1.msra.mxu0 0.0
    %413 = vmatprep.subr.mxu0 0.0
    %414 = vmatpush1.msra.mxu0 0.0
    %415 = vmatprep.subr.mxu0 0.0
    %416 = vmatpush1.msra.mxu0 0.0
    %417 = vmatprep.subr.mxu0 0.0
    %418 = vmatpush1.msra.mxu0 0.0
    %419 = vmatprep.subr.mxu0 0.0
    %420 = vmatpush1.msra.mxu0 0.0
    %421 = vmatprep.subr.mxu0 0.0
    %422 = vmatpush1.msra.mxu0 0.0
    %423 = vmatprep.subr.mxu0 0.0
    %424 = vmatpush1.msra.mxu0 0.0
    %425 = vmatprep.subr.mxu0 0.0
    %426 = vmatpush1.msra.mxu0 0.0
    %427 = vmatprep.subr.mxu0 0.0
    %428 = vmatpush1.msra.mxu0 0.0
    %429 = vmatprep.subr.mxu0 0.0
    %430 = vmatpush1.msra.mxu0 0.0
    %431 = vmatprep.subr.mxu0 0.0
    %432 = vmatpush1.msra.mxu0 0.0
    %433 = vmatprep.subr.mxu0 0.0
    %434 = vmatpush1.msra.mxu0 0.0
    %435 = vmatprep.subr.mxu0 0.0
    %436 = vmatpush1.msra.mxu0 0.0
    %437 = vmatprep.subr.mxu0 0.0
    %438 = vmatpush1.msra.mxu0 0.0
    %439 = vmatprep.subr.mxu0 0.0
    %440 = vmatpush1.msra.mxu0 0.0
    %441 = vmatprep.subr.mxu0 0.0
    %442 = vmatpush1.msra.mxu0 0.0
    %443 = vmatprep.mubr.f32.mxu0 0.0
    %444 = vmatmul.mubr.f32.gmra.mrb[0].mxu0 %v377
    %v445 = vpop.f32.mrb[0].mxu0
    %v446 = vadd.f32 %v374, %v445
    %v447 = vpop.f32.mrb[0].mxu0
    %448 = vdwg.mxu0
    %v449 = vmax.f32 %v446, 0.0
    %vm450 = vcmask 257024
    %v451 = vsel %vm450, %v449, 0.0
    %452 = vadd.xlane.f32.xlu0 %v451
    %v453 = vpop.xlane.xlu0 %452
    %v454 = vrcp.pop 32.0
    %v455 = vmul.f32 %v453, %v454
    %v456 = vsub.f32 %v449, %v455
    %v457 = vmul.f32 %v456, %v456
    %v458 = vsel %vm450, %v457, 0.0
    %459 = vadd.xlane.f32.xlu0 %v458
    %v460 = vpop.xlane.xlu0 %459
    %v461 = vmul.f32 %v460, %v454
    %v462 = vadd.f32 %v461, 1e-05
    %v463 = vrsqrt.pop %v462
    %v464 = vmul.f32 %v456, %v463
    %v466 = vlaneseq
    %v467 = vshrl.u32 %v466, 7
    %v468 = vsub.s32 0, %v467
    %v469 = vrot.slane %v83, %v468
    %v471 = vmul.f32 %v464, %v469
    %v473 = vlaneseq
    %v474 = vshrl.u32 %v473, 7
    %v475 = vsub.s32 0, %v474
    %v476 = vrot.slane %v84, %v475
    %v478 = vadd.f32 %v471, %v476
    %479 = vst.msk [vmem:[%s12] sm:$0xf] %vm450, %v478
    %v480 = vld [vmem:[%s4] sm:$0xff]
    %v481 = vld [vmem:[%s4 + $0x8] sm:$0xff]
    %v482 = vld [vmem:[%s4 + $0x10] sm:$0xff]
    %v483 = vld [vmem:[%s4 + $0x18] sm:$0xff]
    %v485 = vsel %vm97, %v364, 0
    %487 = vmatprep.subr.mxu0 0.0
    %488 = vmatpush1.msra.mxu0 %v480
    %489 = vmatprep.subr.mxu0 0.0
    %490 = vmatpush1.msra.mxu0 %v481
    %491 = vmatprep.subr.mxu0 0.0
    %492 = vmatpush1.msra.mxu0 %v482
    %493 = vmatprep.subr.mxu0 0.0
    %494 = vmatpush1.msra.mxu0 %v483
    %495 = vmatprep.subr.mxu0 0.0
    %496 = vmatpush1.msra.mxu0 0.0
    %497 = vmatprep.subr.mxu0 0.0
    %498 = vmatpush1.msra.mxu0 0.0
    %499 = vmatprep.subr.mxu0 0.0
    %500 = vmatpush1.msra.mxu0 0.0
    %501 = vmatprep.subr.mxu0 0.0
    %502 = vmatpush1.msra.mxu0 0.0
    %503 = vmatprep.subr.mxu0 0.0
    %504 = vmatpush1.msra.mxu0 0.0
    %505 = vmatprep.subr.mxu0 0.0
    %506 = vmatpush1.msra.mxu0 0.0
    %507 = vmatprep.subr.mxu0 0.0
    %508 = vmatpush1.msra.mxu0 0.0
    %509 = vmatprep.subr.mxu0 0.0
    %510 = vmatpush1.msra.mxu0 0.0
    %511 = vmatprep.subr.mxu0 0.0
    %512 = vmatpush1.msra.mxu0 0.0
    %513 = vmatprep.subr.mxu0 0.0
    %514 = vmatpush1.msra.mxu0 0.0
    %515 = vmatprep.subr.mxu0 0.0
    %516 = vmatpush1.msra.mxu0 0.0
    %517 = vmatprep.subr.mxu0 0.0
    %518 = vmatpush1.msra.mxu0 0.0
    %519 = vmatprep.subr.mxu0 0.0
    %520 = vmatpush1.msra.mxu0 0.0
    %521 = vmatprep.subr.mxu0 0.0
    %522 = vmatpush1.msra.mxu0 0.0
    %523 = vmatprep.subr.mxu0 0.0
    %524 = vmatpush1.msra.mxu0 0.0
    %525 = vmatprep.subr.mxu0 0.0
    %526 = vmatpush1.msra.mxu0 0.0
    %527 = vmatprep.subr.mxu0 0.0
    %528 = vmatpush1.msra.mxu0 0.0
    %529 = vmatprep.subr.mxu0 0.0
    %530 = vmatpush1.msra.mxu0 0.0
    %531 = vmatprep.subr.mxu0 0.0
    %532 = vmatpush1.msra.mxu0 0.0
    %533 = vmatprep.subr.mxu0 0.0
    %534 = vmatpush1.msra.mxu0 0.0
    %535 = vmatprep.subr.mxu0 0.0
    %536 = vmatpush1.msra.mxu0 0.0
    %537 = vmatprep.subr.mxu0 0.0
    %538 = vmatpush1.msra.mxu0 0.0
    %539 = vmatprep.subr.mxu0 0.0
    %540 = vmatpush1.msra.mxu0 0.0
    %541 = vmatprep.subr.mxu0 0.0
    %542 = vmatpush1.msra.mxu0 0.0
    %543 = vmatprep.subr.mxu0 0.0
    %544 = vmatpush1.msra.mxu0 0.0
    %545 = vmatprep.subr.mxu0 0.0
    %546 = vmatpush1.msra.mxu0 0.0
    %547 = vmatprep.subr.mxu0 0.0
    %548 = vmatpush1.msra.mxu0 0.0
    %549 = vmatprep.subr.mxu0 0.0
    %550 = vmatpush1.msra.mxu0 0.0
    %551 = vmatprep.mubr.f32.mxu0 0.0
    %552 = vmatmul.mubr.f32.gmra.mrb[0].mxu0 %v485
    %v553 = vpop.f32.mrb[0].mxu0
    %v554 = vadd.f32 %v95, %v553
    %v555 = vpop.f32.mrb[0].mxu0
    %556 = vdwg.mxu0
    %v557 = vld [vmem:[%s171] sm:$0xff]
    %v558 = vld [vmem:[%s171 + $0x8] sm:$0xff]
    %v559 = vld [vmem:[%s171 + $0x10] sm:$0xff]
    %v560 = vld [vmem:[%s171 + $0x18] sm:$0xff]
    %561 = vmatprep.subr.mxu0 0.0
    %562 = vmatpush1.msra.mxu0 %v557
    %563 = vmatprep.subr.mxu0 0.0
    %564 = vmatpush1.msra.mxu0 %v558
    %565 = vmatprep.subr.mxu0 0.0
    %566 = vmatpush1.msra.mxu0 %v559
    %567 = vmatprep.subr.mxu0 0.0
    %568 = vmatpush1.msra.mxu0 %v560
    %569 = vmatprep.subr.mxu0 0.0
    %570 = vmatpush1.msra.mxu0 0.0
    %571 = vmatprep.subr.mxu0 0.0
    %572 = vmatpush1.msra.mxu0 0.0
    %573 = vmatprep.subr.mxu0 0.0
    %574 = vmatpush1.msra.mxu0 0.0
    %575 = vmatprep.subr.mxu0 0.0
    %576 = vmatpush1.msra.mxu0 0.0
    %577 = vmatprep.subr.mxu0 0.0
    %578 = vmatpush1.msra.mxu0 0.0
    %579 = vmatprep.subr.mxu0 0.0
    %580 = vmatpush1.msra.mxu0 0.0
    %581 = vmatprep.subr.mxu0 0.0
    %582 = vmatpush1.msra.mxu0 0.0
    %583 = vmatprep.subr.mxu0 0.0
    %584 = vmatpush1.msra.mxu0 0.0
    %585 = vmatprep.subr.mxu0 0.0
    %586 = vmatpush1.msra.mxu0 0.0
    %587 = vmatprep.subr.mxu0 0.0
    %588 = vmatpush1.msra.mxu0 0.0
    %589 = vmatprep.subr.mxu0 0.0
    %590 = vmatpush1.msra.mxu0 0.0
    %591 = vmatprep.subr.mxu0 0.0
    %592 = vmatpush1.msra.mxu0 0.0
    %593 = vmatprep.subr.mxu0 0.0
    %594 = vmatpush1.msra.mxu0 0.0
    %595 = vmatprep.subr.mxu0 0.0
    %596 = vmatpush1.msra.mxu0 0.0
    %597 = vmatprep.subr.mxu0 0.0
    %598 = vmatpush1.msra.mxu0 0.0
    %599 = vmatprep.subr.mxu0 0.0
    %600 = vmatpush1.msra.mxu0 0.0
    %601 = vmatprep.subr.mxu0 0.0
    %602 = vmatpush1.msra.mxu0 0.0
    %603 = vmatprep.subr.mxu0 0.0
    %604 = vmatpush1.msra.mxu0 0.0
    %605 = vmatprep.subr.mxu0 0.0
    %606 = vmatpush1.msra.mxu0 0.0
    %607 = vmatprep.subr.mxu0 0.0
    %608 = vmatpush1.msra.mxu0 0.0
    %609 = vmatprep.subr.mxu0 0.0
    %610 = vmatpush1.msra.mxu0 0.0
    %611 = vmatprep.subr.mxu0 0.0
    %612 = vmatpush1.msra.mxu0 0.0
    %613 = vmatprep.subr.mxu0 0.0
    %614 = vmatpush1.msra.mxu0 0.0
    %615 = vmatprep.subr.mxu0 0.0
    %616 = vmatpush1.msra.mxu0 0.0
    %617 = vmatprep.subr.mxu0 0.0
    %618 = vmatpush1.msra.mxu0 0.0
    %619 = vmatprep.subr.mxu0 0.0
    %620 = vmatpush1.msra.mxu0 0.0
    %621 = vmatprep.subr.mxu0 0.0
    %622 = vmatpush1.msra.mxu0 0.0
    %623 = vmatprep.subr.mxu0 0.0
    %624 = vmatpush1.msra.mxu0 0.0
    %625 = vmatprep.mubr.f32.mxu0 0.0
    %626 = vmatmul.mubr.f32.gmra.mrb[0].mxu0 %v485
    %v627 = vpop.f32.mrb[0].mxu0
    %v628 = vadd.f32 %v180, %v627
    %v629 = vpop.f32.mrb[0].mxu0
    %630 = vdwg.mxu0
    %v631 = vld [vmem:[%s252] sm:$0xff]
    %v632 = vld [vmem:[%s252 + $0x8] sm:$0xff]
    %v633 = vld [vmem:[%s252 + $0x10] sm:$0xff]
    %v634 = vld [vmem:[%s252 + $0x18] sm:$0xff]
    %635 = vmatprep.subr.mxu0 0.0
    %636 = vmatpush1.msra.mxu0 %v631
    %637 = vmatprep.subr.mxu0 0.0
    %638 = vmatpush1.msra.mxu0 %v632
    %639 = vmatprep.subr.mxu0 0.0
    %640 = vmatpush1.msra.mxu0 %v633
    %641 = vmatprep.subr.mxu0 0.0
    %642 = vmatpush1.msra.mxu0 %v634
    %643 = vmatprep.subr.mxu0 0.0
    %644 = vmatpush1.msra.mxu0 0.0
    %645 = vmatprep.subr.mxu0 0.0
    %646 = vmatpush1.msra.mxu0 0.0
    %647 = vmatprep.subr.mxu0 0.0
    %648 = vmatpush1.msra.mxu0 0.0
    %649 = vmatprep.subr.mxu0 0.0
    %650 = vmatpush1.msra.mxu0 0.0
    %651 = vmatprep.subr.mxu0 0.0
    %652 = vmatpush1.msra.mxu0 0.0
    %653 = vmatprep.subr.mxu0 0.0
    %654 = vmatpush1.msra.mxu0 0.0
    %655 = vmatprep.subr.mxu0 0.0
    %656 = vmatpush1.msra.mxu0 0.0
    %657 = vmatprep.subr.mxu0 0.0
    %658 = vmatpush1.msra.mxu0 0.0
    %659 = vmatprep.subr.mxu0 0.0
    %660 = vmatpush1.msra.mxu0 0.0
    %661 = vmatprep.subr.mxu0 0.0
    %662 = vmatpush1.msra.mxu0 0.0
    %663 = vmatprep.subr.mxu0 0.0
    %664 = vmatpush1.msra.mxu0 0.0
    %665 = vmatprep.subr.mxu0 0.0
    %666 = vmatpush1.msra.mxu0 0.0
    %667 = vmatprep.subr.mxu0 0.0
    %668 = vmatpush1.msra.mxu0 0.0
    %669 = vmatprep.subr.mxu0 0.0
    %670 = vmatpush1.msra.mxu0 0.0
    %671 = vmatprep.subr.mxu0 0.0
    %672 = vmatpush1.msra.mxu0 0.0
    %673 = vmatprep.subr.mxu0 0.0
    %674 = vmatpush1.msra.mxu0 0.0
    %675 = vmatprep.subr.mxu0 0.0
    %676 = vmatpush1.msra.mxu0 0.0
    %677 = vmatprep.subr.mxu0 0.0
    %678 = vmatpush1.msra.mxu0 0.0
    %679 = vmatprep.subr.mxu0 0.0
    %680 = vmatpush1.msra.mxu0 0.0
    %681 = vmatprep.subr.mxu0 0.0
    %682 = vmatpush1.msra.mxu0 0.0
    %683 = vmatprep.subr.mxu0 0.0
    %684 = vmatpush1.msra.mxu0 0.0
    %685 = vmatprep.subr.mxu0 0.0
    %686 = vmatpush1.msra.mxu0 0.0
    %687 = vmatprep.subr.mxu0 0.0
    %688 = vmatpush1.msra.mxu0 0.0
    %689 = vmatprep.subr.mxu0 0.0
    %690 = vmatpush1.msra.mxu0 0.0
    %691 = vmatprep.subr.mxu0 0.0
    %692 = vmatpush1.msra.mxu0 0.0
    %693 = vmatprep.subr.mxu0 0.0
    %694 = vmatpush1.msra.mxu0 0.0
    %695 = vmatprep.subr.mxu0 0.0
    %696 = vmatpush1.msra.mxu0 0.0
    %697 = vmatprep.subr.mxu0 0.0
    %698 = vmatpush1.msra.mxu0 0.0
    %699 = vmatprep.mubr.f32.mxu0 0.0
    %700 = vmatmul.mubr.f32.gmra.mrb[0].mxu0 %v485
    %v701 = vpop.f32.mrb[0].mxu0
    %v702 = vadd.f32 %v261, %v701
    %v703 = vpop.f32.mrb[0].mxu0
    %704 = vdwg.mxu0
    %s705 = scalar_lea.vmem %s1, 4
    %v706 = vld [vmem:[%s705] sm:$0xf]
    %v707 = vadd.f32 %v706, %v554
    %v708 = vxor.u32 %v707, 2147483648
    %v709 = vmul.f32 %v708, 1.442695
    %v710 = vpow.pop %v709
    %v711 = vadd.f32 %v710, 1.0
    %v712 = vrcp.pop %v711
    %v713 = vmul.f32 1.0, %v712
    %s714 = scalar_lea.vmem %s2, 4
    %v715 = vld [vmem:[%s714] sm:$0xf]
    %v716 = vadd.f32 %v715, %v628
    %v717 = vxor.u32 %v716, 2147483648
    %v718 = vmul.f32 %v717, 1.442695
    %v719 = vpow.pop %v718
    %v720 = vadd.f32 %v719, 1.0
    %v721 = vrcp.pop %v720
    %v722 = vmul.f32 1.0, %v721
    %s723 = scalar_lea.vmem %s3, 4
    %v724 = vld [vmem:[%s723] sm:$0xf]
    %v725 = vmul.f32 %v713, %v702
    %v726 = vadd.f32 %v724, %v725
    %v727 = vtanh.pop %v726
    %v728 = vsub.f32 1.0, %v722
    %v729 = vmul.f32 %v728, %v727
    %v730 = vmul.f32 %v722, %v364
    %v731 = vadd.f32 %v729, %v730
    %s732 = sadd.s32 %s86, 1
    %v733 = vstv %s732
    %vm734 = vcmp.lt.s32.totalorder %v733, %v76
    %v735 = vsel %vm734, 1, 0
    %736 = vset.pattern.permute.xlu0 0
    %737 = vperm.xlu0 %736, %v735
    %v738 = vpop.permute.xlu0 %737
    %vm739 = vcmp.eq.s32.totalorder %v738, 1
    %v740 = vsel %vm739, %v731, %v364
    %v741 = vsel %vm739, %v731, 0.0
    %v742 = vld [vmem:[%s6] sm:$0xff]
    %v743 = vld [vmem:[%s6 + $0x8] sm:$0xff]
    %v744 = vld [vmem:[%s6 + $0x10] sm:$0xff]
    %v745 = vld [vmem:[%s6 + $0x18] sm:$0xff]
    %v747 = vsel %vm97, %v741, 0
    %749 = vmatprep.subr.mxu0 0.0
    %750 = vmatpush1.msra.mxu0 %v742
    %751 = vmatprep.subr.mxu0 0.0
    %752 = vmatpush1.msra.mxu0 %v743
    %753 = vmatprep.subr.mxu0 0.0
    %754 = vmatpush1.msra.mxu0 %v744
    %755 = vmatprep.subr.mxu0 0.0
    %756 = vmatpush1.msra.mxu0 %v745
    %757 = vmatprep.subr.mxu0 0.0
    %758 = vmatpush1.msra.mxu0 0.0
    %759 = vmatprep.subr.mxu0 0.0
    %760 = vmatpush1.msra.mxu0 0.0
    %761 = vmatprep.subr.mxu0 0.0
    %762 = vmatpush1.msra.mxu0 0.0
    %763 = vmatprep.subr.mxu0 0.0
    %764 = vmatpush1.msra.mxu0 0.0
    %765 = vmatprep.subr.mxu0 0.0
    %766 = vmatpush1.msra.mxu0 0.0
    %767 = vmatprep.subr.mxu0 0.0
    %768 = vmatpush1.msra.mxu0 0.0
    %769 = vmatprep.subr.mxu0 0.0
    %770 = vmatpush1.msra.mxu0 0.0
    %771 = vmatprep.subr.mxu0 0.0
    %772 = vmatpush1.msra.mxu0 0.0
    %773 = vmatprep.subr.mxu0 0.0
    %774 = vmatpush1.msra.mxu0 0.0
    %775 = vmatprep.subr.mxu0 0.0
    %776 = vmatpush1.msra.mxu0 0.0
    %777 = vmatprep.subr.mxu0 0.0
    %778 = vmatpush1.msra.mxu0 0.0
    %779 = vmatprep.subr.mxu0 0.0
    %780 = vmatpush1.msra.mxu0 0.0
    %781 = vmatprep.subr.mxu0 0.0
    %782 = vmatpush1.msra.mxu0 0.0
    %783 = vmatprep.subr.mxu0 0.0
    %784 = vmatpush1.msra.mxu0 0.0
    %785 = vmatprep.subr.mxu0 0.0
    %786 = vmatpush1.msra.mxu0 0.0
    %787 = vmatprep.subr.mxu0 0.0
    %788 = vmatpush1.msra.mxu0 0.0
    %789 = vmatprep.subr.mxu0 0.0
    %790 = vmatpush1.msra.mxu0 0.0
    %791 = vmatprep.subr.mxu0 0.0
    %792 = vmatpush1.msra.mxu0 0.0
    %793 = vmatprep.subr.mxu0 0.0
    %794 = vmatpush1.msra.mxu0 0.0
    %795 = vmatprep.subr.mxu0 0.0
    %796 = vmatpush1.msra.mxu0 0.0
    %797 = vmatprep.subr.mxu0 0.0
    %798 = vmatpush1.msra.mxu0 0.0
    %799 = vmatprep.subr.mxu0 0.0
    %800 = vmatpush1.msra.mxu0 0.0
    %801 = vmatprep.subr.mxu0 0.0
    %802 = vmatpush1.msra.mxu0 0.0
    %803 = vmatprep.subr.mxu0 0.0
    %804 = vmatpush1.msra.mxu0 0.0
    %805 = vmatprep.subr.mxu0 0.0
    %806 = vmatpush1.msra.mxu0 0.0
    %807 = vmatprep.subr.mxu0 0.0
    %808 = vmatpush1.msra.mxu0 0.0
    %809 = vmatprep.subr.mxu0 0.0
    %810 = vmatpush1.msra.mxu0 0.0
    %811 = vmatprep.subr.mxu0 0.0
    %812 = vmatpush1.msra.mxu0 0.0
    %813 = vmatprep.mubr.f32.mxu0 0.0
    %814 = vmatmul.mubr.f32.gmra.mrb[0].mxu0 %v747
    %v815 = vpop.f32.mrb[0].mxu0
    %v816 = vadd.f32 %v374, %v815
    %v817 = vpop.f32.mrb[0].mxu0
    %818 = vdwg.mxu0
    %v819 = vmax.f32 %v816, 0.0
    %v820 = vsel %vm450, %v819, 0.0
    %821 = vadd.xlane.f32.xlu0 %v820
    %v822 = vpop.xlane.xlu0 %821
    %v823 = vmul.f32 %v822, %v454
    %v824 = vsub.f32 %v819, %v823
    %v825 = vmul.f32 %v824, %v824
    %v826 = vsel %vm450, %v825, 0.0
    %827 = vadd.xlane.f32.xlu0 %v826
    %v828 = vpop.xlane.xlu0 %827
    %v829 = vmul.f32 %v828, %v454
    %v830 = vadd.f32 %v829, 1e-05
    %v831 = vrsqrt.pop %v830
    %v832 = vmul.f32 %v824, %v831
    %v833 = vmul.f32 %v832, %v469
    %v834 = vadd.f32 %v833, %v476
    %s835 = scalar_lea.vmem %s12, 4
    %836 = vst.msk [vmem:[%s835] sm:$0xf] %vm450, %v834
    %v837 = vld [vmem:[%s4] sm:$0xff]
    %v838 = vld [vmem:[%s4 + $0x8] sm:$0xff]
    %v839 = vld [vmem:[%s4 + $0x10] sm:$0xff]
    %v840 = vld [vmem:[%s4 + $0x18] sm:$0xff]
    %v842 = vsel %vm97, %v740, 0
    %844 = vmatprep.subr.mxu0 0.0
    %845 = vmatpush1.msra.mxu0 %v837
    %846 = vmatprep.subr.mxu0 0.0
    %847 = vmatpush1.msra.mxu0 %v838
    %848 = vmatprep.subr.mxu0 0.0
    %849 = vmatpush1.msra.mxu0 %v839
    %850 = vmatprep.subr.mxu0 0.0
    %851 = vmatpush1.msra.mxu0 %v840
    %852 = vmatprep.subr.mxu0 0.0
    %853 = vmatpush1.msra.mxu0 0.0
    %854 = vmatprep.subr.mxu0 0.0
    %855 = vmatpush1.msra.mxu0 0.0
    %856 = vmatprep.subr.mxu0 0.0
    %857 = vmatpush1.msra.mxu0 0.0
    %858 = vmatprep.subr.mxu0 0.0
    %859 = vmatpush1.msra.mxu0 0.0
    %860 = vmatprep.subr.mxu0 0.0
    %861 = vmatpush1.msra.mxu0 0.0
    %862 = vmatprep.subr.mxu0 0.0
    %863 = vmatpush1.msra.mxu0 0.0
    %864 = vmatprep.subr.mxu0 0.0
    %865 = vmatpush1.msra.mxu0 0.0
    %866 = vmatprep.subr.mxu0 0.0
    %867 = vmatpush1.msra.mxu0 0.0
    %868 = vmatprep.subr.mxu0 0.0
    %869 = vmatpush1.msra.mxu0 0.0
    %870 = vmatprep.subr.mxu0 0.0
    %871 = vmatpush1.msra.mxu0 0.0
    %872 = vmatprep.subr.mxu0 0.0
    %873 = vmatpush1.msra.mxu0 0.0
    %874 = vmatprep.subr.mxu0 0.0
    %875 = vmatpush1.msra.mxu0 0.0
    %876 = vmatprep.subr.mxu0 0.0
    %877 = vmatpush1.msra.mxu0 0.0
    %878 = vmatprep.subr.mxu0 0.0
    %879 = vmatpush1.msra.mxu0 0.0
    %880 = vmatprep.subr.mxu0 0.0
    %881 = vmatpush1.msra.mxu0 0.0
    %882 = vmatprep.subr.mxu0 0.0
    %883 = vmatpush1.msra.mxu0 0.0
    %884 = vmatprep.subr.mxu0 0.0
    %885 = vmatpush1.msra.mxu0 0.0
    %886 = vmatprep.subr.mxu0 0.0
    %887 = vmatpush1.msra.mxu0 0.0
    %888 = vmatprep.subr.mxu0 0.0
    %889 = vmatpush1.msra.mxu0 0.0
    %890 = vmatprep.subr.mxu0 0.0
    %891 = vmatpush1.msra.mxu0 0.0
    %892 = vmatprep.subr.mxu0 0.0
    %893 = vmatpush1.msra.mxu0 0.0
    %894 = vmatprep.subr.mxu0 0.0
    %895 = vmatpush1.msra.mxu0 0.0
    %896 = vmatprep.subr.mxu0 0.0
    %897 = vmatpush1.msra.mxu0 0.0
    %898 = vmatprep.subr.mxu0 0.0
    %899 = vmatpush1.msra.mxu0 0.0
    %900 = vmatprep.subr.mxu0 0.0
    %901 = vmatpush1.msra.mxu0 0.0
    %902 = vmatprep.subr.mxu0 0.0
    %903 = vmatpush1.msra.mxu0 0.0
    %904 = vmatprep.subr.mxu0 0.0
    %905 = vmatpush1.msra.mxu0 0.0
    %906 = vmatprep.subr.mxu0 0.0
    %907 = vmatpush1.msra.mxu0 0.0
    %908 = vmatprep.mubr.f32.mxu0 0.0
    %909 = vmatmul.mubr.f32.gmra.mrb[0].mxu0 %v842
    %v910 = vpop.f32.mrb[0].mxu0
    %v911 = vadd.f32 %v95, %v910
    %v912 = vpop.f32.mrb[0].mxu0
    %913 = vdwg.mxu0
    %v914 = vld [vmem:[%s171] sm:$0xff]
    %v915 = vld [vmem:[%s171 + $0x8] sm:$0xff]
    %v916 = vld [vmem:[%s171 + $0x10] sm:$0xff]
    %v917 = vld [vmem:[%s171 + $0x18] sm:$0xff]
    %918 = vmatprep.subr.mxu0 0.0
    %919 = vmatpush1.msra.mxu0 %v914
    %920 = vmatprep.subr.mxu0 0.0
    %921 = vmatpush1.msra.mxu0 %v915
    %922 = vmatprep.subr.mxu0 0.0
    %923 = vmatpush1.msra.mxu0 %v916
    %924 = vmatprep.subr.mxu0 0.0
    %925 = vmatpush1.msra.mxu0 %v917
    %926 = vmatprep.subr.mxu0 0.0
    %927 = vmatpush1.msra.mxu0 0.0
    %928 = vmatprep.subr.mxu0 0.0
    %929 = vmatpush1.msra.mxu0 0.0
    %930 = vmatprep.subr.mxu0 0.0
    %931 = vmatpush1.msra.mxu0 0.0
    %932 = vmatprep.subr.mxu0 0.0
    %933 = vmatpush1.msra.mxu0 0.0
    %934 = vmatprep.subr.mxu0 0.0
    %935 = vmatpush1.msra.mxu0 0.0
    %936 = vmatprep.subr.mxu0 0.0
    %937 = vmatpush1.msra.mxu0 0.0
    %938 = vmatprep.subr.mxu0 0.0
    %939 = vmatpush1.msra.mxu0 0.0
    %940 = vmatprep.subr.mxu0 0.0
    %941 = vmatpush1.msra.mxu0 0.0
    %942 = vmatprep.subr.mxu0 0.0
    %943 = vmatpush1.msra.mxu0 0.0
    %944 = vmatprep.subr.mxu0 0.0
    %945 = vmatpush1.msra.mxu0 0.0
    %946 = vmatprep.subr.mxu0 0.0
    %947 = vmatpush1.msra.mxu0 0.0
    %948 = vmatprep.subr.mxu0 0.0
    %949 = vmatpush1.msra.mxu0 0.0
    %950 = vmatprep.subr.mxu0 0.0
    %951 = vmatpush1.msra.mxu0 0.0
    %952 = vmatprep.subr.mxu0 0.0
    %953 = vmatpush1.msra.mxu0 0.0
    %954 = vmatprep.subr.mxu0 0.0
    %955 = vmatpush1.msra.mxu0 0.0
    %956 = vmatprep.subr.mxu0 0.0
    %957 = vmatpush1.msra.mxu0 0.0
    %958 = vmatprep.subr.mxu0 0.0
    %959 = vmatpush1.msra.mxu0 0.0
    %960 = vmatprep.subr.mxu0 0.0
    %961 = vmatpush1.msra.mxu0 0.0
    %962 = vmatprep.subr.mxu0 0.0
    %963 = vmatpush1.msra.mxu0 0.0
    %964 = vmatprep.subr.mxu0 0.0
    %965 = vmatpush1.msra.mxu0 0.0
    %966 = vmatprep.subr.mxu0 0.0
    %967 = vmatpush1.msra.mxu0 0.0
    %968 = vmatprep.subr.mxu0 0.0
    %969 = vmatpush1.msra.mxu0 0.0
    %970 = vmatprep.subr.mxu0 0.0
    %971 = vmatpush1.msra.mxu0 0.0
    %972 = vmatprep.subr.mxu0 0.0
    %973 = vmatpush1.msra.mxu0 0.0
    %974 = vmatprep.subr.mxu0 0.0
    %975 = vmatpush1.msra.mxu0 0.0
    %976 = vmatprep.subr.mxu0 0.0
    %977 = vmatpush1.msra.mxu0 0.0
    %978 = vmatprep.subr.mxu0 0.0
    %979 = vmatpush1.msra.mxu0 0.0
    %980 = vmatprep.subr.mxu0 0.0
    %981 = vmatpush1.msra.mxu0 0.0
    %982 = vmatprep.mubr.f32.mxu0 0.0
    %983 = vmatmul.mubr.f32.gmra.mrb[0].mxu0 %v842
    %v984 = vpop.f32.mrb[0].mxu0
    %v985 = vadd.f32 %v180, %v984
    %v986 = vpop.f32.mrb[0].mxu0
    %987 = vdwg.mxu0
    %v988 = vld [vmem:[%s252] sm:$0xff]
    %v989 = vld [vmem:[%s252 + $0x8] sm:$0xff]
    %v990 = vld [vmem:[%s252 + $0x10] sm:$0xff]
    %v991 = vld [vmem:[%s252 + $0x18] sm:$0xff]
    %992 = vmatprep.subr.mxu0 0.0
    %993 = vmatpush1.msra.mxu0 %v988
    %994 = vmatprep.subr.mxu0 0.0
    %995 = vmatpush1.msra.mxu0 %v989
    %996 = vmatprep.subr.mxu0 0.0
    %997 = vmatpush1.msra.mxu0 %v990
    %998 = vmatprep.subr.mxu0 0.0
    %999 = vmatpush1.msra.mxu0 %v991
    %1000 = vmatprep.subr.mxu0 0.0
    %1001 = vmatpush1.msra.mxu0 0.0
    %1002 = vmatprep.subr.mxu0 0.0
    %1003 = vmatpush1.msra.mxu0 0.0
    %1004 = vmatprep.subr.mxu0 0.0
    %1005 = vmatpush1.msra.mxu0 0.0
    %1006 = vmatprep.subr.mxu0 0.0
    %1007 = vmatpush1.msra.mxu0 0.0
    %1008 = vmatprep.subr.mxu0 0.0
    %1009 = vmatpush1.msra.mxu0 0.0
    %1010 = vmatprep.subr.mxu0 0.0
    %1011 = vmatpush1.msra.mxu0 0.0
    %1012 = vmatprep.subr.mxu0 0.0
    %1013 = vmatpush1.msra.mxu0 0.0
    %1014 = vmatprep.subr.mxu0 0.0
    %1015 = vmatpush1.msra.mxu0 0.0
    %1016 = vmatprep.subr.mxu0 0.0
    %1017 = vmatpush1.msra.mxu0 0.0
    %1018 = vmatprep.subr.mxu0 0.0
    %1019 = vmatpush1.msra.mxu0 0.0
    %1020 = vmatprep.subr.mxu0 0.0
    %1021 = vmatpush1.msra.mxu0 0.0
    %1022 = vmatprep.subr.mxu0 0.0
    %1023 = vmatpush1.msra.mxu0 0.0
    %1024 = vmatprep.subr.mxu0 0.0
    %1025 = vmatpush1.msra.mxu0 0.0
    %1026 = vmatprep.subr.mxu0 0.0
    %1027 = vmatpush1.msra.mxu0 0.0
    %1028 = vmatprep.subr.mxu0 0.0
    %1029 = vmatpush1.msra.mxu0 0.0
    %1030 = vmatprep.subr.mxu0 0.0
    %1031 = vmatpush1.msra.mxu0 0.0
    %1032 = vmatprep.subr.mxu0 0.0
    %1033 = vmatpush1.msra.mxu0 0.0
    %1034 = vmatprep.subr.mxu0 0.0
    %1035 = vmatpush1.msra.mxu0 0.0
    %1036 = vmatprep.subr.mxu0 0.0
    %1037 = vmatpush1.msra.mxu0 0.0
    %1038 = vmatprep.subr.mxu0 0.0
    %1039 = vmatpush1.msra.mxu0 0.0
    %1040 = vmatprep.subr.mxu0 0.0
    %1041 = vmatpush1.msra.mxu0 0.0
    %1042 = vmatprep.subr.mxu0 0.0
    %1043 = vmatpush1.msra.mxu0 0.0
    %1044 = vmatprep.subr.mxu0 0.0
    %1045 = vmatpush1.msra.mxu0 0.0
    %1046 = vmatprep.subr.mxu0 0.0
    %1047 = vmatpush1.msra.mxu0 0.0
    %1048 = vmatprep.subr.mxu0 0.0
    %1049 = vmatpush1.msra.mxu0 0.0
    %1050 = vmatprep.subr.mxu0 0.0
    %1051 = vmatpush1.msra.mxu0 0.0
    %1052 = vmatprep.subr.mxu0 0.0
    %1053 = vmatpush1.msra.mxu0 0.0
    %1054 = vmatprep.subr.mxu0 0.0
    %1055 = vmatpush1.msra.mxu0 0.0
    %1056 = vmatprep.mubr.f32.mxu0 0.0
    %1057 = vmatmul.mubr.f32.gmra.mrb[0].mxu0 %v842
    %v1058 = vpop.f32.mrb[0].mxu0
    %v1059 = vadd.f32 %v261, %v1058
    %v1060 = vpop.f32.mrb[0].mxu0
    %1061 = vdwg.mxu0
    %s1062 = scalar_lea.vmem %s1, 8
    %v1063 = vld [vmem:[%s1062] sm:$0xf]
    %v1064 = vadd.f32 %v1063, %v911
    %v1065 = vxor.u32 %v1064, 2147483648
    %v1066 = vmul.f32 %v1065, 1.442695
    %v1067 = vpow.pop %v1066
    %v1068 = vadd.f32 %v1067, 1.0
    %v1069 = vrcp.pop %v1068
    %v1070 = vmul.f32 1.0, %v1069
    %s1071 = scalar_lea.vmem %s2, 8
    %v1072 = vld [vmem:[%s1071] sm:$0xf]
    %v1073 = vadd.f32 %v1072, %v985
    %v1074 = vxor.u32 %v1073, 2147483648
    %v1075 = vmul.f32 %v1074, 1.442695
    %v1076 = vpow.pop %v1075
    %v1077 = vadd.f32 %v1076, 1.0
    %v1078 = vrcp.pop %v1077
    %v1079 = vmul.f32 1.0, %v1078
    %s1080 = scalar_lea.vmem %s3, 8
    %v1081 = vld [vmem:[%s1080] sm:$0xf]
    %v1082 = vmul.f32 %v1070, %v1059
    %v1083 = vadd.f32 %v1081, %v1082
    %v1084 = vtanh.pop %v1083
    %v1085 = vsub.f32 1.0, %v1079
    %v1086 = vmul.f32 %v1085, %v1084
    %v1087 = vmul.f32 %v1079, %v740
    %v1088 = vadd.f32 %v1086, %v1087
    %s1089 = sadd.s32 %s86, 2
    %v1090 = vstv %s1089
    %vm1091 = vcmp.lt.s32.totalorder %v1090, %v76
    %v1092 = vsel %vm1091, 1, 0
    %1093 = vset.pattern.permute.xlu0 0
    %1094 = vperm.xlu0 %1093, %v1092
    %v1095 = vpop.permute.xlu0 %1094
    %vm1096 = vcmp.eq.s32.totalorder %v1095, 1
    %v1097 = vsel %vm1096, %v1088, %v740
    %v1098 = vsel %vm1096, %v1088, 0.0
    %v1099 = vld [vmem:[%s6] sm:$0xff]
    %v1100 = vld [vmem:[%s6 + $0x8] sm:$0xff]
    %v1101 = vld [vmem:[%s6 + $0x10] sm:$0xff]
    %v1102 = vld [vmem:[%s6 + $0x18] sm:$0xff]
    %v1104 = vsel %vm97, %v1098, 0
    %1106 = vmatprep.subr.mxu0 0.0
    %1107 = vmatpush1.msra.mxu0 %v1099
    %1108 = vmatprep.subr.mxu0 0.0
    %1109 = vmatpush1.msra.mxu0 %v1100
    %1110 = vmatprep.subr.mxu0 0.0
    %1111 = vmatpush1.msra.mxu0 %v1101
    %1112 = vmatprep.subr.mxu0 0.0
    %1113 = vmatpush1.msra.mxu0 %v1102
    %1114 = vmatprep.subr.mxu0 0.0
    %1115 = vmatpush1.msra.mxu0 0.0
    %1116 = vmatprep.subr.mxu0 0.0
    %1117 = vmatpush1.msra.mxu0 0.0
    %1118 = vmatprep.subr.mxu0 0.0
    %1119 = vmatpush1.msra.mxu0 0.0
    %1120 = vmatprep.subr.mxu0 0.0
    %1121 = vmatpush1.msra.mxu0 0.0
    %1122 = vmatprep.subr.mxu0 0.0
    %1123 = vmatpush1.msra.mxu0 0.0
    %1124 = vmatprep.subr.mxu0 0.0
    %1125 = vmatpush1.msra.mxu0 0.0
    %1126 = vmatprep.subr.mxu0 0.0
    %1127 = vmatpush1.msra.mxu0 0.0
    %1128 = vmatprep.subr.mxu0 0.0
    %1129 = vmatpush1.msra.mxu0 0.0
    %1130 = vmatprep.subr.mxu0 0.0
    %1131 = vmatpush1.msra.mxu0 0.0
    %1132 = vmatprep.subr.mxu0 0.0
    %1133 = vmatpush1.msra.mxu0 0.0
    %1134 = vmatprep.subr.mxu0 0.0
    %1135 = vmatpush1.msra.mxu0 0.0
    %1136 = vmatprep.subr.mxu0 0.0
    %1137 = vmatpush1.msra.mxu0 0.0
    %1138 = vmatprep.subr.mxu0 0.0
    %1139 = vmatpush1.msra.mxu0 0.0
    %1140 = vmatprep.subr.mxu0 0.0
    %1141 = vmatpush1.msra.mxu0 0.0
    %1142 = vmatprep.subr.mxu0 0.0
    %1143 = vmatpush1.msra.mxu0 0.0
    %1144 = vmatprep.subr.mxu0 0.0
    %1145 = vmatpush1.msra.mxu0 0.0
    %1146 = vmatprep.subr.mxu0 0.0
    %1147 = vmatpush1.msra.mxu0 0.0
    %1148 = vmatprep.subr.mxu0 0.0
    %1149 = vmatpush1.msra.mxu0 0.0
    %1150 = vmatprep.subr.mxu0 0.0
    %1151 = vmatpush1.msra.mxu0 0.0
    %1152 = vmatprep.subr.mxu0 0.0
    %1153 = vmatpush1.msra.mxu0 0.0
    %1154 = vmatprep.subr.mxu0 0.0
    %1155 = vmatpush1.msra.mxu0 0.0
    %1156 = vmatprep.subr.mxu0 0.0
    %1157 = vmatpush1.msra.mxu0 0.0
    %1158 = vmatprep.subr.mxu0 0.0
    %1159 = vmatpush1.msra.mxu0 0.0
    %1160 = vmatprep.subr.mxu0 0.0
    %1161 = vmatpush1.msra.mxu0 0.0
    %1162 = vmatprep.subr.mxu0 0.0
    %1163 = vmatpush1.msra.mxu0 0.0
    %1164 = vmatprep.subr.mxu0 0.0
    %1165 = vmatpush1.msra.mxu0 0.0
    %1166 = vmatprep.subr.mxu0 0.0
    %1167 = vmatpush1.msra.mxu0 0.0
    %1168 = vmatprep.subr.mxu0 0.0
    %1169 = vmatpush1.msra.mxu0 0.0
    %1170 = vmatprep.mubr.f32.mxu0 0.0
    %1171 = vmatmul.mubr.f32.gmra.mrb[0].mxu0 %v1104
    %v1172 = vpop.f32.mrb[0].mxu0
    %v1173 = vadd.f32 %v374, %v1172
    %v1174 = vpop.f32.mrb[0].mxu0
    %1175 = vdwg.mxu0
    %v1176 = vmax.f32 %v1173, 0.0
    %v1177 = vsel %vm450, %v1176, 0.0
    %1178 = vadd.xlane.f32.xlu0 %v1177
    %v1179 = vpop.xlane.xlu0 %1178
    %v1180 = vmul.f32 %v1179, %v454
    %v1181 = vsub.f32 %v1176, %v1180
    %v1182 = vmul.f32 %v1181, %v1181
    %v1183 = vsel %vm450, %v1182, 0.0
    %1184 = vadd.xlane.f32.xlu0 %v1183
    %v1185 = vpop.xlane.xlu0 %1184
    %v1186 = vmul.f32 %v1185, %v454
    %v1187 = vadd.f32 %v1186, 1e-05
    %v1188 = vrsqrt.pop %v1187
    %v1189 = vmul.f32 %v1181, %v1188
    %v1190 = vmul.f32 %v1189, %v469
    %v1191 = vadd.f32 %v1190, %v476
    %s1192 = scalar_lea.vmem %s12, 8
    %1193 = vst.msk [vmem:[%s1192] sm:$0xf] %vm450, %v1191
    %v1194 = vld [vmem:[%s4] sm:$0xff]
    %v1195 = vld [vmem:[%s4 + $0x8] sm:$0xff]
    %v1196 = vld [vmem:[%s4 + $0x10] sm:$0xff]
    %v1197 = vld [vmem:[%s4 + $0x18] sm:$0xff]
    %v1199 = vsel %vm97, %v1097, 0
    %1201 = vmatprep.subr.mxu0 0.0
    %1202 = vmatpush1.msra.mxu0 %v1194
    %1203 = vmatprep.subr.mxu0 0.0
    %1204 = vmatpush1.msra.mxu0 %v1195
    %1205 = vmatprep.subr.mxu0 0.0
    %1206 = vmatpush1.msra.mxu0 %v1196
    %1207 = vmatprep.subr.mxu0 0.0
    %1208 = vmatpush1.msra.mxu0 %v1197
    %1209 = vmatprep.subr.mxu0 0.0
    %1210 = vmatpush1.msra.mxu0 0.0
    %1211 = vmatprep.subr.mxu0 0.0
    %1212 = vmatpush1.msra.mxu0 0.0
    %1213 = vmatprep.subr.mxu0 0.0
    %1214 = vmatpush1.msra.mxu0 0.0
    %1215 = vmatprep.subr.mxu0 0.0
    %1216 = vmatpush1.msra.mxu0 0.0
    %1217 = vmatprep.subr.mxu0 0.0
    %1218 = vmatpush1.msra.mxu0 0.0
    %1219 = vmatprep.subr.mxu0 0.0
    %1220 = vmatpush1.msra.mxu0 0.0
    %1221 = vmatprep.subr.mxu0 0.0
    %1222 = vmatpush1.msra.mxu0 0.0
    %1223 = vmatprep.subr.mxu0 0.0
    %1224 = vmatpush1.msra.mxu0 0.0
    %1225 = vmatprep.subr.mxu0 0.0
    %1226 = vmatpush1.msra.mxu0 0.0
    %1227 = vmatprep.subr.mxu0 0.0
    %1228 = vmatpush1.msra.mxu0 0.0
    %1229 = vmatprep.subr.mxu0 0.0
    %1230 = vmatpush1.msra.mxu0 0.0
    %1231 = vmatprep.subr.mxu0 0.0
    %1232 = vmatpush1.msra.mxu0 0.0
    %1233 = vmatprep.subr.mxu0 0.0
    %1234 = vmatpush1.msra.mxu0 0.0
    %1235 = vmatprep.subr.mxu0 0.0
    %1236 = vmatpush1.msra.mxu0 0.0
    %1237 = vmatprep.subr.mxu0 0.0
    %1238 = vmatpush1.msra.mxu0 0.0
    %1239 = vmatprep.subr.mxu0 0.0
    %1240 = vmatpush1.msra.mxu0 0.0
    %1241 = vmatprep.subr.mxu0 0.0
    %1242 = vmatpush1.msra.mxu0 0.0
    %1243 = vmatprep.subr.mxu0 0.0
    %1244 = vmatpush1.msra.mxu0 0.0
    %1245 = vmatprep.subr.mxu0 0.0
    %1246 = vmatpush1.msra.mxu0 0.0
    %1247 = vmatprep.subr.mxu0 0.0
    %1248 = vmatpush1.msra.mxu0 0.0
    %1249 = vmatprep.subr.mxu0 0.0
    %1250 = vmatpush1.msra.mxu0 0.0
    %1251 = vmatprep.subr.mxu0 0.0
    %1252 = vmatpush1.msra.mxu0 0.0
    %1253 = vmatprep.subr.mxu0 0.0
    %1254 = vmatpush1.msra.mxu0 0.0
    %1255 = vmatprep.subr.mxu0 0.0
    %1256 = vmatpush1.msra.mxu0 0.0
    %1257 = vmatprep.subr.mxu0 0.0
    %1258 = vmatpush1.msra.mxu0 0.0
    %1259 = vmatprep.subr.mxu0 0.0
    %1260 = vmatpush1.msra.mxu0 0.0
    %1261 = vmatprep.subr.mxu0 0.0
    %1262 = vmatpush1.msra.mxu0 0.0
    %1263 = vmatprep.subr.mxu0 0.0
    %1264 = vmatpush1.msra.mxu0 0.0
    %1265 = vmatprep.mubr.f32.mxu0 0.0
    %1266 = vmatmul.mubr.f32.gmra.mrb[0].mxu0 %v1199
    %v1267 = vpop.f32.mrb[0].mxu0
    %v1268 = vadd.f32 %v95, %v1267
    %v1269 = vpop.f32.mrb[0].mxu0
    %1270 = vdwg.mxu0
    %v1271 = vld [vmem:[%s171] sm:$0xff]
    %v1272 = vld [vmem:[%s171 + $0x8] sm:$0xff]
    %v1273 = vld [vmem:[%s171 + $0x10] sm:$0xff]
    %v1274 = vld [vmem:[%s171 + $0x18] sm:$0xff]
    %1275 = vmatprep.subr.mxu0 0.0
    %1276 = vmatpush1.msra.mxu0 %v1271
    %1277 = vmatprep.subr.mxu0 0.0
    %1278 = vmatpush1.msra.mxu0 %v1272
    %1279 = vmatprep.subr.mxu0 0.0
    %1280 = vmatpush1.msra.mxu0 %v1273
    %1281 = vmatprep.subr.mxu0 0.0
    %1282 = vmatpush1.msra.mxu0 %v1274
    %1283 = vmatprep.subr.mxu0 0.0
    %1284 = vmatpush1.msra.mxu0 0.0
    %1285 = vmatprep.subr.mxu0 0.0
    %1286 = vmatpush1.msra.mxu0 0.0
    %1287 = vmatprep.subr.mxu0 0.0
    %1288 = vmatpush1.msra.mxu0 0.0
    %1289 = vmatprep.subr.mxu0 0.0
    %1290 = vmatpush1.msra.mxu0 0.0
    %1291 = vmatprep.subr.mxu0 0.0
    %1292 = vmatpush1.msra.mxu0 0.0
    %1293 = vmatprep.subr.mxu0 0.0
    %1294 = vmatpush1.msra.mxu0 0.0
    %1295 = vmatprep.subr.mxu0 0.0
    %1296 = vmatpush1.msra.mxu0 0.0
    %1297 = vmatprep.subr.mxu0 0.0
    %1298 = vmatpush1.msra.mxu0 0.0
    %1299 = vmatprep.subr.mxu0 0.0
    %1300 = vmatpush1.msra.mxu0 0.0
    %1301 = vmatprep.subr.mxu0 0.0
    %1302 = vmatpush1.msra.mxu0 0.0
    %1303 = vmatprep.subr.mxu0 0.0
    %1304 = vmatpush1.msra.mxu0 0.0
    %1305 = vmatprep.subr.mxu0 0.0
    %1306 = vmatpush1.msra.mxu0 0.0
    %1307 = vmatprep.subr.mxu0 0.0
    %1308 = vmatpush1.msra.mxu0 0.0
    %1309 = vmatprep.subr.mxu0 0.0
    %1310 = vmatpush1.msra.mxu0 0.0
    %1311 = vmatprep.subr.mxu0 0.0
    %1312 = vmatpush1.msra.mxu0 0.0
    %1313 = vmatprep.subr.mxu0 0.0
    %1314 = vmatpush1.msra.mxu0 0.0
    %1315 = vmatprep.subr.mxu0 0.0
    %1316 = vmatpush1.msra.mxu0 0.0
    %1317 = vmatprep.subr.mxu0 0.0
    %1318 = vmatpush1.msra.mxu0 0.0
    %1319 = vmatprep.subr.mxu0 0.0
    %1320 = vmatpush1.msra.mxu0 0.0
    %1321 = vmatprep.subr.mxu0 0.0
    %1322 = vmatpush1.msra.mxu0 0.0
    %1323 = vmatprep.subr.mxu0 0.0
    %1324 = vmatpush1.msra.mxu0 0.0
    %1325 = vmatprep.subr.mxu0 0.0
    %1326 = vmatpush1.msra.mxu0 0.0
    %1327 = vmatprep.subr.mxu0 0.0
    %1328 = vmatpush1.msra.mxu0 0.0
    %1329 = vmatprep.subr.mxu0 0.0
    %1330 = vmatpush1.msra.mxu0 0.0
    %1331 = vmatprep.subr.mxu0 0.0
    %1332 = vmatpush1.msra.mxu0 0.0
    %1333 = vmatprep.subr.mxu0 0.0
    %1334 = vmatpush1.msra.mxu0 0.0
    %1335 = vmatprep.subr.mxu0 0.0
    %1336 = vmatpush1.msra.mxu0 0.0
    %1337 = vmatprep.subr.mxu0 0.0
    %1338 = vmatpush1.msra.mxu0 0.0
    %1339 = vmatprep.mubr.f32.mxu0 0.0
    %1340 = vmatmul.mubr.f32.gmra.mrb[0].mxu0 %v1199
    %v1341 = vpop.f32.mrb[0].mxu0
    %v1342 = vadd.f32 %v180, %v1341
    %v1343 = vpop.f32.mrb[0].mxu0
    %1344 = vdwg.mxu0
    %v1345 = vld [vmem:[%s252] sm:$0xff]
    %v1346 = vld [vmem:[%s252 + $0x8] sm:$0xff]
    %v1347 = vld [vmem:[%s252 + $0x10] sm:$0xff]
    %v1348 = vld [vmem:[%s252 + $0x18] sm:$0xff]
    %1349 = vmatprep.subr.mxu0 0.0
    %1350 = vmatpush1.msra.mxu0 %v1345
    %1351 = vmatprep.subr.mxu0 0.0
    %1352 = vmatpush1.msra.mxu0 %v1346
    %1353 = vmatprep.subr.mxu0 0.0
    %1354 = vmatpush1.msra.mxu0 %v1347
    %1355 = vmatprep.subr.mxu0 0.0
    %1356 = vmatpush1.msra.mxu0 %v1348
    %1357 = vmatprep.subr.mxu0 0.0
    %1358 = vmatpush1.msra.mxu0 0.0
    %1359 = vmatprep.subr.mxu0 0.0
    %1360 = vmatpush1.msra.mxu0 0.0
    %1361 = vmatprep.subr.mxu0 0.0
    %1362 = vmatpush1.msra.mxu0 0.0
    %1363 = vmatprep.subr.mxu0 0.0
    %1364 = vmatpush1.msra.mxu0 0.0
    %1365 = vmatprep.subr.mxu0 0.0
    %1366 = vmatpush1.msra.mxu0 0.0
    %1367 = vmatprep.subr.mxu0 0.0
    %1368 = vmatpush1.msra.mxu0 0.0
    %1369 = vmatprep.subr.mxu0 0.0
    %1370 = vmatpush1.msra.mxu0 0.0
    %1371 = vmatprep.subr.mxu0 0.0
    %1372 = vmatpush1.msra.mxu0 0.0
    %1373 = vmatprep.subr.mxu0 0.0
    %1374 = vmatpush1.msra.mxu0 0.0
    %1375 = vmatprep.subr.mxu0 0.0
    %1376 = vmatpush1.msra.mxu0 0.0
    %1377 = vmatprep.subr.mxu0 0.0
    %1378 = vmatpush1.msra.mxu0 0.0
    %1379 = vmatprep.subr.mxu0 0.0
    %1380 = vmatpush1.msra.mxu0 0.0
    %1381 = vmatprep.subr.mxu0 0.0
    %1382 = vmatpush1.msra.mxu0 0.0
    %1383 = vmatprep.subr.mxu0 0.0
    %1384 = vmatpush1.msra.mxu0 0.0
    %1385 = vmatprep.subr.mxu0 0.0
    %1386 = vmatpush1.msra.mxu0 0.0
    %1387 = vmatprep.subr.mxu0 0.0
    %1388 = vmatpush1.msra.mxu0 0.0
    %1389 = vmatprep.subr.mxu0 0.0
    %1390 = vmatpush1.msra.mxu0 0.0
    %1391 = vmatprep.subr.mxu0 0.0
    %1392 = vmatpush1.msra.mxu0 0.0
    %1393 = vmatprep.subr.mxu0 0.0
    %1394 = vmatpush1.msra.mxu0 0.0
    %1395 = vmatprep.subr.mxu0 0.0
    %1396 = vmatpush1.msra.mxu0 0.0
    %1397 = vmatprep.subr.mxu0 0.0
    %1398 = vmatpush1.msra.mxu0 0.0
    %1399 = vmatprep.subr.mxu0 0.0
    %1400 = vmatpush1.msra.mxu0 0.0
    %1401 = vmatprep.subr.mxu0 0.0
    %1402 = vmatpush1.msra.mxu0 0.0
    %1403 = vmatprep.subr.mxu0 0.0
    %1404 = vmatpush1.msra.mxu0 0.0
    %1405 = vmatprep.subr.mxu0 0.0
    %1406 = vmatpush1.msra.mxu0 0.0
    %1407 = vmatprep.subr.mxu0 0.0
    %1408 = vmatpush1.msra.mxu0 0.0
    %1409 = vmatprep.subr.mxu0 0.0
    %1410 = vmatpush1.msra.mxu0 0.0
    %1411 = vmatprep.subr.mxu0 0.0
    %1412 = vmatpush1.msra.mxu0 0.0
    %1413 = vmatprep.mubr.f32.mxu0 0.0
    %1414 = vmatmul.mubr.f32.gmra.mrb[0].mxu0 %v1199
    %v1415 = vpop.f32.mrb[0].mxu0
    %v1416 = vadd.f32 %v261, %v1415
    %v1417 = vpop.f32.mrb[0].mxu0
    %1418 = vdwg.mxu0
    %s1419 = scalar_lea.vmem %s1, 12
    %v1420 = vld [vmem:[%s1419] sm:$0xf]
    %v1421 = vadd.f32 %v1420, %v1268
    %v1422 = vxor.u32 %v1421, 2147483648
    %v1423 = vmul.f32 %v1422, 1.442695
    %v1424 = vpow.pop %v1423
    %v1425 = vadd.f32 %v1424, 1.0
    %v1426 = vrcp.pop %v1425
    %v1427 = vmul.f32 1.0, %v1426
    %s1428 = scalar_lea.vmem %s2, 12
    %v1429 = vld [vmem:[%s1428] sm:$0xf]
    %v1430 = vadd.f32 %v1429, %v1342
    %v1431 = vxor.u32 %v1430, 2147483648
    %v1432 = vmul.f32 %v1431, 1.442695
    %v1433 = vpow.pop %v1432
    %v1434 = vadd.f32 %v1433, 1.0
    %v1435 = vrcp.pop %v1434
    %v1436 = vmul.f32 1.0, %v1435
    %s1437 = scalar_lea.vmem %s3, 12
    %v1438 = vld [vmem:[%s1437] sm:$0xf]
    %v1439 = vmul.f32 %v1427, %v1416
    %v1440 = vadd.f32 %v1438, %v1439
    %v1441 = vtanh.pop %v1440
    %v1442 = vsub.f32 1.0, %v1436
    %v1443 = vmul.f32 %v1442, %v1441
    %v1444 = vmul.f32 %v1436, %v1097
    %v1445 = vadd.f32 %v1443, %v1444
    %s1446 = sadd.s32 %s86, 3
    %v1447 = vstv %s1446
    %vm1448 = vcmp.lt.s32.totalorder %v1447, %v76
    %v1449 = vsel %vm1448, 1, 0
    %1450 = vset.pattern.permute.xlu0 0
    %1451 = vperm.xlu0 %1450, %v1449
    %v1452 = vpop.permute.xlu0 %1451
    %vm1453 = vcmp.eq.s32.totalorder %v1452, 1
    %v1454 = vsel %vm1453, %v1445, %v1097
    %v1455 = vsel %vm1453, %v1445, 0.0
    %v1456 = vld [vmem:[%s6] sm:$0xff]
    %v1457 = vld [vmem:[%s6 + $0x8] sm:$0xff]
    %v1458 = vld [vmem:[%s6 + $0x10] sm:$0xff]
    %v1459 = vld [vmem:[%s6 + $0x18] sm:$0xff]
    %v1461 = vsel %vm97, %v1455, 0
    %1463 = vmatprep.subr.mxu0 0.0
    %1464 = vmatpush1.msra.mxu0 %v1456
    %1465 = vmatprep.subr.mxu0 0.0
    %1466 = vmatpush1.msra.mxu0 %v1457
    %1467 = vmatprep.subr.mxu0 0.0
    %1468 = vmatpush1.msra.mxu0 %v1458
    %1469 = vmatprep.subr.mxu0 0.0
    %1470 = vmatpush1.msra.mxu0 %v1459
    %1471 = vmatprep.subr.mxu0 0.0
    %1472 = vmatpush1.msra.mxu0 0.0
    %1473 = vmatprep.subr.mxu0 0.0
    %1474 = vmatpush1.msra.mxu0 0.0
    %1475 = vmatprep.subr.mxu0 0.0
    %1476 = vmatpush1.msra.mxu0 0.0
    %1477 = vmatprep.subr.mxu0 0.0
    %1478 = vmatpush1.msra.mxu0 0.0
    %1479 = vmatprep.subr.mxu0 0.0
    %1480 = vmatpush1.msra.mxu0 0.0
    %1481 = vmatprep.subr.mxu0 0.0
    %1482 = vmatpush1.msra.mxu0 0.0
    %1483 = vmatprep.subr.mxu0 0.0
    %1484 = vmatpush1.msra.mxu0 0.0
    %1485 = vmatprep.subr.mxu0 0.0
    %1486 = vmatpush1.msra.mxu0 0.0
    %1487 = vmatprep.subr.mxu0 0.0
    %1488 = vmatpush1.msra.mxu0 0.0
    %1489 = vmatprep.subr.mxu0 0.0
    %1490 = vmatpush1.msra.mxu0 0.0
    %1491 = vmatprep.subr.mxu0 0.0
    %1492 = vmatpush1.msra.mxu0 0.0
    %1493 = vmatprep.subr.mxu0 0.0
    %1494 = vmatpush1.msra.mxu0 0.0
    %1495 = vmatprep.subr.mxu0 0.0
    %1496 = vmatpush1.msra.mxu0 0.0
    %1497 = vmatprep.subr.mxu0 0.0
    %1498 = vmatpush1.msra.mxu0 0.0
    %1499 = vmatprep.subr.mxu0 0.0
    %1500 = vmatpush1.msra.mxu0 0.0
    %1501 = vmatprep.subr.mxu0 0.0
    %1502 = vmatpush1.msra.mxu0 0.0
    %1503 = vmatprep.subr.mxu0 0.0
    %1504 = vmatpush1.msra.mxu0 0.0
    %1505 = vmatprep.subr.mxu0 0.0
    %1506 = vmatpush1.msra.mxu0 0.0
    %1507 = vmatprep.subr.mxu0 0.0
    %1508 = vmatpush1.msra.mxu0 0.0
    %1509 = vmatprep.subr.mxu0 0.0
    %1510 = vmatpush1.msra.mxu0 0.0
    %1511 = vmatprep.subr.mxu0 0.0
    %1512 = vmatpush1.msra.mxu0 0.0
    %1513 = vmatprep.subr.mxu0 0.0
    %1514 = vmatpush1.msra.mxu0 0.0
    %1515 = vmatprep.subr.mxu0 0.0
    %1516 = vmatpush1.msra.mxu0 0.0
    %1517 = vmatprep.subr.mxu0 0.0
    %1518 = vmatpush1.msra.mxu0 0.0
    %1519 = vmatprep.subr.mxu0 0.0
    %1520 = vmatpush1.msra.mxu0 0.0
    %1521 = vmatprep.subr.mxu0 0.0
    %1522 = vmatpush1.msra.mxu0 0.0
    %1523 = vmatprep.subr.mxu0 0.0
    %1524 = vmatpush1.msra.mxu0 0.0
    %1525 = vmatprep.subr.mxu0 0.0
    %1526 = vmatpush1.msra.mxu0 0.0
    %1527 = vmatprep.mubr.f32.mxu0 0.0
    %1528 = vmatmul.mubr.f32.gmra.mrb[0].mxu0 %v1461
    %v1529 = vpop.f32.mrb[0].mxu0
    %v1530 = vadd.f32 %v374, %v1529
    %v1531 = vpop.f32.mrb[0].mxu0
    %1532 = vdwg.mxu0
    %v1533 = vmax.f32 %v1530, 0.0
    %v1534 = vsel %vm450, %v1533, 0.0
    %1535 = vadd.xlane.f32.xlu0 %v1534
    %v1536 = vpop.xlane.xlu0 %1535
    %v1537 = vmul.f32 %v1536, %v454
    %v1538 = vsub.f32 %v1533, %v1537
    %v1539 = vmul.f32 %v1538, %v1538
    %v1540 = vsel %vm450, %v1539, 0.0
    %1541 = vadd.xlane.f32.xlu0 %v1540
    %v1542 = vpop.xlane.xlu0 %1541
    %v1543 = vmul.f32 %v1542, %v454
    %v1544 = vadd.f32 %v1543, 1e-05
    %v1545 = vrsqrt.pop %v1544
    %v1546 = vmul.f32 %v1538, %v1545
    %v1547 = vmul.f32 %v1546, %v469
    %v1548 = vadd.f32 %v1547, %v476
    %s1549 = scalar_lea.vmem %s12, 12
    %1550 = vst.msk [vmem:[%s1549] sm:$0xf] %vm450, %v1548
    %v1551 = vld [vmem:[%s4] sm:$0xff]
    %v1552 = vld [vmem:[%s4 + $0x8] sm:$0xff]
    %v1553 = vld [vmem:[%s4 + $0x10] sm:$0xff]
    %v1554 = vld [vmem:[%s4 + $0x18] sm:$0xff]
    %v1556 = vsel %vm97, %v1454, 0
    %1558 = vmatprep.subr.mxu0 0.0
    %1559 = vmatpush1.msra.mxu0 %v1551
    %1560 = vmatprep.subr.mxu0 0.0
    %1561 = vmatpush1.msra.mxu0 %v1552
    %1562 = vmatprep.subr.mxu0 0.0
    %1563 = vmatpush1.msra.mxu0 %v1553
    %1564 = vmatprep.subr.mxu0 0.0
    %1565 = vmatpush1.msra.mxu0 %v1554
    %1566 = vmatprep.subr.mxu0 0.0
    %1567 = vmatpush1.msra.mxu0 0.0
    %1568 = vmatprep.subr.mxu0 0.0
    %1569 = vmatpush1.msra.mxu0 0.0
    %1570 = vmatprep.subr.mxu0 0.0
    %1571 = vmatpush1.msra.mxu0 0.0
    %1572 = vmatprep.subr.mxu0 0.0
    %1573 = vmatpush1.msra.mxu0 0.0
    %1574 = vmatprep.subr.mxu0 0.0
    %1575 = vmatpush1.msra.mxu0 0.0
    %1576 = vmatprep.subr.mxu0 0.0
    %1577 = vmatpush1.msra.mxu0 0.0
    %1578 = vmatprep.subr.mxu0 0.0
    %1579 = vmatpush1.msra.mxu0 0.0
    %1580 = vmatprep.subr.mxu0 0.0
    %1581 = vmatpush1.msra.mxu0 0.0
    %1582 = vmatprep.subr.mxu0 0.0
    %1583 = vmatpush1.msra.mxu0 0.0
    %1584 = vmatprep.subr.mxu0 0.0
    %1585 = vmatpush1.msra.mxu0 0.0
    %1586 = vmatprep.subr.mxu0 0.0
    %1587 = vmatpush1.msra.mxu0 0.0
    %1588 = vmatprep.subr.mxu0 0.0
    %1589 = vmatpush1.msra.mxu0 0.0
    %1590 = vmatprep.subr.mxu0 0.0
    %1591 = vmatpush1.msra.mxu0 0.0
    %1592 = vmatprep.subr.mxu0 0.0
    %1593 = vmatpush1.msra.mxu0 0.0
    %1594 = vmatprep.subr.mxu0 0.0
    %1595 = vmatpush1.msra.mxu0 0.0
    %1596 = vmatprep.subr.mxu0 0.0
    %1597 = vmatpush1.msra.mxu0 0.0
    %1598 = vmatprep.subr.mxu0 0.0
    %1599 = vmatpush1.msra.mxu0 0.0
    %1600 = vmatprep.subr.mxu0 0.0
    %1601 = vmatpush1.msra.mxu0 0.0
    %1602 = vmatprep.subr.mxu0 0.0
    %1603 = vmatpush1.msra.mxu0 0.0
    %1604 = vmatprep.subr.mxu0 0.0
    %1605 = vmatpush1.msra.mxu0 0.0
    %1606 = vmatprep.subr.mxu0 0.0
    %1607 = vmatpush1.msra.mxu0 0.0
    %1608 = vmatprep.subr.mxu0 0.0
    %1609 = vmatpush1.msra.mxu0 0.0
    %1610 = vmatprep.subr.mxu0 0.0
    %1611 = vmatpush1.msra.mxu0 0.0
    %1612 = vmatprep.subr.mxu0 0.0
    %1613 = vmatpush1.msra.mxu0 0.0
    %1614 = vmatprep.subr.mxu0 0.0
    %1615 = vmatpush1.msra.mxu0 0.0
    %1616 = vmatprep.subr.mxu0 0.0
    %1617 = vmatpush1.msra.mxu0 0.0
    %1618 = vmatprep.subr.mxu0 0.0
    %1619 = vmatpush1.msra.mxu0 0.0
    %1620 = vmatprep.subr.mxu0 0.0
    %1621 = vmatpush1.msra.mxu0 0.0
    %1622 = vmatprep.mubr.f32.mxu0 0.0
    %1623 = vmatmul.mubr.f32.gmra.mrb[0].mxu0 %v1556
    %v1624 = vpop.f32.mrb[0].mxu0
    %v1625 = vadd.f32 %v95, %v1624
    %v1626 = vpop.f32.mrb[0].mxu0
    %1627 = vdwg.mxu0
    %v1628 = vld [vmem:[%s171] sm:$0xff]
    %v1629 = vld [vmem:[%s171 + $0x8] sm:$0xff]
    %v1630 = vld [vmem:[%s171 + $0x10] sm:$0xff]
    %v1631 = vld [vmem:[%s171 + $0x18] sm:$0xff]
    %1632 = vmatprep.subr.mxu0 0.0
    %1633 = vmatpush1.msra.mxu0 %v1628
    %1634 = vmatprep.subr.mxu0 0.0
    %1635 = vmatpush1.msra.mxu0 %v1629
    %1636 = vmatprep.subr.mxu0 0.0
    %1637 = vmatpush1.msra.mxu0 %v1630
    %1638 = vmatprep.subr.mxu0 0.0
    %1639 = vmatpush1.msra.mxu0 %v1631
    %1640 = vmatprep.subr.mxu0 0.0
    %1641 = vmatpush1.msra.mxu0 0.0
    %1642 = vmatprep.subr.mxu0 0.0
    %1643 = vmatpush1.msra.mxu0 0.0
    %1644 = vmatprep.subr.mxu0 0.0
    %1645 = vmatpush1.msra.mxu0 0.0
    %1646 = vmatprep.subr.mxu0 0.0
    %1647 = vmatpush1.msra.mxu0 0.0
    %1648 = vmatprep.subr.mxu0 0.0
    %1649 = vmatpush1.msra.mxu0 0.0
    %1650 = vmatprep.subr.mxu0 0.0
    %1651 = vmatpush1.msra.mxu0 0.0
    %1652 = vmatprep.subr.mxu0 0.0
    %1653 = vmatpush1.msra.mxu0 0.0
    %1654 = vmatprep.subr.mxu0 0.0
    %1655 = vmatpush1.msra.mxu0 0.0
    %1656 = vmatprep.subr.mxu0 0.0
    %1657 = vmatpush1.msra.mxu0 0.0
    %1658 = vmatprep.subr.mxu0 0.0
    %1659 = vmatpush1.msra.mxu0 0.0
    %1660 = vmatprep.subr.mxu0 0.0
    %1661 = vmatpush1.msra.mxu0 0.0
    %1662 = vmatprep.subr.mxu0 0.0
    %1663 = vmatpush1.msra.mxu0 0.0
    %1664 = vmatprep.subr.mxu0 0.0
    %1665 = vmatpush1.msra.mxu0 0.0
    %1666 = vmatprep.subr.mxu0 0.0
    %1667 = vmatpush1.msra.mxu0 0.0
    %1668 = vmatprep.subr.mxu0 0.0
    %1669 = vmatpush1.msra.mxu0 0.0
    %1670 = vmatprep.subr.mxu0 0.0
    %1671 = vmatpush1.msra.mxu0 0.0
    %1672 = vmatprep.subr.mxu0 0.0
    %1673 = vmatpush1.msra.mxu0 0.0
    %1674 = vmatprep.subr.mxu0 0.0
    %1675 = vmatpush1.msra.mxu0 0.0
    %1676 = vmatprep.subr.mxu0 0.0
    %1677 = vmatpush1.msra.mxu0 0.0
    %1678 = vmatprep.subr.mxu0 0.0
    %1679 = vmatpush1.msra.mxu0 0.0
    %1680 = vmatprep.subr.mxu0 0.0
    %1681 = vmatpush1.msra.mxu0 0.0
    %1682 = vmatprep.subr.mxu0 0.0
    %1683 = vmatpush1.msra.mxu0 0.0
    %1684 = vmatprep.subr.mxu0 0.0
    %1685 = vmatpush1.msra.mxu0 0.0
    %1686 = vmatprep.subr.mxu0 0.0
    %1687 = vmatpush1.msra.mxu0 0.0
    %1688 = vmatprep.subr.mxu0 0.0
    %1689 = vmatpush1.msra.mxu0 0.0
    %1690 = vmatprep.subr.mxu0 0.0
    %1691 = vmatpush1.msra.mxu0 0.0
    %1692 = vmatprep.subr.mxu0 0.0
    %1693 = vmatpush1.msra.mxu0 0.0
    %1694 = vmatprep.subr.mxu0 0.0
    %1695 = vmatpush1.msra.mxu0 0.0
    %1696 = vmatprep.mubr.f32.mxu0 0.0
    %1697 = vmatmul.mubr.f32.gmra.mrb[0].mxu0 %v1556
    %v1698 = vpop.f32.mrb[0].mxu0
    %v1699 = vadd.f32 %v180, %v1698
    %v1700 = vpop.f32.mrb[0].mxu0
    %1701 = vdwg.mxu0
    %v1702 = vld [vmem:[%s252] sm:$0xff]
    %v1703 = vld [vmem:[%s252 + $0x8] sm:$0xff]
    %v1704 = vld [vmem:[%s252 + $0x10] sm:$0xff]
    %v1705 = vld [vmem:[%s252 + $0x18] sm:$0xff]
    %1706 = vmatprep.subr.mxu0 0.0
    %1707 = vmatpush1.msra.mxu0 %v1702
    %1708 = vmatprep.subr.mxu0 0.0
    %1709 = vmatpush1.msra.mxu0 %v1703
    %1710 = vmatprep.subr.mxu0 0.0
    %1711 = vmatpush1.msra.mxu0 %v1704
    %1712 = vmatprep.subr.mxu0 0.0
    %1713 = vmatpush1.msra.mxu0 %v1705
    %1714 = vmatprep.subr.mxu0 0.0
    %1715 = vmatpush1.msra.mxu0 0.0
    %1716 = vmatprep.subr.mxu0 0.0
    %1717 = vmatpush1.msra.mxu0 0.0
    %1718 = vmatprep.subr.mxu0 0.0
    %1719 = vmatpush1.msra.mxu0 0.0
    %1720 = vmatprep.subr.mxu0 0.0
    %1721 = vmatpush1.msra.mxu0 0.0
    %1722 = vmatprep.subr.mxu0 0.0
    %1723 = vmatpush1.msra.mxu0 0.0
    %1724 = vmatprep.subr.mxu0 0.0
    %1725 = vmatpush1.msra.mxu0 0.0
    %1726 = vmatprep.subr.mxu0 0.0
    %1727 = vmatpush1.msra.mxu0 0.0
    %1728 = vmatprep.subr.mxu0 0.0
    %1729 = vmatpush1.msra.mxu0 0.0
    %1730 = vmatprep.subr.mxu0 0.0
    %1731 = vmatpush1.msra.mxu0 0.0
    %1732 = vmatprep.subr.mxu0 0.0
    %1733 = vmatpush1.msra.mxu0 0.0
    %1734 = vmatprep.subr.mxu0 0.0
    %1735 = vmatpush1.msra.mxu0 0.0
    %1736 = vmatprep.subr.mxu0 0.0
    %1737 = vmatpush1.msra.mxu0 0.0
    %1738 = vmatprep.subr.mxu0 0.0
    %1739 = vmatpush1.msra.mxu0 0.0
    %1740 = vmatprep.subr.mxu0 0.0
    %1741 = vmatpush1.msra.mxu0 0.0
    %1742 = vmatprep.subr.mxu0 0.0
    %1743 = vmatpush1.msra.mxu0 0.0
    %1744 = vmatprep.subr.mxu0 0.0
    %1745 = vmatpush1.msra.mxu0 0.0
    %1746 = vmatprep.subr.mxu0 0.0
    %1747 = vmatpush1.msra.mxu0 0.0
    %1748 = vmatprep.subr.mxu0 0.0
    %1749 = vmatpush1.msra.mxu0 0.0
    %1750 = vmatprep.subr.mxu0 0.0
    %1751 = vmatpush1.msra.mxu0 0.0
    %1752 = vmatprep.subr.mxu0 0.0
    %1753 = vmatpush1.msra.mxu0 0.0
    %1754 = vmatprep.subr.mxu0 0.0
    %1755 = vmatpush1.msra.mxu0 0.0
    %1756 = vmatprep.subr.mxu0 0.0
    %1757 = vmatpush1.msra.mxu0 0.0
    %1758 = vmatprep.subr.mxu0 0.0
    %1759 = vmatpush1.msra.mxu0 0.0
    %1760 = vmatprep.subr.mxu0 0.0
    %1761 = vmatpush1.msra.mxu0 0.0
    %1762 = vmatprep.subr.mxu0 0.0
    %1763 = vmatpush1.msra.mxu0 0.0
    %1764 = vmatprep.subr.mxu0 0.0
    %1765 = vmatpush1.msra.mxu0 0.0
    %1766 = vmatprep.subr.mxu0 0.0
    %1767 = vmatpush1.msra.mxu0 0.0
    %1768 = vmatprep.subr.mxu0 0.0
    %1769 = vmatpush1.msra.mxu0 0.0
    %1770 = vmatprep.mubr.f32.mxu0 0.0
    %1771 = vmatmul.mubr.f32.gmra.mrb[0].mxu0 %v1556
    %v1772 = vpop.f32.mrb[0].mxu0
    %v1773 = vadd.f32 %v261, %v1772
    %v1774 = vpop.f32.mrb[0].mxu0
    %1775 = vdwg.mxu0
    %s1776 = scalar_lea.vmem %s1, 16
    %v1777 = vld [vmem:[%s1776] sm:$0xf]
    %v1778 = vadd.f32 %v1777, %v1625
    %v1779 = vxor.u32 %v1778, 2147483648
    %v1780 = vmul.f32 %v1779, 1.442695
    %v1781 = vpow.pop %v1780
    %v1782 = vadd.f32 %v1781, 1.0
    %v1783 = vrcp.pop %v1782
    %v1784 = vmul.f32 1.0, %v1783
    %s1785 = scalar_lea.vmem %s2, 16
    %v1786 = vld [vmem:[%s1785] sm:$0xf]
    %v1787 = vadd.f32 %v1786, %v1699
    %v1788 = vxor.u32 %v1787, 2147483648
    %v1789 = vmul.f32 %v1788, 1.442695
    %v1790 = vpow.pop %v1789
    %v1791 = vadd.f32 %v1790, 1.0
    %v1792 = vrcp.pop %v1791
    %v1793 = vmul.f32 1.0, %v1792
    %s1794 = scalar_lea.vmem %s3, 16
    %v1795 = vld [vmem:[%s1794] sm:$0xf]
    %v1796 = vmul.f32 %v1784, %v1773
    %v1797 = vadd.f32 %v1795, %v1796
    %v1798 = vtanh.pop %v1797
    %v1799 = vsub.f32 1.0, %v1793
    %v1800 = vmul.f32 %v1799, %v1798
    %v1801 = vmul.f32 %v1793, %v1454
    %v1802 = vadd.f32 %v1800, %v1801
    %s1803 = sadd.s32 %s86, 4
    %v1804 = vstv %s1803
    %vm1805 = vcmp.lt.s32.totalorder %v1804, %v76
    %v1806 = vsel %vm1805, 1, 0
    %1807 = vset.pattern.permute.xlu0 0
    %1808 = vperm.xlu0 %1807, %v1806
    %v1809 = vpop.permute.xlu0 %1808
    %vm1810 = vcmp.eq.s32.totalorder %v1809, 1
    %v1811 = vsel %vm1810, %v1802, %v1454
    %v1812 = vsel %vm1810, %v1802, 0.0
    %v1813 = vld [vmem:[%s6] sm:$0xff]
    %v1814 = vld [vmem:[%s6 + $0x8] sm:$0xff]
    %v1815 = vld [vmem:[%s6 + $0x10] sm:$0xff]
    %v1816 = vld [vmem:[%s6 + $0x18] sm:$0xff]
    %v1818 = vsel %vm97, %v1812, 0
    %1820 = vmatprep.subr.mxu0 0.0
    %1821 = vmatpush1.msra.mxu0 %v1813
    %1822 = vmatprep.subr.mxu0 0.0
    %1823 = vmatpush1.msra.mxu0 %v1814
    %1824 = vmatprep.subr.mxu0 0.0
    %1825 = vmatpush1.msra.mxu0 %v1815
    %1826 = vmatprep.subr.mxu0 0.0
    %1827 = vmatpush1.msra.mxu0 %v1816
    %1828 = vmatprep.subr.mxu0 0.0
    %1829 = vmatpush1.msra.mxu0 0.0
    %1830 = vmatprep.subr.mxu0 0.0
    %1831 = vmatpush1.msra.mxu0 0.0
    %1832 = vmatprep.subr.mxu0 0.0
    %1833 = vmatpush1.msra.mxu0 0.0
    %1834 = vmatprep.subr.mxu0 0.0
    %1835 = vmatpush1.msra.mxu0 0.0
    %1836 = vmatprep.subr.mxu0 0.0
    %1837 = vmatpush1.msra.mxu0 0.0
    %1838 = vmatprep.subr.mxu0 0.0
    %1839 = vmatpush1.msra.mxu0 0.0
    %1840 = vmatprep.subr.mxu0 0.0
    %1841 = vmatpush1.msra.mxu0 0.0
    %1842 = vmatprep.subr.mxu0 0.0
    %1843 = vmatpush1.msra.mxu0 0.0
    %1844 = vmatprep.subr.mxu0 0.0
    %1845 = vmatpush1.msra.mxu0 0.0
    %1846 = vmatprep.subr.mxu0 0.0
    %1847 = vmatpush1.msra.mxu0 0.0
    %1848 = vmatprep.subr.mxu0 0.0
    %1849 = vmatpush1.msra.mxu0 0.0
    %1850 = vmatprep.subr.mxu0 0.0
    %1851 = vmatpush1.msra.mxu0 0.0
    %1852 = vmatprep.subr.mxu0 0.0
    %1853 = vmatpush1.msra.mxu0 0.0
    %1854 = vmatprep.subr.mxu0 0.0
    %1855 = vmatpush1.msra.mxu0 0.0
    %1856 = vmatprep.subr.mxu0 0.0
    %1857 = vmatpush1.msra.mxu0 0.0
    %1858 = vmatprep.subr.mxu0 0.0
    %1859 = vmatpush1.msra.mxu0 0.0
    %1860 = vmatprep.subr.mxu0 0.0
    %1861 = vmatpush1.msra.mxu0 0.0
    %1862 = vmatprep.subr.mxu0 0.0
    %1863 = vmatpush1.msra.mxu0 0.0
    %1864 = vmatprep.subr.mxu0 0.0
    %1865 = vmatpush1.msra.mxu0 0.0
    %1866 = vmatprep.subr.mxu0 0.0
    %1867 = vmatpush1.msra.mxu0 0.0
    %1868 = vmatprep.subr.mxu0 0.0
    %1869 = vmatpush1.msra.mxu0 0.0
    %1870 = vmatprep.subr.mxu0 0.0
    %1871 = vmatpush1.msra.mxu0 0.0
    %1872 = vmatprep.subr.mxu0 0.0
    %1873 = vmatpush1.msra.mxu0 0.0
    %1874 = vmatprep.subr.mxu0 0.0
    %1875 = vmatpush1.msra.mxu0 0.0
    %1876 = vmatprep.subr.mxu0 0.0
    %1877 = vmatpush1.msra.mxu0 0.0
    %1878 = vmatprep.subr.mxu0 0.0
    %1879 = vmatpush1.msra.mxu0 0.0
    %1880 = vmatprep.subr.mxu0 0.0
    %1881 = vmatpush1.msra.mxu0 0.0
    %1882 = vmatprep.subr.mxu0 0.0
    %1883 = vmatpush1.msra.mxu0 0.0
    %1884 = vmatprep.mubr.f32.mxu0 0.0
    %1885 = vmatmul.mubr.f32.gmra.mrb[0].mxu0 %v1818
    %v1886 = vpop.f32.mrb[0].mxu0
    %v1887 = vadd.f32 %v374, %v1886
    %v1888 = vpop.f32.mrb[0].mxu0
    %1889 = vdwg.mxu0
    %v1890 = vmax.f32 %v1887, 0.0
    %v1891 = vsel %vm450, %v1890, 0.0
    %1892 = vadd.xlane.f32.xlu0 %v1891
    %v1893 = vpop.xlane.xlu0 %1892
    %v1894 = vmul.f32 %v1893, %v454
    %v1895 = vsub.f32 %v1890, %v1894
    %v1896 = vmul.f32 %v1895, %v1895
    %v1897 = vsel %vm450, %v1896, 0.0
    %1898 = vadd.xlane.f32.xlu0 %v1897
    %v1899 = vpop.xlane.xlu0 %1898
    %v1900 = vmul.f32 %v1899, %v454
    %v1901 = vadd.f32 %v1900, 1e-05
    %v1902 = vrsqrt.pop %v1901
    %v1903 = vmul.f32 %v1895, %v1902
    %v1904 = vmul.f32 %v1903, %v469
    %v1905 = vadd.f32 %v1904, %v476
    %s1906 = scalar_lea.vmem %s12, 16
    %1907 = vst.msk [vmem:[%s1906] sm:$0xf] %vm450, %v1905
    %v1908 = vld [vmem:[%s4] sm:$0xff]
    %v1909 = vld [vmem:[%s4 + $0x8] sm:$0xff]
    %v1910 = vld [vmem:[%s4 + $0x10] sm:$0xff]
    %v1911 = vld [vmem:[%s4 + $0x18] sm:$0xff]
    %v1913 = vsel %vm97, %v1811, 0
    %1915 = vmatprep.subr.mxu0 0.0
    %1916 = vmatpush1.msra.mxu0 %v1908
    %1917 = vmatprep.subr.mxu0 0.0
    %1918 = vmatpush1.msra.mxu0 %v1909
    %1919 = vmatprep.subr.mxu0 0.0
    %1920 = vmatpush1.msra.mxu0 %v1910
    %1921 = vmatprep.subr.mxu0 0.0
    %1922 = vmatpush1.msra.mxu0 %v1911
    %1923 = vmatprep.subr.mxu0 0.0
    %1924 = vmatpush1.msra.mxu0 0.0
    %1925 = vmatprep.subr.mxu0 0.0
    %1926 = vmatpush1.msra.mxu0 0.0
    %1927 = vmatprep.subr.mxu0 0.0
    %1928 = vmatpush1.msra.mxu0 0.0
    %1929 = vmatprep.subr.mxu0 0.0
    %1930 = vmatpush1.msra.mxu0 0.0
    %1931 = vmatprep.subr.mxu0 0.0
    %1932 = vmatpush1.msra.mxu0 0.0
    %1933 = vmatprep.subr.mxu0 0.0
    %1934 = vmatpush1.msra.mxu0 0.0
    %1935 = vmatprep.subr.mxu0 0.0
    %1936 = vmatpush1.msra.mxu0 0.0
    %1937 = vmatprep.subr.mxu0 0.0
    %1938 = vmatpush1.msra.mxu0 0.0
    %1939 = vmatprep.subr.mxu0 0.0
    %1940 = vmatpush1.msra.mxu0 0.0
    %1941 = vmatprep.subr.mxu0 0.0
    %1942 = vmatpush1.msra.mxu0 0.0
    %1943 = vmatprep.subr.mxu0 0.0
    %1944 = vmatpush1.msra.mxu0 0.0
    %1945 = vmatprep.subr.mxu0 0.0
    %1946 = vmatpush1.msra.mxu0 0.0
    %1947 = vmatprep.subr.mxu0 0.0
    %1948 = vmatpush1.msra.mxu0 0.0
    %1949 = vmatprep.subr.mxu0 0.0
    %1950 = vmatpush1.msra.mxu0 0.0
    %1951 = vmatprep.subr.mxu0 0.0
    %1952 = vmatpush1.msra.mxu0 0.0
    %1953 = vmatprep.subr.mxu0 0.0
    %1954 = vmatpush1.msra.mxu0 0.0
    %1955 = vmatprep.subr.mxu0 0.0
    %1956 = vmatpush1.msra.mxu0 0.0
    %1957 = vmatprep.subr.mxu0 0.0
    %1958 = vmatpush1.msra.mxu0 0.0
    %1959 = vmatprep.subr.mxu0 0.0
    %1960 = vmatpush1.msra.mxu0 0.0
    %1961 = vmatprep.subr.mxu0 0.0
    %1962 = vmatpush1.msra.mxu0 0.0
    %1963 = vmatprep.subr.mxu0 0.0
    %1964 = vmatpush1.msra.mxu0 0.0
    %1965 = vmatprep.subr.mxu0 0.0
    %1966 = vmatpush1.msra.mxu0 0.0
    %1967 = vmatprep.subr.mxu0 0.0
    %1968 = vmatpush1.msra.mxu0 0.0
    %1969 = vmatprep.subr.mxu0 0.0
    %1970 = vmatpush1.msra.mxu0 0.0
    %1971 = vmatprep.subr.mxu0 0.0
    %1972 = vmatpush1.msra.mxu0 0.0
    %1973 = vmatprep.subr.mxu0 0.0
    %1974 = vmatpush1.msra.mxu0 0.0
    %1975 = vmatprep.subr.mxu0 0.0
    %1976 = vmatpush1.msra.mxu0 0.0
    %1977 = vmatprep.subr.mxu0 0.0
    %1978 = vmatpush1.msra.mxu0 0.0
    %1979 = vmatprep.mubr.f32.mxu0 0.0
    %1980 = vmatmul.mubr.f32.gmra.mrb[0].mxu0 %v1913
    %v1981 = vpop.f32.mrb[0].mxu0
    %v1982 = vadd.f32 %v95, %v1981
    %v1983 = vpop.f32.mrb[0].mxu0
    %1984 = vdwg.mxu0
    %v1985 = vld [vmem:[%s171] sm:$0xff]
    %v1986 = vld [vmem:[%s171 + $0x8] sm:$0xff]
    %v1987 = vld [vmem:[%s171 + $0x10] sm:$0xff]
    %v1988 = vld [vmem:[%s171 + $0x18] sm:$0xff]
    %1989 = vmatprep.subr.mxu0 0.0
    %1990 = vmatpush1.msra.mxu0 %v1985
    %1991 = vmatprep.subr.mxu0 0.0
    %1992 = vmatpush1.msra.mxu0 %v1986
    %1993 = vmatprep.subr.mxu0 0.0
    %1994 = vmatpush1.msra.mxu0 %v1987
    %1995 = vmatprep.subr.mxu0 0.0
    %1996 = vmatpush1.msra.mxu0 %v1988
    %1997 = vmatprep.subr.mxu0 0.0
    %1998 = vmatpush1.msra.mxu0 0.0
    %1999 = vmatprep.subr.mxu0 0.0
    %2000 = vmatpush1.msra.mxu0 0.0
    %2001 = vmatprep.subr.mxu0 0.0
    %2002 = vmatpush1.msra.mxu0 0.0
    %2003 = vmatprep.subr.mxu0 0.0
    %2004 = vmatpush1.msra.mxu0 0.0
    %2005 = vmatprep.subr.mxu0 0.0
    %2006 = vmatpush1.msra.mxu0 0.0
    %2007 = vmatprep.subr.mxu0 0.0
    %2008 = vmatpush1.msra.mxu0 0.0
    %2009 = vmatprep.subr.mxu0 0.0
    %2010 = vmatpush1.msra.mxu0 0.0
    %2011 = vmatprep.subr.mxu0 0.0
    %2012 = vmatpush1.msra.mxu0 0.0
    %2013 = vmatprep.subr.mxu0 0.0
    %2014 = vmatpush1.msra.mxu0 0.0
    %2015 = vmatprep.subr.mxu0 0.0
    %2016 = vmatpush1.msra.mxu0 0.0
    %2017 = vmatprep.subr.mxu0 0.0
    %2018 = vmatpush1.msra.mxu0 0.0
    %2019 = vmatprep.subr.mxu0 0.0
    %2020 = vmatpush1.msra.mxu0 0.0
    %2021 = vmatprep.subr.mxu0 0.0
    %2022 = vmatpush1.msra.mxu0 0.0
    %2023 = vmatprep.subr.mxu0 0.0
    %2024 = vmatpush1.msra.mxu0 0.0
    %2025 = vmatprep.subr.mxu0 0.0
    %2026 = vmatpush1.msra.mxu0 0.0
    %2027 = vmatprep.subr.mxu0 0.0
    %2028 = vmatpush1.msra.mxu0 0.0
    %2029 = vmatprep.subr.mxu0 0.0
    %2030 = vmatpush1.msra.mxu0 0.0
    %2031 = vmatprep.subr.mxu0 0.0
    %2032 = vmatpush1.msra.mxu0 0.0
    %2033 = vmatprep.subr.mxu0 0.0
    %2034 = vmatpush1.msra.mxu0 0.0
    %2035 = vmatprep.subr.mxu0 0.0
    %2036 = vmatpush1.msra.mxu0 0.0
    %2037 = vmatprep.subr.mxu0 0.0
    %2038 = vmatpush1.msra.mxu0 0.0
    %2039 = vmatprep.subr.mxu0 0.0
    %2040 = vmatpush1.msra.mxu0 0.0
    %2041 = vmatprep.subr.mxu0 0.0
    %2042 = vmatpush1.msra.mxu0 0.0
    %2043 = vmatprep.subr.mxu0 0.0
    %2044 = vmatpush1.msra.mxu0 0.0
    %2045 = vmatprep.subr.mxu0 0.0
    %2046 = vmatpush1.msra.mxu0 0.0
    %2047 = vmatprep.subr.mxu0 0.0
    %2048 = vmatpush1.msra.mxu0 0.0
    %2049 = vmatprep.subr.mxu0 0.0
    %2050 = vmatpush1.msra.mxu0 0.0
    %2051 = vmatprep.subr.mxu0 0.0
    %2052 = vmatpush1.msra.mxu0 0.0
    %2053 = vmatprep.mubr.f32.mxu0 0.0
    %2054 = vmatmul.mubr.f32.gmra.mrb[0].mxu0 %v1913
    %v2055 = vpop.f32.mrb[0].mxu0
    %v2056 = vadd.f32 %v180, %v2055
    %v2057 = vpop.f32.mrb[0].mxu0
    %2058 = vdwg.mxu0
    %v2059 = vld [vmem:[%s252] sm:$0xff]
    %v2060 = vld [vmem:[%s252 + $0x8] sm:$0xff]
    %v2061 = vld [vmem:[%s252 + $0x10] sm:$0xff]
    %v2062 = vld [vmem:[%s252 + $0x18] sm:$0xff]
    %2063 = vmatprep.subr.mxu0 0.0
    %2064 = vmatpush1.msra.mxu0 %v2059
    %2065 = vmatprep.subr.mxu0 0.0
    %2066 = vmatpush1.msra.mxu0 %v2060
    %2067 = vmatprep.subr.mxu0 0.0
    %2068 = vmatpush1.msra.mxu0 %v2061
    %2069 = vmatprep.subr.mxu0 0.0
    %2070 = vmatpush1.msra.mxu0 %v2062
    %2071 = vmatprep.subr.mxu0 0.0
    %2072 = vmatpush1.msra.mxu0 0.0
    %2073 = vmatprep.subr.mxu0 0.0
    %2074 = vmatpush1.msra.mxu0 0.0
    %2075 = vmatprep.subr.mxu0 0.0
    %2076 = vmatpush1.msra.mxu0 0.0
    %2077 = vmatprep.subr.mxu0 0.0
    %2078 = vmatpush1.msra.mxu0 0.0
    %2079 = vmatprep.subr.mxu0 0.0
    %2080 = vmatpush1.msra.mxu0 0.0
    %2081 = vmatprep.subr.mxu0 0.0
    %2082 = vmatpush1.msra.mxu0 0.0
    %2083 = vmatprep.subr.mxu0 0.0
    %2084 = vmatpush1.msra.mxu0 0.0
    %2085 = vmatprep.subr.mxu0 0.0
    %2086 = vmatpush1.msra.mxu0 0.0
    %2087 = vmatprep.subr.mxu0 0.0
    %2088 = vmatpush1.msra.mxu0 0.0
    %2089 = vmatprep.subr.mxu0 0.0
    %2090 = vmatpush1.msra.mxu0 0.0
    %2091 = vmatprep.subr.mxu0 0.0
    %2092 = vmatpush1.msra.mxu0 0.0
    %2093 = vmatprep.subr.mxu0 0.0
    %2094 = vmatpush1.msra.mxu0 0.0
    %2095 = vmatprep.subr.mxu0 0.0
    %2096 = vmatpush1.msra.mxu0 0.0
    %2097 = vmatprep.subr.mxu0 0.0
    %2098 = vmatpush1.msra.mxu0 0.0
    %2099 = vmatprep.subr.mxu0 0.0
    %2100 = vmatpush1.msra.mxu0 0.0
    %2101 = vmatprep.subr.mxu0 0.0
    %2102 = vmatpush1.msra.mxu0 0.0
    %2103 = vmatprep.subr.mxu0 0.0
    %2104 = vmatpush1.msra.mxu0 0.0
    %2105 = vmatprep.subr.mxu0 0.0
    %2106 = vmatpush1.msra.mxu0 0.0
    %2107 = vmatprep.subr.mxu0 0.0
    %2108 = vmatpush1.msra.mxu0 0.0
    %2109 = vmatprep.subr.mxu0 0.0
    %2110 = vmatpush1.msra.mxu0 0.0
    %2111 = vmatprep.subr.mxu0 0.0
    %2112 = vmatpush1.msra.mxu0 0.0
    %2113 = vmatprep.subr.mxu0 0.0
    %2114 = vmatpush1.msra.mxu0 0.0
    %2115 = vmatprep.subr.mxu0 0.0
    %2116 = vmatpush1.msra.mxu0 0.0
    %2117 = vmatprep.subr.mxu0 0.0
    %2118 = vmatpush1.msra.mxu0 0.0
    %2119 = vmatprep.subr.mxu0 0.0
    %2120 = vmatpush1.msra.mxu0 0.0
    %2121 = vmatprep.subr.mxu0 0.0
    %2122 = vmatpush1.msra.mxu0 0.0
    %2123 = vmatprep.subr.mxu0 0.0
    %2124 = vmatpush1.msra.mxu0 0.0
    %2125 = vmatprep.subr.mxu0 0.0
    %2126 = vmatpush1.msra.mxu0 0.0
    %2127 = vmatprep.mubr.f32.mxu0 0.0
    %2128 = vmatmul.mubr.f32.gmra.mrb[0].mxu0 %v1913
    %v2129 = vpop.f32.mrb[0].mxu0
    %v2130 = vadd.f32 %v261, %v2129
    %v2131 = vpop.f32.mrb[0].mxu0
    %2132 = vdwg.mxu0
    %s2133 = scalar_lea.vmem %s1, 20
    %v2134 = vld [vmem:[%s2133] sm:$0xf]
    %v2135 = vadd.f32 %v2134, %v1982
    %v2136 = vxor.u32 %v2135, 2147483648
    %v2137 = vmul.f32 %v2136, 1.442695
    %v2138 = vpow.pop %v2137
    %v2139 = vadd.f32 %v2138, 1.0
    %v2140 = vrcp.pop %v2139
    %v2141 = vmul.f32 1.0, %v2140
    %s2142 = scalar_lea.vmem %s2, 20
    %v2143 = vld [vmem:[%s2142] sm:$0xf]
    %v2144 = vadd.f32 %v2143, %v2056
    %v2145 = vxor.u32 %v2144, 2147483648
    %v2146 = vmul.f32 %v2145, 1.442695
    %v2147 = vpow.pop %v2146
    %v2148 = vadd.f32 %v2147, 1.0
    %v2149 = vrcp.pop %v2148
    %v2150 = vmul.f32 1.0, %v2149
    %s2151 = scalar_lea.vmem %s3, 20
    %v2152 = vld [vmem:[%s2151] sm:$0xf]
    %v2153 = vmul.f32 %v2141, %v2130
    %v2154 = vadd.f32 %v2152, %v2153
    %v2155 = vtanh.pop %v2154
    %v2156 = vsub.f32 1.0, %v2150
    %v2157 = vmul.f32 %v2156, %v2155
    %v2158 = vmul.f32 %v2150, %v1811
    %v2159 = vadd.f32 %v2157, %v2158
    %s2160 = sadd.s32 %s86, 5
    %v2161 = vstv %s2160
    %vm2162 = vcmp.lt.s32.totalorder %v2161, %v76
    %v2163 = vsel %vm2162, 1, 0
    %2164 = vset.pattern.permute.xlu0 0
    %2165 = vperm.xlu0 %2164, %v2163
    %v2166 = vpop.permute.xlu0 %2165
    %vm2167 = vcmp.eq.s32.totalorder %v2166, 1
    %v2168 = vsel %vm2167, %v2159, %v1811
    %v2169 = vsel %vm2167, %v2159, 0.0
    %v2170 = vld [vmem:[%s6] sm:$0xff]
    %v2171 = vld [vmem:[%s6 + $0x8] sm:$0xff]
    %v2172 = vld [vmem:[%s6 + $0x10] sm:$0xff]
    %v2173 = vld [vmem:[%s6 + $0x18] sm:$0xff]
    %v2175 = vsel %vm97, %v2169, 0
    %2177 = vmatprep.subr.mxu0 0.0
    %2178 = vmatpush1.msra.mxu0 %v2170
    %2179 = vmatprep.subr.mxu0 0.0
    %2180 = vmatpush1.msra.mxu0 %v2171
    %2181 = vmatprep.subr.mxu0 0.0
    %2182 = vmatpush1.msra.mxu0 %v2172
    %2183 = vmatprep.subr.mxu0 0.0
    %2184 = vmatpush1.msra.mxu0 %v2173
    %2185 = vmatprep.subr.mxu0 0.0
    %2186 = vmatpush1.msra.mxu0 0.0
    %2187 = vmatprep.subr.mxu0 0.0
    %2188 = vmatpush1.msra.mxu0 0.0
    %2189 = vmatprep.subr.mxu0 0.0
    %2190 = vmatpush1.msra.mxu0 0.0
    %2191 = vmatprep.subr.mxu0 0.0
    %2192 = vmatpush1.msra.mxu0 0.0
    %2193 = vmatprep.subr.mxu0 0.0
    %2194 = vmatpush1.msra.mxu0 0.0
    %2195 = vmatprep.subr.mxu0 0.0
    %2196 = vmatpush1.msra.mxu0 0.0
    %2197 = vmatprep.subr.mxu0 0.0
    %2198 = vmatpush1.msra.mxu0 0.0
    %2199 = vmatprep.subr.mxu0 0.0
    %2200 = vmatpush1.msra.mxu0 0.0
    %2201 = vmatprep.subr.mxu0 0.0
    %2202 = vmatpush1.msra.mxu0 0.0
    %2203 = vmatprep.subr.mxu0 0.0
    %2204 = vmatpush1.msra.mxu0 0.0
    %2205 = vmatprep.subr.mxu0 0.0
    %2206 = vmatpush1.msra.mxu0 0.0
    %2207 = vmatprep.subr.mxu0 0.0
    %2208 = vmatpush1.msra.mxu0 0.0
    %2209 = vmatprep.subr.mxu0 0.0
    %2210 = vmatpush1.msra.mxu0 0.0
    %2211 = vmatprep.subr.mxu0 0.0
    %2212 = vmatpush1.msra.mxu0 0.0
    %2213 = vmatprep.subr.mxu0 0.0
    %2214 = vmatpush1.msra.mxu0 0.0
    %2215 = vmatprep.subr.mxu0 0.0
    %2216 = vmatpush1.msra.mxu0 0.0
    %2217 = vmatprep.subr.mxu0 0.0
    %2218 = vmatpush1.msra.mxu0 0.0
    %2219 = vmatprep.subr.mxu0 0.0
    %2220 = vmatpush1.msra.mxu0 0.0
    %2221 = vmatprep.subr.mxu0 0.0
    %2222 = vmatpush1.msra.mxu0 0.0
    %2223 = vmatprep.subr.mxu0 0.0
    %2224 = vmatpush1.msra.mxu0 0.0
    %2225 = vmatprep.subr.mxu0 0.0
    %2226 = vmatpush1.msra.mxu0 0.0
    %2227 = vmatprep.subr.mxu0 0.0
    %2228 = vmatpush1.msra.mxu0 0.0
    %2229 = vmatprep.subr.mxu0 0.0
    %2230 = vmatpush1.msra.mxu0 0.0
    %2231 = vmatprep.subr.mxu0 0.0
    %2232 = vmatpush1.msra.mxu0 0.0
    %2233 = vmatprep.subr.mxu0 0.0
    %2234 = vmatpush1.msra.mxu0 0.0
    %2235 = vmatprep.subr.mxu0 0.0
    %2236 = vmatpush1.msra.mxu0 0.0
    %2237 = vmatprep.subr.mxu0 0.0
    %2238 = vmatpush1.msra.mxu0 0.0
    %2239 = vmatprep.subr.mxu0 0.0
    %2240 = vmatpush1.msra.mxu0 0.0
    %2241 = vmatprep.mubr.f32.mxu0 0.0
    %2242 = vmatmul.mubr.f32.gmra.mrb[0].mxu0 %v2175
    %v2243 = vpop.f32.mrb[0].mxu0
    %v2244 = vadd.f32 %v374, %v2243
    %v2245 = vpop.f32.mrb[0].mxu0
    %2246 = vdwg.mxu0
    %v2247 = vmax.f32 %v2244, 0.0
    %v2248 = vsel %vm450, %v2247, 0.0
    %2249 = vadd.xlane.f32.xlu0 %v2248
    %v2250 = vpop.xlane.xlu0 %2249
    %v2251 = vmul.f32 %v2250, %v454
    %v2252 = vsub.f32 %v2247, %v2251
    %v2253 = vmul.f32 %v2252, %v2252
    %v2254 = vsel %vm450, %v2253, 0.0
    %2255 = vadd.xlane.f32.xlu0 %v2254
    %v2256 = vpop.xlane.xlu0 %2255
    %v2257 = vmul.f32 %v2256, %v454
    %v2258 = vadd.f32 %v2257, 1e-05
    %v2259 = vrsqrt.pop %v2258
    %v2260 = vmul.f32 %v2252, %v2259
    %v2261 = vmul.f32 %v2260, %v469
    %v2262 = vadd.f32 %v2261, %v476
    %s2263 = scalar_lea.vmem %s12, 20
    %2264 = vst.msk [vmem:[%s2263] sm:$0xf] %vm450, %v2262
    %v2265 = vld [vmem:[%s4] sm:$0xff]
    %v2266 = vld [vmem:[%s4 + $0x8] sm:$0xff]
    %v2267 = vld [vmem:[%s4 + $0x10] sm:$0xff]
    %v2268 = vld [vmem:[%s4 + $0x18] sm:$0xff]
    %v2270 = vsel %vm97, %v2168, 0
    %2272 = vmatprep.subr.mxu0 0.0
    %2273 = vmatpush1.msra.mxu0 %v2265
    %2274 = vmatprep.subr.mxu0 0.0
    %2275 = vmatpush1.msra.mxu0 %v2266
    %2276 = vmatprep.subr.mxu0 0.0
    %2277 = vmatpush1.msra.mxu0 %v2267
    %2278 = vmatprep.subr.mxu0 0.0
    %2279 = vmatpush1.msra.mxu0 %v2268
    %2280 = vmatprep.subr.mxu0 0.0
    %2281 = vmatpush1.msra.mxu0 0.0
    %2282 = vmatprep.subr.mxu0 0.0
    %2283 = vmatpush1.msra.mxu0 0.0
    %2284 = vmatprep.subr.mxu0 0.0
    %2285 = vmatpush1.msra.mxu0 0.0
    %2286 = vmatprep.subr.mxu0 0.0
    %2287 = vmatpush1.msra.mxu0 0.0
    %2288 = vmatprep.subr.mxu0 0.0
    %2289 = vmatpush1.msra.mxu0 0.0
    %2290 = vmatprep.subr.mxu0 0.0
    %2291 = vmatpush1.msra.mxu0 0.0
    %2292 = vmatprep.subr.mxu0 0.0
    %2293 = vmatpush1.msra.mxu0 0.0
    %2294 = vmatprep.subr.mxu0 0.0
    %2295 = vmatpush1.msra.mxu0 0.0
    %2296 = vmatprep.subr.mxu0 0.0
    %2297 = vmatpush1.msra.mxu0 0.0
    %2298 = vmatprep.subr.mxu0 0.0
    %2299 = vmatpush1.msra.mxu0 0.0
    %2300 = vmatprep.subr.mxu0 0.0
    %2301 = vmatpush1.msra.mxu0 0.0
    %2302 = vmatprep.subr.mxu0 0.0
    %2303 = vmatpush1.msra.mxu0 0.0
    %2304 = vmatprep.subr.mxu0 0.0
    %2305 = vmatpush1.msra.mxu0 0.0
    %2306 = vmatprep.subr.mxu0 0.0
    %2307 = vmatpush1.msra.mxu0 0.0
    %2308 = vmatprep.subr.mxu0 0.0
    %2309 = vmatpush1.msra.mxu0 0.0
    %2310 = vmatprep.subr.mxu0 0.0
    %2311 = vmatpush1.msra.mxu0 0.0
    %2312 = vmatprep.subr.mxu0 0.0
    %2313 = vmatpush1.msra.mxu0 0.0
    %2314 = vmatprep.subr.mxu0 0.0
    %2315 = vmatpush1.msra.mxu0 0.0
    %2316 = vmatprep.subr.mxu0 0.0
    %2317 = vmatpush1.msra.mxu0 0.0
    %2318 = vmatprep.subr.mxu0 0.0
    %2319 = vmatpush1.msra.mxu0 0.0
    %2320 = vmatprep.subr.mxu0 0.0
    %2321 = vmatpush1.msra.mxu0 0.0
    %2322 = vmatprep.subr.mxu0 0.0
    %2323 = vmatpush1.msra.mxu0 0.0
    %2324 = vmatprep.subr.mxu0 0.0
    %2325 = vmatpush1.msra.mxu0 0.0
    %2326 = vmatprep.subr.mxu0 0.0
    %2327 = vmatpush1.msra.mxu0 0.0
    %2328 = vmatprep.subr.mxu0 0.0
    %2329 = vmatpush1.msra.mxu0 0.0
    %2330 = vmatprep.subr.mxu0 0.0
    %2331 = vmatpush1.msra.mxu0 0.0
    %2332 = vmatprep.subr.mxu0 0.0
    %2333 = vmatpush1.msra.mxu0 0.0
    %2334 = vmatprep.subr.mxu0 0.0
    %2335 = vmatpush1.msra.mxu0 0.0
    %2336 = vmatprep.mubr.f32.mxu0 0.0
    %2337 = vmatmul.mubr.f32.gmra.mrb[0].mxu0 %v2270
    %v2338 = vpop.f32.mrb[0].mxu0
    %v2339 = vadd.f32 %v95, %v2338
    %v2340 = vpop.f32.mrb[0].mxu0
    %2341 = vdwg.mxu0
    %v2342 = vld [vmem:[%s171] sm:$0xff]
    %v2343 = vld [vmem:[%s171 + $0x8] sm:$0xff]
    %v2344 = vld [vmem:[%s171 + $0x10] sm:$0xff]
    %v2345 = vld [vmem:[%s171 + $0x18] sm:$0xff]
    %2346 = vmatprep.subr.mxu0 0.0
    %2347 = vmatpush1.msra.mxu0 %v2342
    %2348 = vmatprep.subr.mxu0 0.0
    %2349 = vmatpush1.msra.mxu0 %v2343
    %2350 = vmatprep.subr.mxu0 0.0
    %2351 = vmatpush1.msra.mxu0 %v2344
    %2352 = vmatprep.subr.mxu0 0.0
    %2353 = vmatpush1.msra.mxu0 %v2345
    %2354 = vmatprep.subr.mxu0 0.0
    %2355 = vmatpush1.msra.mxu0 0.0
    %2356 = vmatprep.subr.mxu0 0.0
    %2357 = vmatpush1.msra.mxu0 0.0
    %2358 = vmatprep.subr.mxu0 0.0
    %2359 = vmatpush1.msra.mxu0 0.0
    %2360 = vmatprep.subr.mxu0 0.0
    %2361 = vmatpush1.msra.mxu0 0.0
    %2362 = vmatprep.subr.mxu0 0.0
    %2363 = vmatpush1.msra.mxu0 0.0
    %2364 = vmatprep.subr.mxu0 0.0
    %2365 = vmatpush1.msra.mxu0 0.0
    %2366 = vmatprep.subr.mxu0 0.0
    %2367 = vmatpush1.msra.mxu0 0.0
    %2368 = vmatprep.subr.mxu0 0.0
    %2369 = vmatpush1.msra.mxu0 0.0
    %2370 = vmatprep.subr.mxu0 0.0
    %2371 = vmatpush1.msra.mxu0 0.0
    %2372 = vmatprep.subr.mxu0 0.0
    %2373 = vmatpush1.msra.mxu0 0.0
    %2374 = vmatprep.subr.mxu0 0.0
    %2375 = vmatpush1.msra.mxu0 0.0
    %2376 = vmatprep.subr.mxu0 0.0
    %2377 = vmatpush1.msra.mxu0 0.0
    %2378 = vmatprep.subr.mxu0 0.0
    %2379 = vmatpush1.msra.mxu0 0.0
    %2380 = vmatprep.subr.mxu0 0.0
    %2381 = vmatpush1.msra.mxu0 0.0
    %2382 = vmatprep.subr.mxu0 0.0
    %2383 = vmatpush1.msra.mxu0 0.0
    %2384 = vmatprep.subr.mxu0 0.0
    %2385 = vmatpush1.msra.mxu0 0.0
    %2386 = vmatprep.subr.mxu0 0.0
    %2387 = vmatpush1.msra.mxu0 0.0
    %2388 = vmatprep.subr.mxu0 0.0
    %2389 = vmatpush1.msra.mxu0 0.0
    %2390 = vmatprep.subr.mxu0 0.0
    %2391 = vmatpush1.msra.mxu0 0.0
    %2392 = vmatprep.subr.mxu0 0.0
    %2393 = vmatpush1.msra.mxu0 0.0
    %2394 = vmatprep.subr.mxu0 0.0
    %2395 = vmatpush1.msra.mxu0 0.0
    %2396 = vmatprep.subr.mxu0 0.0
    %2397 = vmatpush1.msra.mxu0 0.0
    %2398 = vmatprep.subr.mxu0 0.0
    %2399 = vmatpush1.msra.mxu0 0.0
    %2400 = vmatprep.subr.mxu0 0.0
    %2401 = vmatpush1.msra.mxu0 0.0
    %2402 = vmatprep.subr.mxu0 0.0
    %2403 = vmatpush1.msra.mxu0 0.0
    %2404 = vmatprep.subr.mxu0 0.0
    %2405 = vmatpush1.msra.mxu0 0.0
    %2406 = vmatprep.subr.mxu0 0.0
    %2407 = vmatpush1.msra.mxu0 0.0
    %2408 = vmatprep.subr.mxu0 0.0
    %2409 = vmatpush1.msra.mxu0 0.0
    %2410 = vmatprep.mubr.f32.mxu0 0.0
    %2411 = vmatmul.mubr.f32.gmra.mrb[0].mxu0 %v2270
    %v2412 = vpop.f32.mrb[0].mxu0
    %v2413 = vadd.f32 %v180, %v2412
    %v2414 = vpop.f32.mrb[0].mxu0
    %2415 = vdwg.mxu0
    %v2416 = vld [vmem:[%s252] sm:$0xff]
    %v2417 = vld [vmem:[%s252 + $0x8] sm:$0xff]
    %v2418 = vld [vmem:[%s252 + $0x10] sm:$0xff]
    %v2419 = vld [vmem:[%s252 + $0x18] sm:$0xff]
    %2420 = vmatprep.subr.mxu0 0.0
    %2421 = vmatpush1.msra.mxu0 %v2416
    %2422 = vmatprep.subr.mxu0 0.0
    %2423 = vmatpush1.msra.mxu0 %v2417
    %2424 = vmatprep.subr.mxu0 0.0
    %2425 = vmatpush1.msra.mxu0 %v2418
    %2426 = vmatprep.subr.mxu0 0.0
    %2427 = vmatpush1.msra.mxu0 %v2419
    %2428 = vmatprep.subr.mxu0 0.0
    %2429 = vmatpush1.msra.mxu0 0.0
    %2430 = vmatprep.subr.mxu0 0.0
    %2431 = vmatpush1.msra.mxu0 0.0
    %2432 = vmatprep.subr.mxu0 0.0
    %2433 = vmatpush1.msra.mxu0 0.0
    %2434 = vmatprep.subr.mxu0 0.0
    %2435 = vmatpush1.msra.mxu0 0.0
    %2436 = vmatprep.subr.mxu0 0.0
    %2437 = vmatpush1.msra.mxu0 0.0
    %2438 = vmatprep.subr.mxu0 0.0
    %2439 = vmatpush1.msra.mxu0 0.0
    %2440 = vmatprep.subr.mxu0 0.0
    %2441 = vmatpush1.msra.mxu0 0.0
    %2442 = vmatprep.subr.mxu0 0.0
    %2443 = vmatpush1.msra.mxu0 0.0
    %2444 = vmatprep.subr.mxu0 0.0
    %2445 = vmatpush1.msra.mxu0 0.0
    %2446 = vmatprep.subr.mxu0 0.0
    %2447 = vmatpush1.msra.mxu0 0.0
    %2448 = vmatprep.subr.mxu0 0.0
    %2449 = vmatpush1.msra.mxu0 0.0
    %2450 = vmatprep.subr.mxu0 0.0
    %2451 = vmatpush1.msra.mxu0 0.0
    %2452 = vmatprep.subr.mxu0 0.0
    %2453 = vmatpush1.msra.mxu0 0.0
    %2454 = vmatprep.subr.mxu0 0.0
    %2455 = vmatpush1.msra.mxu0 0.0
    %2456 = vmatprep.subr.mxu0 0.0
    %2457 = vmatpush1.msra.mxu0 0.0
    %2458 = vmatprep.subr.mxu0 0.0
    %2459 = vmatpush1.msra.mxu0 0.0
    %2460 = vmatprep.subr.mxu0 0.0
    %2461 = vmatpush1.msra.mxu0 0.0
    %2462 = vmatprep.subr.mxu0 0.0
    %2463 = vmatpush1.msra.mxu0 0.0
    %2464 = vmatprep.subr.mxu0 0.0
    %2465 = vmatpush1.msra.mxu0 0.0
    %2466 = vmatprep.subr.mxu0 0.0
    %2467 = vmatpush1.msra.mxu0 0.0
    %2468 = vmatprep.subr.mxu0 0.0
    %2469 = vmatpush1.msra.mxu0 0.0
    %2470 = vmatprep.subr.mxu0 0.0
    %2471 = vmatpush1.msra.mxu0 0.0
    %2472 = vmatprep.subr.mxu0 0.0
    %2473 = vmatpush1.msra.mxu0 0.0
    %2474 = vmatprep.subr.mxu0 0.0
    %2475 = vmatpush1.msra.mxu0 0.0
    %2476 = vmatprep.subr.mxu0 0.0
    %2477 = vmatpush1.msra.mxu0 0.0
    %2478 = vmatprep.subr.mxu0 0.0
    %2479 = vmatpush1.msra.mxu0 0.0
    %2480 = vmatprep.subr.mxu0 0.0
    %2481 = vmatpush1.msra.mxu0 0.0
    %2482 = vmatprep.subr.mxu0 0.0
    %2483 = vmatpush1.msra.mxu0 0.0
    %2484 = vmatprep.mubr.f32.mxu0 0.0
    %2485 = vmatmul.mubr.f32.gmra.mrb[0].mxu0 %v2270
    %v2486 = vpop.f32.mrb[0].mxu0
    %v2487 = vadd.f32 %v261, %v2486
    %v2488 = vpop.f32.mrb[0].mxu0
    %2489 = vdwg.mxu0
    %s2490 = scalar_lea.vmem %s1, 24
    %v2491 = vld [vmem:[%s2490] sm:$0xf]
    %v2492 = vadd.f32 %v2491, %v2339
    %v2493 = vxor.u32 %v2492, 2147483648
    %v2494 = vmul.f32 %v2493, 1.442695
    %v2495 = vpow.pop %v2494
    %v2496 = vadd.f32 %v2495, 1.0
    %v2497 = vrcp.pop %v2496
    %v2498 = vmul.f32 1.0, %v2497
    %s2499 = scalar_lea.vmem %s2, 24
    %v2500 = vld [vmem:[%s2499] sm:$0xf]
    %v2501 = vadd.f32 %v2500, %v2413
    %v2502 = vxor.u32 %v2501, 2147483648
    %v2503 = vmul.f32 %v2502, 1.442695
    %v2504 = vpow.pop %v2503
    %v2505 = vadd.f32 %v2504, 1.0
    %v2506 = vrcp.pop %v2505
    %v2507 = vmul.f32 1.0, %v2506
    %s2508 = scalar_lea.vmem %s3, 24
    %v2509 = vld [vmem:[%s2508] sm:$0xf]
    %v2510 = vmul.f32 %v2498, %v2487
    %v2511 = vadd.f32 %v2509, %v2510
    %v2512 = vtanh.pop %v2511
    %v2513 = vsub.f32 1.0, %v2507
    %v2514 = vmul.f32 %v2513, %v2512
    %v2515 = vmul.f32 %v2507, %v2168
    %v2516 = vadd.f32 %v2514, %v2515
    %s2517 = sadd.s32 %s86, 6
    %v2518 = vstv %s2517
    %vm2519 = vcmp.lt.s32.totalorder %v2518, %v76
    %v2520 = vsel %vm2519, 1, 0
    %2521 = vset.pattern.permute.xlu0 0
    %2522 = vperm.xlu0 %2521, %v2520
    %v2523 = vpop.permute.xlu0 %2522
    %vm2524 = vcmp.eq.s32.totalorder %v2523, 1
    %v2525 = vsel %vm2524, %v2516, %v2168
    %v2526 = vsel %vm2524, %v2516, 0.0
    %v2527 = vld [vmem:[%s6] sm:$0xff]
    %v2528 = vld [vmem:[%s6 + $0x8] sm:$0xff]
    %v2529 = vld [vmem:[%s6 + $0x10] sm:$0xff]
    %v2530 = vld [vmem:[%s6 + $0x18] sm:$0xff]
    %v2532 = vsel %vm97, %v2526, 0
    %2534 = vmatprep.subr.mxu0 0.0
    %2535 = vmatpush1.msra.mxu0 %v2527
    %2536 = vmatprep.subr.mxu0 0.0
    %2537 = vmatpush1.msra.mxu0 %v2528
    %2538 = vmatprep.subr.mxu0 0.0
    %2539 = vmatpush1.msra.mxu0 %v2529
    %2540 = vmatprep.subr.mxu0 0.0
    %2541 = vmatpush1.msra.mxu0 %v2530
    %2542 = vmatprep.subr.mxu0 0.0
    %2543 = vmatpush1.msra.mxu0 0.0
    %2544 = vmatprep.subr.mxu0 0.0
    %2545 = vmatpush1.msra.mxu0 0.0
    %2546 = vmatprep.subr.mxu0 0.0
    %2547 = vmatpush1.msra.mxu0 0.0
    %2548 = vmatprep.subr.mxu0 0.0
    %2549 = vmatpush1.msra.mxu0 0.0
    %2550 = vmatprep.subr.mxu0 0.0
    %2551 = vmatpush1.msra.mxu0 0.0
    %2552 = vmatprep.subr.mxu0 0.0
    %2553 = vmatpush1.msra.mxu0 0.0
    %2554 = vmatprep.subr.mxu0 0.0
    %2555 = vmatpush1.msra.mxu0 0.0
    %2556 = vmatprep.subr.mxu0 0.0
    %2557 = vmatpush1.msra.mxu0 0.0
    %2558 = vmatprep.subr.mxu0 0.0
    %2559 = vmatpush1.msra.mxu0 0.0
    %2560 = vmatprep.subr.mxu0 0.0
    %2561 = vmatpush1.msra.mxu0 0.0
    %2562 = vmatprep.subr.mxu0 0.0
    %2563 = vmatpush1.msra.mxu0 0.0
    %2564 = vmatprep.subr.mxu0 0.0
    %2565 = vmatpush1.msra.mxu0 0.0
    %2566 = vmatprep.subr.mxu0 0.0
    %2567 = vmatpush1.msra.mxu0 0.0
    %2568 = vmatprep.subr.mxu0 0.0
    %2569 = vmatpush1.msra.mxu0 0.0
    %2570 = vmatprep.subr.mxu0 0.0
    %2571 = vmatpush1.msra.mxu0 0.0
    %2572 = vmatprep.subr.mxu0 0.0
    %2573 = vmatpush1.msra.mxu0 0.0
    %2574 = vmatprep.subr.mxu0 0.0
    %2575 = vmatpush1.msra.mxu0 0.0
    %2576 = vmatprep.subr.mxu0 0.0
    %2577 = vmatpush1.msra.mxu0 0.0
    %2578 = vmatprep.subr.mxu0 0.0
    %2579 = vmatpush1.msra.mxu0 0.0
    %2580 = vmatprep.subr.mxu0 0.0
    %2581 = vmatpush1.msra.mxu0 0.0
    %2582 = vmatprep.subr.mxu0 0.0
    %2583 = vmatpush1.msra.mxu0 0.0
    %2584 = vmatprep.subr.mxu0 0.0
    %2585 = vmatpush1.msra.mxu0 0.0
    %2586 = vmatprep.subr.mxu0 0.0
    %2587 = vmatpush1.msra.mxu0 0.0
    %2588 = vmatprep.subr.mxu0 0.0
    %2589 = vmatpush1.msra.mxu0 0.0
    %2590 = vmatprep.subr.mxu0 0.0
    %2591 = vmatpush1.msra.mxu0 0.0
    %2592 = vmatprep.subr.mxu0 0.0
    %2593 = vmatpush1.msra.mxu0 0.0
    %2594 = vmatprep.subr.mxu0 0.0
    %2595 = vmatpush1.msra.mxu0 0.0
    %2596 = vmatprep.subr.mxu0 0.0
    %2597 = vmatpush1.msra.mxu0 0.0
    %2598 = vmatprep.mubr.f32.mxu0 0.0
    %2599 = vmatmul.mubr.f32.gmra.mrb[0].mxu0 %v2532
    %v2600 = vpop.f32.mrb[0].mxu0
    %v2601 = vadd.f32 %v374, %v2600
    %v2602 = vpop.f32.mrb[0].mxu0
    %2603 = vdwg.mxu0
    %v2604 = vmax.f32 %v2601, 0.0
    %v2605 = vsel %vm450, %v2604, 0.0
    %2606 = vadd.xlane.f32.xlu0 %v2605
    %v2607 = vpop.xlane.xlu0 %2606
    %v2608 = vmul.f32 %v2607, %v454
    %v2609 = vsub.f32 %v2604, %v2608
    %v2610 = vmul.f32 %v2609, %v2609
    %v2611 = vsel %vm450, %v2610, 0.0
    %2612 = vadd.xlane.f32.xlu0 %v2611
    %v2613 = vpop.xlane.xlu0 %2612
    %v2614 = vmul.f32 %v2613, %v454
    %v2615 = vadd.f32 %v2614, 1e-05
    %v2616 = vrsqrt.pop %v2615
    %v2617 = vmul.f32 %v2609, %v2616
    %v2618 = vmul.f32 %v2617, %v469
    %v2619 = vadd.f32 %v2618, %v476
    %s2620 = scalar_lea.vmem %s12, 24
    %2621 = vst.msk [vmem:[%s2620] sm:$0xf] %vm450, %v2619
    %v2622 = vld [vmem:[%s4] sm:$0xff]
    %v2623 = vld [vmem:[%s4 + $0x8] sm:$0xff]
    %v2624 = vld [vmem:[%s4 + $0x10] sm:$0xff]
    %v2625 = vld [vmem:[%s4 + $0x18] sm:$0xff]
    %v2627 = vsel %vm97, %v2525, 0
    %2629 = vmatprep.subr.mxu0 0.0
    %2630 = vmatpush1.msra.mxu0 %v2622
    %2631 = vmatprep.subr.mxu0 0.0
    %2632 = vmatpush1.msra.mxu0 %v2623
    %2633 = vmatprep.subr.mxu0 0.0
    %2634 = vmatpush1.msra.mxu0 %v2624
    %2635 = vmatprep.subr.mxu0 0.0
    %2636 = vmatpush1.msra.mxu0 %v2625
    %2637 = vmatprep.subr.mxu0 0.0
    %2638 = vmatpush1.msra.mxu0 0.0
    %2639 = vmatprep.subr.mxu0 0.0
    %2640 = vmatpush1.msra.mxu0 0.0
    %2641 = vmatprep.subr.mxu0 0.0
    %2642 = vmatpush1.msra.mxu0 0.0
    %2643 = vmatprep.subr.mxu0 0.0
    %2644 = vmatpush1.msra.mxu0 0.0
    %2645 = vmatprep.subr.mxu0 0.0
    %2646 = vmatpush1.msra.mxu0 0.0
    %2647 = vmatprep.subr.mxu0 0.0
    %2648 = vmatpush1.msra.mxu0 0.0
    %2649 = vmatprep.subr.mxu0 0.0
    %2650 = vmatpush1.msra.mxu0 0.0
    %2651 = vmatprep.subr.mxu0 0.0
    %2652 = vmatpush1.msra.mxu0 0.0
    %2653 = vmatprep.subr.mxu0 0.0
    %2654 = vmatpush1.msra.mxu0 0.0
    %2655 = vmatprep.subr.mxu0 0.0
    %2656 = vmatpush1.msra.mxu0 0.0
    %2657 = vmatprep.subr.mxu0 0.0
    %2658 = vmatpush1.msra.mxu0 0.0
    %2659 = vmatprep.subr.mxu0 0.0
    %2660 = vmatpush1.msra.mxu0 0.0
    %2661 = vmatprep.subr.mxu0 0.0
    %2662 = vmatpush1.msra.mxu0 0.0
    %2663 = vmatprep.subr.mxu0 0.0
    %2664 = vmatpush1.msra.mxu0 0.0
    %2665 = vmatprep.subr.mxu0 0.0
    %2666 = vmatpush1.msra.mxu0 0.0
    %2667 = vmatprep.subr.mxu0 0.0
    %2668 = vmatpush1.msra.mxu0 0.0
    %2669 = vmatprep.subr.mxu0 0.0
    %2670 = vmatpush1.msra.mxu0 0.0
    %2671 = vmatprep.subr.mxu0 0.0
    %2672 = vmatpush1.msra.mxu0 0.0
    %2673 = vmatprep.subr.mxu0 0.0
    %2674 = vmatpush1.msra.mxu0 0.0
    %2675 = vmatprep.subr.mxu0 0.0
    %2676 = vmatpush1.msra.mxu0 0.0
    %2677 = vmatprep.subr.mxu0 0.0
    %2678 = vmatpush1.msra.mxu0 0.0
    %2679 = vmatprep.subr.mxu0 0.0
    %2680 = vmatpush1.msra.mxu0 0.0
    %2681 = vmatprep.subr.mxu0 0.0
    %2682 = vmatpush1.msra.mxu0 0.0
    %2683 = vmatprep.subr.mxu0 0.0
    %2684 = vmatpush1.msra.mxu0 0.0
    %2685 = vmatprep.subr.mxu0 0.0
    %2686 = vmatpush1.msra.mxu0 0.0
    %2687 = vmatprep.subr.mxu0 0.0
    %2688 = vmatpush1.msra.mxu0 0.0
    %2689 = vmatprep.subr.mxu0 0.0
    %2690 = vmatpush1.msra.mxu0 0.0
    %2691 = vmatprep.subr.mxu0 0.0
    %2692 = vmatpush1.msra.mxu0 0.0
    %2693 = vmatprep.mubr.f32.mxu0 0.0
    %2694 = vmatmul.mubr.f32.gmra.mrb[0].mxu0 %v2627
    %v2695 = vpop.f32.mrb[0].mxu0
    %v2696 = vadd.f32 %v95, %v2695
    %v2697 = vpop.f32.mrb[0].mxu0
    %2698 = vdwg.mxu0
    %v2699 = vld [vmem:[%s171] sm:$0xff]
    %v2700 = vld [vmem:[%s171 + $0x8] sm:$0xff]
    %v2701 = vld [vmem:[%s171 + $0x10] sm:$0xff]
    %v2702 = vld [vmem:[%s171 + $0x18] sm:$0xff]
    %2703 = vmatprep.subr.mxu0 0.0
    %2704 = vmatpush1.msra.mxu0 %v2699
    %2705 = vmatprep.subr.mxu0 0.0
    %2706 = vmatpush1.msra.mxu0 %v2700
    %2707 = vmatprep.subr.mxu0 0.0
    %2708 = vmatpush1.msra.mxu0 %v2701
    %2709 = vmatprep.subr.mxu0 0.0
    %2710 = vmatpush1.msra.mxu0 %v2702
    %2711 = vmatprep.subr.mxu0 0.0
    %2712 = vmatpush1.msra.mxu0 0.0
    %2713 = vmatprep.subr.mxu0 0.0
    %2714 = vmatpush1.msra.mxu0 0.0
    %2715 = vmatprep.subr.mxu0 0.0
    %2716 = vmatpush1.msra.mxu0 0.0
    %2717 = vmatprep.subr.mxu0 0.0
    %2718 = vmatpush1.msra.mxu0 0.0
    %2719 = vmatprep.subr.mxu0 0.0
    %2720 = vmatpush1.msra.mxu0 0.0
    %2721 = vmatprep.subr.mxu0 0.0
    %2722 = vmatpush1.msra.mxu0 0.0
    %2723 = vmatprep.subr.mxu0 0.0
    %2724 = vmatpush1.msra.mxu0 0.0
    %2725 = vmatprep.subr.mxu0 0.0
    %2726 = vmatpush1.msra.mxu0 0.0
    %2727 = vmatprep.subr.mxu0 0.0
    %2728 = vmatpush1.msra.mxu0 0.0
    %2729 = vmatprep.subr.mxu0 0.0
    %2730 = vmatpush1.msra.mxu0 0.0
    %2731 = vmatprep.subr.mxu0 0.0
    %2732 = vmatpush1.msra.mxu0 0.0
    %2733 = vmatprep.subr.mxu0 0.0
    %2734 = vmatpush1.msra.mxu0 0.0
    %2735 = vmatprep.subr.mxu0 0.0
    %2736 = vmatpush1.msra.mxu0 0.0
    %2737 = vmatprep.subr.mxu0 0.0
    %2738 = vmatpush1.msra.mxu0 0.0
    %2739 = vmatprep.subr.mxu0 0.0
    %2740 = vmatpush1.msra.mxu0 0.0
    %2741 = vmatprep.subr.mxu0 0.0
    %2742 = vmatpush1.msra.mxu0 0.0
    %2743 = vmatprep.subr.mxu0 0.0
    %2744 = vmatpush1.msra.mxu0 0.0
    %2745 = vmatprep.subr.mxu0 0.0
    %2746 = vmatpush1.msra.mxu0 0.0
    %2747 = vmatprep.subr.mxu0 0.0
    %2748 = vmatpush1.msra.mxu0 0.0
    %2749 = vmatprep.subr.mxu0 0.0
    %2750 = vmatpush1.msra.mxu0 0.0
    %2751 = vmatprep.subr.mxu0 0.0
    %2752 = vmatpush1.msra.mxu0 0.0
    %2753 = vmatprep.subr.mxu0 0.0
    %2754 = vmatpush1.msra.mxu0 0.0
    %2755 = vmatprep.subr.mxu0 0.0
    %2756 = vmatpush1.msra.mxu0 0.0
    %2757 = vmatprep.subr.mxu0 0.0
    %2758 = vmatpush1.msra.mxu0 0.0
    %2759 = vmatprep.subr.mxu0 0.0
    %2760 = vmatpush1.msra.mxu0 0.0
    %2761 = vmatprep.subr.mxu0 0.0
    %2762 = vmatpush1.msra.mxu0 0.0
    %2763 = vmatprep.subr.mxu0 0.0
    %2764 = vmatpush1.msra.mxu0 0.0
    %2765 = vmatprep.subr.mxu0 0.0
    %2766 = vmatpush1.msra.mxu0 0.0
    %2767 = vmatprep.mubr.f32.mxu0 0.0
    %2768 = vmatmul.mubr.f32.gmra.mrb[0].mxu0 %v2627
    %v2769 = vpop.f32.mrb[0].mxu0
    %v2770 = vadd.f32 %v180, %v2769
    %v2771 = vpop.f32.mrb[0].mxu0
    %2772 = vdwg.mxu0
    %v2773 = vld [vmem:[%s252] sm:$0xff]
    %v2774 = vld [vmem:[%s252 + $0x8] sm:$0xff]
    %v2775 = vld [vmem:[%s252 + $0x10] sm:$0xff]
    %v2776 = vld [vmem:[%s252 + $0x18] sm:$0xff]
    %2777 = vmatprep.subr.mxu0 0.0
    %2778 = vmatpush1.msra.mxu0 %v2773
    %2779 = vmatprep.subr.mxu0 0.0
    %2780 = vmatpush1.msra.mxu0 %v2774
    %2781 = vmatprep.subr.mxu0 0.0
    %2782 = vmatpush1.msra.mxu0 %v2775
    %2783 = vmatprep.subr.mxu0 0.0
    %2784 = vmatpush1.msra.mxu0 %v2776
    %2785 = vmatprep.subr.mxu0 0.0
    %2786 = vmatpush1.msra.mxu0 0.0
    %2787 = vmatprep.subr.mxu0 0.0
    %2788 = vmatpush1.msra.mxu0 0.0
    %2789 = vmatprep.subr.mxu0 0.0
    %2790 = vmatpush1.msra.mxu0 0.0
    %2791 = vmatprep.subr.mxu0 0.0
    %2792 = vmatpush1.msra.mxu0 0.0
    %2793 = vmatprep.subr.mxu0 0.0
    %2794 = vmatpush1.msra.mxu0 0.0
    %2795 = vmatprep.subr.mxu0 0.0
    %2796 = vmatpush1.msra.mxu0 0.0
    %2797 = vmatprep.subr.mxu0 0.0
    %2798 = vmatpush1.msra.mxu0 0.0
    %2799 = vmatprep.subr.mxu0 0.0
    %2800 = vmatpush1.msra.mxu0 0.0
    %2801 = vmatprep.subr.mxu0 0.0
    %2802 = vmatpush1.msra.mxu0 0.0
    %2803 = vmatprep.subr.mxu0 0.0
    %2804 = vmatpush1.msra.mxu0 0.0
    %2805 = vmatprep.subr.mxu0 0.0
    %2806 = vmatpush1.msra.mxu0 0.0
    %2807 = vmatprep.subr.mxu0 0.0
    %2808 = vmatpush1.msra.mxu0 0.0
    %2809 = vmatprep.subr.mxu0 0.0
    %2810 = vmatpush1.msra.mxu0 0.0
    %2811 = vmatprep.subr.mxu0 0.0
    %2812 = vmatpush1.msra.mxu0 0.0
    %2813 = vmatprep.subr.mxu0 0.0
    %2814 = vmatpush1.msra.mxu0 0.0
    %2815 = vmatprep.subr.mxu0 0.0
    %2816 = vmatpush1.msra.mxu0 0.0
    %2817 = vmatprep.subr.mxu0 0.0
    %2818 = vmatpush1.msra.mxu0 0.0
    %2819 = vmatprep.subr.mxu0 0.0
    %2820 = vmatpush1.msra.mxu0 0.0
    %2821 = vmatprep.subr.mxu0 0.0
    %2822 = vmatpush1.msra.mxu0 0.0
    %2823 = vmatprep.subr.mxu0 0.0
    %2824 = vmatpush1.msra.mxu0 0.0
    %2825 = vmatprep.subr.mxu0 0.0
    %2826 = vmatpush1.msra.mxu0 0.0
    %2827 = vmatprep.subr.mxu0 0.0
    %2828 = vmatpush1.msra.mxu0 0.0
    %2829 = vmatprep.subr.mxu0 0.0
    %2830 = vmatpush1.msra.mxu0 0.0
    %2831 = vmatprep.subr.mxu0 0.0
    %2832 = vmatpush1.msra.mxu0 0.0
    %2833 = vmatprep.subr.mxu0 0.0
    %2834 = vmatpush1.msra.mxu0 0.0
    %2835 = vmatprep.subr.mxu0 0.0
    %2836 = vmatpush1.msra.mxu0 0.0
    %2837 = vmatprep.subr.mxu0 0.0
    %2838 = vmatpush1.msra.mxu0 0.0
    %2839 = vmatprep.subr.mxu0 0.0
    %2840 = vmatpush1.msra.mxu0 0.0
    %2841 = vmatprep.mubr.f32.mxu0 0.0
    %2842 = vmatmul.mubr.f32.gmra.mrb[0].mxu0 %v2627
    %v2843 = vpop.f32.mrb[0].mxu0
    %v2844 = vadd.f32 %v261, %v2843
    %v2845 = vpop.f32.mrb[0].mxu0
    %2846 = vdwg.mxu0
    %s2847 = scalar_lea.vmem %s1, 28
    %v2848 = vld [vmem:[%s2847] sm:$0xf]
    %v2849 = vadd.f32 %v2848, %v2696
    %v2850 = vxor.u32 %v2849, 2147483648
    %v2851 = vmul.f32 %v2850, 1.442695
    %v2852 = vpow.pop %v2851
    %v2853 = vadd.f32 %v2852, 1.0
    %v2854 = vrcp.pop %v2853
    %v2855 = vmul.f32 1.0, %v2854
    %s2856 = scalar_lea.vmem %s2, 28
    %v2857 = vld [vmem:[%s2856] sm:$0xf]
    %v2858 = vadd.f32 %v2857, %v2770
    %v2859 = vxor.u32 %v2858, 2147483648
    %v2860 = vmul.f32 %v2859, 1.442695
    %v2861 = vpow.pop %v2860
    %v2862 = vadd.f32 %v2861, 1.0
    %v2863 = vrcp.pop %v2862
    %v2864 = vmul.f32 1.0, %v2863
    %s2865 = scalar_lea.vmem %s3, 28
    %v2866 = vld [vmem:[%s2865] sm:$0xf]
    %v2867 = vmul.f32 %v2855, %v2844
    %v2868 = vadd.f32 %v2866, %v2867
    %v2869 = vtanh.pop %v2868
    %v2870 = vsub.f32 1.0, %v2864
    %v2871 = vmul.f32 %v2870, %v2869
    %v2872 = vmul.f32 %v2864, %v2525
    %v2873 = vadd.f32 %v2871, %v2872
    %s2874 = sadd.s32 %s86, 7
    %v2875 = vstv %s2874
    %vm2876 = vcmp.lt.s32.totalorder %v2875, %v76
    %v2877 = vsel %vm2876, 1, 0
    %2878 = vset.pattern.permute.xlu0 0
    %2879 = vperm.xlu0 %2878, %v2877
    %v2880 = vpop.permute.xlu0 %2879
    %vm2881 = vcmp.eq.s32.totalorder %v2880, 1
    %v2882 = vsel %vm2881, %v2873, %v2525
    %v2883 = vsel %vm2881, %v2873, 0.0
    %v2884 = vld [vmem:[%s6] sm:$0xff]
    %v2885 = vld [vmem:[%s6 + $0x8] sm:$0xff]
    %v2886 = vld [vmem:[%s6 + $0x10] sm:$0xff]
    %v2887 = vld [vmem:[%s6 + $0x18] sm:$0xff]
    %v2889 = vsel %vm97, %v2883, 0
    %2891 = vmatprep.subr.mxu0 0.0
    %2892 = vmatpush1.msra.mxu0 %v2884
    %2893 = vmatprep.subr.mxu0 0.0
    %2894 = vmatpush1.msra.mxu0 %v2885
    %2895 = vmatprep.subr.mxu0 0.0
    %2896 = vmatpush1.msra.mxu0 %v2886
    %2897 = vmatprep.subr.mxu0 0.0
    %2898 = vmatpush1.msra.mxu0 %v2887
    %2899 = vmatprep.subr.mxu0 0.0
    %2900 = vmatpush1.msra.mxu0 0.0
    %2901 = vmatprep.subr.mxu0 0.0
    %2902 = vmatpush1.msra.mxu0 0.0
    %2903 = vmatprep.subr.mxu0 0.0
    %2904 = vmatpush1.msra.mxu0 0.0
    %2905 = vmatprep.subr.mxu0 0.0
    %2906 = vmatpush1.msra.mxu0 0.0
    %2907 = vmatprep.subr.mxu0 0.0
    %2908 = vmatpush1.msra.mxu0 0.0
    %2909 = vmatprep.subr.mxu0 0.0
    %2910 = vmatpush1.msra.mxu0 0.0
    %2911 = vmatprep.subr.mxu0 0.0
    %2912 = vmatpush1.msra.mxu0 0.0
    %2913 = vmatprep.subr.mxu0 0.0
    %2914 = vmatpush1.msra.mxu0 0.0
    %2915 = vmatprep.subr.mxu0 0.0
    %2916 = vmatpush1.msra.mxu0 0.0
    %2917 = vmatprep.subr.mxu0 0.0
    %2918 = vmatpush1.msra.mxu0 0.0
    %2919 = vmatprep.subr.mxu0 0.0
    %2920 = vmatpush1.msra.mxu0 0.0
    %2921 = vmatprep.subr.mxu0 0.0
    %2922 = vmatpush1.msra.mxu0 0.0
    %2923 = vmatprep.subr.mxu0 0.0
    %2924 = vmatpush1.msra.mxu0 0.0
    %2925 = vmatprep.subr.mxu0 0.0
    %2926 = vmatpush1.msra.mxu0 0.0
    %2927 = vmatprep.subr.mxu0 0.0
    %2928 = vmatpush1.msra.mxu0 0.0
    %2929 = vmatprep.subr.mxu0 0.0
    %2930 = vmatpush1.msra.mxu0 0.0
    %2931 = vmatprep.subr.mxu0 0.0
    %2932 = vmatpush1.msra.mxu0 0.0
    %2933 = vmatprep.subr.mxu0 0.0
    %2934 = vmatpush1.msra.mxu0 0.0
    %2935 = vmatprep.subr.mxu0 0.0
    %2936 = vmatpush1.msra.mxu0 0.0
    %2937 = vmatprep.subr.mxu0 0.0
    %2938 = vmatpush1.msra.mxu0 0.0
    %2939 = vmatprep.subr.mxu0 0.0
    %2940 = vmatpush1.msra.mxu0 0.0
    %2941 = vmatprep.subr.mxu0 0.0
    %2942 = vmatpush1.msra.mxu0 0.0
    %2943 = vmatprep.subr.mxu0 0.0
    %2944 = vmatpush1.msra.mxu0 0.0
    %2945 = vmatprep.subr.mxu0 0.0
    %2946 = vmatpush1.msra.mxu0 0.0
    %2947 = vmatprep.subr.mxu0 0.0
    %2948 = vmatpush1.msra.mxu0 0.0
    %2949 = vmatprep.subr.mxu0 0.0
    %2950 = vmatpush1.msra.mxu0 0.0
    %2951 = vmatprep.subr.mxu0 0.0
    %2952 = vmatpush1.msra.mxu0 0.0
    %2953 = vmatprep.subr.mxu0 0.0
    %2954 = vmatpush1.msra.mxu0 0.0
    %2955 = vmatprep.mubr.f32.mxu0 0.0
    %2956 = vmatmul.mubr.f32.gmra.mrb[0].mxu0 %v2889
    %v2957 = vpop.f32.mrb[0].mxu0
    %v2958 = vadd.f32 %v374, %v2957
    %v2959 = vpop.f32.mrb[0].mxu0
    %2960 = vdwg.mxu0
    %v2961 = vmax.f32 %v2958, 0.0
    %v2962 = vsel %vm450, %v2961, 0.0
    %2963 = vadd.xlane.f32.xlu0 %v2962
    %v2964 = vpop.xlane.xlu0 %2963
    %v2965 = vmul.f32 %v2964, %v454
    %v2966 = vsub.f32 %v2961, %v2965
    %v2967 = vmul.f32 %v2966, %v2966
    %v2968 = vsel %vm450, %v2967, 0.0
    %2969 = vadd.xlane.f32.xlu0 %v2968
    %v2970 = vpop.xlane.xlu0 %2969
    %v2971 = vmul.f32 %v2970, %v454
    %v2972 = vadd.f32 %v2971, 1e-05
    %v2973 = vrsqrt.pop %v2972
    %v2974 = vmul.f32 %v2966, %v2973
    %v2975 = vmul.f32 %v2974, %v469
    %v2976 = vadd.f32 %v2975, %v476
    %s2977 = scalar_lea.vmem %s12, 28
    %2978 = vst.msk [vmem:[%s2977] sm:$0xf] %vm450, %v2976
    %2979 = vst.msk [vmem:[#allocation2] sm:$0xf] %vm450, %v2882
    // Predicated region
    $region62: #{lang_module_forward.3} parent=1 // pred_check
      %p2980 = pneg %p70
    $region63: #{lang_module_forward.3} parent=1 // pred_check_branch
      %2982 = sbr.rel (%p2980) target = $region65
    $region64: #{lang_module_forward.3} parent=1 // pred_region
      %2983 = vst.msk [vmem:[#allocation8] sm:$0xf] %vm450, %v2882
      %v2984 = vld [vmem:[%s10] sm:$0xff]
      %v2985 = vld [vmem:[%s10 + $0x8] sm:$0xff]
      %v2986 = vld [vmem:[%s10 + $0x10] sm:$0xff]
      %v2987 = vld [vmem:[%s10 + $0x18] sm:$0xff]
      %v2988 = vld [vmem:[#allocation6] sm:$0x1]
      %v2990 = vlaneseq
      %v2991 = vshrl.u32 %v2990, 7
      %v2992 = vsub.s32 0, %v2991
      %v2993 = vrot.slane %v2988, %v2992
      %v2996 = vsel %vm97, %v2882, 0
      %2998 = vmatprep.subr.mxu0 0.0
      %2999 = vmatpush1.msra.mxu0 %v2984
      %3000 = vmatprep.subr.mxu0 0.0
      %3001 = vmatpush1.msra.mxu0 %v2985
      %3002 = vmatprep.subr.mxu0 0.0
      %3003 = vmatpush1.msra.mxu0 %v2986
      %3004 = vmatprep.subr.mxu0 0.0
      %3005 = vmatpush1.msra.mxu0 %v2987
      %3006 = vmatprep.subr.mxu0 0.0
      %3007 = vmatpush1.msra.mxu0 0.0
      %3008 = vmatprep.subr.mxu0 0.0
      %3009 = vmatpush1.msra.mxu0 0.0
      %3010 = vmatprep.subr.mxu0 0.0
      %3011 = vmatpush1.msra.mxu0 0.0
      %3012 = vmatprep.subr.mxu0 0.0
      %3013 = vmatpush1.msra.mxu0 0.0
      %3014 = vmatprep.subr.mxu0 0.0
      %3015 = vmatpush1.msra.mxu0 0.0
      %3016 = vmatprep.subr.mxu0 0.0
      %3017 = vmatpush1.msra.mxu0 0.0
      %3018 = vmatprep.subr.mxu0 0.0
      %3019 = vmatpush1.msra.mxu0 0.0
      %3020 = vmatprep.subr.mxu0 0.0
      %3021 = vmatpush1.msra.mxu0 0.0
      %3022 = vmatprep.subr.mxu0 0.0
      %3023 = vmatpush1.msra.mxu0 0.0
      %3024 = vmatprep.subr.mxu0 0.0
      %3025 = vmatpush1.msra.mxu0 0.0
      %3026 = vmatprep.subr.mxu0 0.0
      %3027 = vmatpush1.msra.mxu0 0.0
      %3028 = vmatprep.subr.mxu0 0.0
      %3029 = vmatpush1.msra.mxu0 0.0
      %3030 = vmatprep.subr.mxu0 0.0
      %3031 = vmatpush1.msra.mxu0 0.0
      %3032 = vmatprep.subr.mxu0 0.0
      %3033 = vmatpush1.msra.mxu0 0.0
      %3034 = vmatprep.subr.mxu0 0.0
      %3035 = vmatpush1.msra.mxu0 0.0
      %3036 = vmatprep.subr.mxu0 0.0
      %3037 = vmatpush1.msra.mxu0 0.0
      %3038 = vmatprep.subr.mxu0 0.0
      %3039 = vmatpush1.msra.mxu0 0.0
      %3040 = vmatprep.subr.mxu0 0.0
      %3041 = vmatpush1.msra.mxu0 0.0
      %3042 = vmatprep.subr.mxu0 0.0
      %3043 = vmatpush1.msra.mxu0 0.0
      %3044 = vmatprep.subr.mxu0 0.0
      %3045 = vmatpush1.msra.mxu0 0.0
      %3046 = vmatprep.subr.mxu0 0.0
      %3047 = vmatpush1.msra.mxu0 0.0
      %3048 = vmatprep.subr.mxu0 0.0
      %3049 = vmatpush1.msra.mxu0 0.0
      %3050 = vmatprep.subr.mxu0 0.0
      %3051 = vmatpush1.msra.mxu0 0.0
      %3052 = vmatprep.subr.mxu0 0.0
      %3053 = vmatpush1.msra.mxu0 0.0
      %3054 = vmatprep.subr.mxu0 0.0
      %3055 = vmatpush1.msra.mxu0 0.0
      %3056 = vmatprep.subr.mxu0 0.0
      %3057 = vmatpush1.msra.mxu0 0.0
      %3058 = vmatprep.subr.mxu0 0.0
      %3059 = vmatpush1.msra.mxu0 0.0
      %3060 = vmatprep.subr.mxu0 0.0
      %3061 = vmatpush1.msra.mxu0 0.0
      %3062 = vmatprep.mubr.f32.mxu0 0.0
      %3063 = vmatmul.mubr.f32.gmra.mrb[0].mxu0 %v2996
      %v3064 = vpop.f32.mrb[0].mxu0
      %v3065 = vadd.f32 %v2993, %v3064
      %v3066 = vpop.f32.mrb[0].mxu0
      %3067 = vdwg.mxu0
      %vm3068 = vcmask 125952
      %3069 = vst.msk [vmem:[#allocation9] sm:$0xf] %vm3068, %v3065
    $region65: #{lang_module_forward.3} parent=1 // pred_fallthru
      _
    // Predicated region
    $region66: #{lang_module_forward.3} parent=1 // pred_check
      _
    $region67: #{lang_module_forward.3} parent=1 // pred_check_branch
      %3071 = sbr.rel (0) target = $region69
    $region68: #{lang_module_forward.3} parent=1 // pred_region
      _
    $region69: #{lang_module_forward.3} parent=1 // pred_fallthru
      _
    // Predicated region
    $region70: #{lang_module_forward.3} parent=1 // pred_check
      _
    $region71: #{lang_module_forward.3} parent=1 // pred_check_branch
      %3073 = sbr.rel (0) target = $region73
    $region72: #{lang_module_forward.3} parent=1 // pred_region
      %s3075 = ssub.s32 64, 64
      %3076 = vsyncadd [#allocation5], %s3075
      %s3078 = sshll.u32 [#allocation8], 4
      %s3079 = int_to_ptr.vmem [resolvable:$true] %s3078
      %3081 = dma.vmem_to_hbm [thread:$0]  %s3079, 64, %s13, [#allocation5]
    $region73: #{lang_module_forward.3} parent=1 // pred_fallthru
      _
    // Predicated region
    $region74: #{lang_module_forward.3} parent=1 // pred_check
      _
    $region75: #{lang_module_forward.3} parent=1 // pred_check_branch
      %3083 = sbr.rel (0) target = $region77
    $region76: #{lang_module_forward.3} parent=1 // pred_region
      %s3085 = ssub.s32 64, 64
      %3086 = vsyncadd [#allocation10], %s3085
      %s3088 = sshll.u32 [#allocation9], 4
      %s3089 = int_to_ptr.vmem [resolvable:$true] %s3088
      %3091 = dma.vmem_to_hbm [thread:$0]  %s3089, 64, %s14, [#allocation10]
    $region77: #{lang_module_forward.3} parent=1 // pred_fallthru
      _
    // Predicated region
    $region78: #{lang_module_forward.3} parent=1 // pred_check
      _
    $region79: #{lang_module_forward.3} parent=1 // pred_check_branch
      %3093 = sbr.rel (0) target = $region81
    $region80: #{lang_module_forward.3} parent=1 // pred_region
      _
    $region81: #{lang_module_forward.3} parent=1 // pred_fallthru
      _
    // Predicated region
    $region82: #{lang_module_forward.3} parent=1 // pred_check
      _
    $region83: #{lang_module_forward.3} parent=1 // pred_check_branch
      %3095 = sbr.rel (0) target = $region85
    $region84: #{lang_module_forward.3} parent=1 // pred_region
      %3096 = dma.done [#allocation5], 64
    $region85: #{lang_module_forward.3} parent=1 // pred_fallthru
      _
    // Predicated region
    $region86: #{lang_module_forward.3} parent=1 // pred_check
      _
    $region87: #{lang_module_forward.3} parent=1 // pred_check_branch
      %3098 = sbr.rel (0) target = $region89
    $region88: #{lang_module_forward.3} parent=1 // pred_region
      %3099 = dma.done [#allocation10], 64
    $region89: #{lang_module_forward.3} parent=1 // pred_fallthru
      _
    %3100 = vsyncpa [#allocation4], 1
    %3101 = vsyncpa [#allocation7], 1
    %3102 = vsyncpa [#allocation5], 1
    %3103 = vsyncpa [#allocation10], 1

</llo_original>
